<compile_context>
chip_gen: v6e
topology: v6e:2x2x1
jax: 0.10.0
libtpu: 0.0.40
codegen_flags: <defaults>
</compile_context>

<pallas_src>
import math
import functools

import jax
import jax.numpy as jnp
from jax import lax
from jax.experimental import pallas as pl
from jax.experimental.pallas import tpu as pltpu


def _round_up(x, m):
    return ((x + m - 1) // m) * m


def _make_conv_kernel(*, k, wp, img_stride, block_m, cout, cout_pad):
    """Builds the Pallas kernel body with all static geometry baked in.

    a_ref : (T_rows, K*Cin)       dx-windowed activation, fully VMEM-resident
    w_ref : (K, K*Cin, Cout_pad)  combined conv weights, fully VMEM-resident
    b_ref : (1, Cout)             combined bias (f32)
    o_ref : (block_m, Cout)       one tile of the "wide" output (f32)
    """

    def kernel(a_ref, w_ref, b_ref, o_ref):
        n = pl.program_id(0)                 # image index
        i = pl.program_id(1)                 # row-tile index within the image
        row0 = n * img_stride + i * block_m  # first wide-output row of this tile

        acc = jnp.zeros((block_m, cout_pad), jnp.float32)
        # dy handled in-kernel via shifted reads of the resident activation:
        # K accumulating MXU matmuls with contraction K*Cin, f32 accumulation.
        for dy in range(k):                  # static unroll; K = 2*num_kernels-1
            lhs = a_ref[pl.ds(row0 + dy * wp, block_m), :]
            acc = acc + jnp.dot(lhs, w_ref[dy],
                                preferred_element_type=jnp.float32)

        # Narrow (masked) f32 store: only the real Cout lanes go back to HBM.
        o_ref[...] = (acc[:, :cout] + b_ref[...]).astype(o_ref.dtype)

    return kernel


def inception_block_v1(x_nchw, w_comb, b_comb, *,
                       compute_dtype=jnp.bfloat16,
                       block_m=256,
                       vmem_limit_bytes=None):
    """x_nchw: (N, Cin, H, W) f32; w_comb: (K, K, Cin, Cout); b_comb: (Cout,).

    Returns (N, Cout, H, W) f32, matching Inception_Block_V1.forward.
    NOTE: for trained checkpoints b_comb must be the MEAN of the per-branch
    biases (zero at init, which is what make_params produces).
    """
    N, Cin, H, W = x_nchw.shape
    K = w_comb.shape[0]
    Cout = w_comb.shape[-1]
    P = (K - 1) // 2

    Hp, Wp = H + 2 * P, W + 2 * P
    img_stride = Hp * Wp          # flattened padded-pixel rows per image
    m_img = H * Wp                # "wide" output rows per image (y < H, all x)
    KCin = K * Cin
    Cout_pad = _round_up(Cout, 128)   # lane-dense RHS / accumulator width

    block_m = _round_up(min(block_m, _round_up(m_img, 8)), 8)
    m_img_pad = _round_up(m_img, block_m)
    n_tiles = m_img_pad // block_m

    # ---- wrapper-side layout plumbing (all on the SMALL activation) ----
    # Cast to the compute dtype BEFORE any duplication (review item).
    x_nhwc = jnp.transpose(x_nchw, (0, 2, 3, 1)).astype(compute_dtype)
    xp = jnp.pad(x_nhwc, ((0, 0), (P, P), (P, P), (0, 0)))
    xf = xp.reshape(N * img_stride, Cin)

    # dx window: A[r, dx*Cin + ci] = xf[r + dx, ci].  K-fold duplication of the
    # small activation only; tail padding covers reads from the (discarded)
    # garbage rows of the last image's last tile.
    tail = max(0, m_img_pad + (K - 1) * Wp - img_stride)
    rows_a = N * img_stride + tail
    xf_p = jnp.pad(xf, ((0, tail + (K - 1)), (0, 0)))
    a = jnp.concatenate([xf_p[dx:dx + rows_a] for dx in range(K)], axis=1)

    # Weights flattened in the same (dx, ci) column order as A, Cout padded to
    # a lane-dense 128 for the in-VMEM matmul (exact: padding is zeros).
    w_mat = w_comb.reshape(K, KCin, Cout)
    w_mat = jnp.pad(w_mat, ((0, 0), (0, 0), (0, Cout_pad - Cout)))
    w_mat = w_mat.astype(compute_dtype)

    b_mat = b_comb.reshape(1, Cout).astype(jnp.float32)

    kernel = _make_conv_kernel(k=K, wp=Wp, img_stride=img_stride,
                               block_m=block_m, cout=Cout, cout_pad=Cout_pad)

    out_wide = pl.pallas_call(
        kernel,
        out_shape=jax.ShapeDtypeStruct((N, m_img_pad, Cout), jnp.float32),
        grid=(N, n_tiles),
        in_specs=[
            # Entire dx-windowed activation resident in VMEM, DMA'd once.
            pl.BlockSpec((rows_a, KCin), lambda n, i: (0, 0)),
            # Entire weight tensor resident in VMEM, DMA'd once.
            pl.BlockSpec((K, KCin, Cout_pad), lambda n, i: (0, 0, 0)),
            pl.BlockSpec((1, Cout), lambda n, i: (0, 0)),
        ],
        out_specs=pl.BlockSpec((None, block_m, Cout), lambda n, i: (n, i, 0)),
        compiler_params=pltpu.CompilerParams(
            dimension_semantics=("parallel", "parallel"),
            vmem_limit_bytes=vmem_limit_bytes),
    )(a, w_mat, b_mat)

    # Drop the padded-width / rounding garbage rows, back to NCHW.
    out = out_wide[:, :H * Wp, :].reshape(N, H, Wp, Cout)[:, :, :W, :]
    return jnp.transpose(out, (0, 3, 1, 2)).astype(x_nchw.dtype)


def make_params(key, in_channels, out_channels, num_kernels):
    """Deterministic parameter init matching the PyTorch module's __init__.

    Branch i is Conv2d(in, out, kernel_size=2i+1, padding=i) with
    kaiming_normal_(mode='fan_out', nonlinearity='relu') weights and zero bias.
    Returns the combined (mean-fused) kernel (Kmax, Kmax, Cin, Cout), the
    combined bias (Cout,), and the raw per-branch OIHW weights for the
    reference.  The mean-of-branches -> single-summed-kernel fusion is exact
    only for stride 1, odd kernels, "same" padding and equal averaging weights
    (asserted below); with nonzero trained biases, the combined bias must be
    the mean of the per-branch biases.
    """
    P = num_kernels - 1
    Kmax = 2 * P + 1
    w_comb = jnp.zeros((Kmax, Kmax, in_channels, out_channels), jnp.float32)
    b_comb = jnp.zeros((out_channels,), jnp.float32)
    per_branch = []
    for i in range(num_kernels):
        k = 2 * i + 1
        assert k % 2 == 1 and (k - 1) // 2 == i
        key, sub = jax.random.split(key)
        # kaiming_normal_ fan_out: std = sqrt(2 / (Cout * k * k))
        std = math.sqrt(2.0 / (out_channels * k * k))
        w_oihw = jax.random.normal(sub, (out_channels, in_channels, k, k),
                                   jnp.float32) * std
        w_hwio = jnp.transpose(w_oihw, (2, 3, 1, 0))
        off = P - i
        w_comb = w_comb.at[off:off + k, off:off + k].add(w_hwio / num_kernels)
        per_branch.append(w_oihw)   # branch bias is 0, so the mean bias stays 0
    return w_comb, b_comb, per_branch


def reference_forward(x_nchw, per_branch_weights, num_kernels):
    """Pure-JAX reference: per-branch conv then mean (matches PyTorch forward)."""
    outs = []
    for i in range(num_kernels):
        w = per_branch_weights[i]          # (Cout, Cin, k, k)
        pad = i
        y = lax.conv_general_dilated(
            x_nchw, w,
            window_strides=(1, 1),
            padding=[(pad, pad), (pad, pad)],
            dimension_numbers=("NCHW", "OIHW", "NCHW"),
            precision=lax.Precision.HIGHEST)
        outs.append(y)
    return jnp.mean(jnp.stack(outs, axis=-1), axis=-1)


if __name__ == "__main__":
    # Small shapes consistent with the module: batch=2, in_ch=4, out_ch=8, 16x16.
    N, CIN, COUT, H, W = 2, 4, 8, 16, 16
    NUM_KERNELS = 6

    key = jax.random.PRNGKey(0)
    key, kx = jax.random.split(key)
    x = jax.random.normal(kx, (N, CIN, H, W), jnp.float32)

    w_comb, b_comb, per_branch = make_params(key, CIN, COUT, NUM_KERNELS)

    ref = jax.block_until_ready(reference_forward(x, per_branch, NUM_KERNELS))

    # f32 compute path: tight correctness check.
    fwd_f32 = jax.jit(functools.partial(inception_block_v1,
                                        compute_dtype=jnp.float32))
    out_f32 = jax.block_until_ready(fwd_f32(x, w_comb, b_comb))
    assert out_f32.shape == (N, COUT, H, W)
    assert jnp.allclose(out_f32, ref, atol=1e-4, rtol=1e-4), (
        float(jnp.max(jnp.abs(out_f32 - ref))))

    # bf16 compute path (MXU default for v6e/v7x): looser tolerance.
    fwd_bf16 = jax.jit(functools.partial(inception_block_v1,
                                         compute_dtype=jnp.bfloat16))
    out_bf16 = jax.block_until_ready(fwd_bf16(x, w_comb, b_comb))
    assert out_bf16.shape == (N, COUT, H, W)
    assert jnp.allclose(out_bf16, ref, atol=5e-2, rtol=5e-2), (
        float(jnp.max(jnp.abs(out_bf16 - ref))))

    print("KERNEL_OK")
</pallas_src>

<mosaic_0001>
module attributes {stable_mosaic.version = 11 : i64} {
  func.func @kernel(%arg0: i32, %arg1: i32, %arg2: memref<1448x44xf32, #tpu.memory_space<vmem>>, %arg3: memref<11x44x128xf32, #tpu.memory_space<vmem>>, %arg4: memref<1x8xf32, #tpu.memory_space<vmem>>, %arg5: memref<1x256x8xf32, #tpu.memory_space<vmem>>) attributes {dimension_semantics = [#tpu.dimension_semantics<parallel>, #tpu.dimension_semantics<parallel>], iteration_bounds = array<i64: 2, 2>, scalar_prefetch = 0 : i64, scratch_operands = 0 : i64, tpu.core_type = #tpu.core_type<tc>, window_params = [{pipeline_mode = #tpu.pipeline_mode<synchronous>, transform_indices = @transform_0, window_bounds = array<i64: 1448, 44>}, {pipeline_mode = #tpu.pipeline_mode<synchronous>, transform_indices = @transform_1, window_bounds = array<i64: 11, 44, 128>}, {pipeline_mode = #tpu.pipeline_mode<synchronous>, transform_indices = @transform_2, window_bounds = array<i64: 1, 8>}, {transform_indices = @transform_3, window_bounds = array<i64: 1, 256, 8>}]} {
    %c676_i32 = arith.constant 676 : i32
    %0 = arith.muli %arg0, %c676_i32 : i32
    %c256_i32 = arith.constant 256 : i32
    %1 = arith.muli %arg1, %c256_i32 : i32
    %2 = arith.addi %0, %1 : i32
    %cst = arith.constant 0.000000e+00 : f32
    %3 = vector.broadcast %cst : f32 to vector<256x128xf32>
    %c0_i32 = arith.constant 0 : i32
    %4 = arith.addi %2, %c0_i32 : i32
    %5 = arith.index_cast %4 : i32 to index
    %c0 = arith.constant 0 : index
    %6 = vector.load %arg2[%5, %c0] : memref<1448x44xf32, #tpu.memory_space<vmem>>, vector<256x44xf32>
    %c0_0 = arith.constant 0 : index
    %c0_1 = arith.constant 0 : index
    %c0_2 = arith.constant 0 : index
    %7 = vector.load %arg3[%c0_0, %c0_1, %c0_2] : memref<11x44x128xf32, #tpu.memory_space<vmem>>, vector<1x44x128xf32>
    %8 = vector.shape_cast %7 : vector<1x44x128xf32> to vector<44x128xf32>
    %cst_3 = arith.constant dense<0.000000e+00> : vector<256x128xf32>
    %9 = tpu.matmul %6, %8, %cst_3 {dimension_numbers = #tpu.dot_dimension_numbers<[1], [0], [0], [1], [0, 0, 1, 1], [], []>} : vector<256x44xf32>, vector<44x128xf32>, vector<256x128xf32> -> vector<256x128xf32>
    %10 = arith.addf %3, %9 : vector<256x128xf32>
    %c26_i32 = arith.constant 26 : i32
    %11 = arith.addi %2, %c26_i32 : i32
    %12 = arith.index_cast %11 : i32 to index
    %c0_4 = arith.constant 0 : index
    %13 = vector.load %arg2[%12, %c0_4] : memref<1448x44xf32, #tpu.memory_space<vmem>>, vector<256x44xf32>
    %c1 = arith.constant 1 : index
    %c0_5 = arith.constant 0 : index
    %c0_6 = arith.constant 0 : index
    %14 = vector.load %arg3[%c1, %c0_5, %c0_6] : memref<11x44x128xf32, #tpu.memory_space<vmem>>, vector<1x44x128xf32>
    %15 = vector.shape_cast %14 : vector<1x44x128xf32> to vector<44x128xf32>
    %cst_7 = arith.constant dense<0.000000e+00> : vector<256x128xf32>
    %16 = tpu.matmul %13, %15, %cst_7 {dimension_numbers = #tpu.dot_dimension_numbers<[1], [0], [0], [1], [0, 0, 1, 1], [], []>} : vector<256x44xf32>, vector<44x128xf32>, vector<256x128xf32> -> vector<256x128xf32>
    %17 = arith.addf %10, %16 : vector<256x128xf32>
    %c52_i32 = arith.constant 52 : i32
    %18 = arith.addi %2, %c52_i32 : i32
    %19 = arith.index_cast %18 : i32 to index
    %c0_8 = arith.constant 0 : index
    %20 = vector.load %arg2[%19, %c0_8] : memref<1448x44xf32, #tpu.memory_space<vmem>>, vector<256x44xf32>
    %c2 = arith.constant 2 : index
    %c0_9 = arith.constant 0 : index
    %c0_10 = arith.constant 0 : index
    %21 = vector.load %arg3[%c2, %c0_9, %c0_10] : memref<11x44x128xf32, #tpu.memory_space<vmem>>, vector<1x44x128xf32>
    %22 = vector.shape_cast %21 : vector<1x44x128xf32> to vector<44x128xf32>
    %cst_11 = arith.constant dense<0.000000e+00> : vector<256x128xf32>
    %23 = tpu.matmul %20, %22, %cst_11 {dimension_numbers = #tpu.dot_dimension_numbers<[1], [0], [0], [1], [0, 0, 1, 1], [], []>} : vector<256x44xf32>, vector<44x128xf32>, vector<256x128xf32> -> vector<256x128xf32>
    %24 = arith.addf %17, %23 : vector<256x128xf32>
    %c78_i32 = arith.constant 78 : i32
    %25 = arith.addi %2, %c78_i32 : i32
    %26 = arith.index_cast %25 : i32 to index
    %c0_12 = arith.constant 0 : index
    %27 = vector.load %arg2[%26, %c0_12] : memref<1448x44xf32, #tpu.memory_space<vmem>>, vector<256x44xf32>
    %c3 = arith.constant 3 : index
    %c0_13 = arith.constant 0 : index
    %c0_14 = arith.constant 0 : index
    %28 = vector.load %arg3[%c3, %c0_13, %c0_14] : memref<11x44x128xf32, #tpu.memory_space<vmem>>, vector<1x44x128xf32>
    %29 = vector.shape_cast %28 : vector<1x44x128xf32> to vector<44x128xf32>
    %cst_15 = arith.constant dense<0.000000e+00> : vector<256x128xf32>
    %30 = tpu.matmul %27, %29, %cst_15 {dimension_numbers = #tpu.dot_dimension_numbers<[1], [0], [0], [1], [0, 0, 1, 1], [], []>} : vector<256x44xf32>, vector<44x128xf32>, vector<256x128xf32> -> vector<256x128xf32>
    %31 = arith.addf %24, %30 : vector<256x128xf32>
    %c104_i32 = arith.constant 104 : i32
    %32 = arith.addi %2, %c104_i32 : i32
    %33 = arith.index_cast %32 : i32 to index
    %c0_16 = arith.constant 0 : index
    %34 = vector.load %arg2[%33, %c0_16] : memref<1448x44xf32, #tpu.memory_space<vmem>>, vector<256x44xf32>
    %c4 = arith.constant 4 : index
    %c0_17 = arith.constant 0 : index
    %c0_18 = arith.constant 0 : index
    %35 = vector.load %arg3[%c4, %c0_17, %c0_18] : memref<11x44x128xf32, #tpu.memory_space<vmem>>, vector<1x44x128xf32>
    %36 = vector.shape_cast %35 : vector<1x44x128xf32> to vector<44x128xf32>
    %cst_19 = arith.constant dense<0.000000e+00> : vector<256x128xf32>
    %37 = tpu.matmul %34, %36, %cst_19 {dimension_numbers = #tpu.dot_dimension_numbers<[1], [0], [0], [1], [0, 0, 1, 1], [], []>} : vector<256x44xf32>, vector<44x128xf32>, vector<256x128xf32> -> vector<256x128xf32>
    %38 = arith.addf %31, %37 : vector<256x128xf32>
    %c130_i32 = arith.constant 130 : i32
    %39 = arith.addi %2, %c130_i32 : i32
    %40 = arith.index_cast %39 : i32 to index
    %c0_20 = arith.constant 0 : index
    %41 = vector.load %arg2[%40, %c0_20] : memref<1448x44xf32, #tpu.memory_space<vmem>>, vector<256x44xf32>
    %c5 = arith.constant 5 : index
    %c0_21 = arith.constant 0 : index
    %c0_22 = arith.constant 0 : index
    %42 = vector.load %arg3[%c5, %c0_21, %c0_22] : memref<11x44x128xf32, #tpu.memory_space<vmem>>, vector<1x44x128xf32>
    %43 = vector.shape_cast %42 : vector<1x44x128xf32> to vector<44x128xf32>
    %cst_23 = arith.constant dense<0.000000e+00> : vector<256x128xf32>
    %44 = tpu.matmul %41, %43, %cst_23 {dimension_numbers = #tpu.dot_dimension_numbers<[1], [0], [0], [1], [0, 0, 1, 1], [], []>} : vector<256x44xf32>, vector<44x128xf32>, vector<256x128xf32> -> vector<256x128xf32>
    %45 = arith.addf %38, %44 : vector<256x128xf32>
    %c156_i32 = arith.constant 156 : i32
    %46 = arith.addi %2, %c156_i32 : i32
    %47 = arith.index_cast %46 : i32 to index
    %c0_24 = arith.constant 0 : index
    %48 = vector.load %arg2[%47, %c0_24] : memref<1448x44xf32, #tpu.memory_space<vmem>>, vector<256x44xf32>
    %c6 = arith.constant 6 : index
    %c0_25 = arith.constant 0 : index
    %c0_26 = arith.constant 0 : index
    %49 = vector.load %arg3[%c6, %c0_25, %c0_26] : memref<11x44x128xf32, #tpu.memory_space<vmem>>, vector<1x44x128xf32>
    %50 = vector.shape_cast %49 : vector<1x44x128xf32> to vector<44x128xf32>
    %cst_27 = arith.constant dense<0.000000e+00> : vector<256x128xf32>
    %51 = tpu.matmul %48, %50, %cst_27 {dimension_numbers = #tpu.dot_dimension_numbers<[1], [0], [0], [1], [0, 0, 1, 1], [], []>} : vector<256x44xf32>, vector<44x128xf32>, vector<256x128xf32> -> vector<256x128xf32>
    %52 = arith.addf %45, %51 : vector<256x128xf32>
    %c182_i32 = arith.constant 182 : i32
    %53 = arith.addi %2, %c182_i32 : i32
    %54 = arith.index_cast %53 : i32 to index
    %c0_28 = arith.constant 0 : index
    %55 = vector.load %arg2[%54, %c0_28] : memref<1448x44xf32, #tpu.memory_space<vmem>>, vector<256x44xf32>
    %c7 = arith.constant 7 : index
    %c0_29 = arith.constant 0 : index
    %c0_30 = arith.constant 0 : index
    %56 = vector.load %arg3[%c7, %c0_29, %c0_30] : memref<11x44x128xf32, #tpu.memory_space<vmem>>, vector<1x44x128xf32>
    %57 = vector.shape_cast %56 : vector<1x44x128xf32> to vector<44x128xf32>
    %cst_31 = arith.constant dense<0.000000e+00> : vector<256x128xf32>
    %58 = tpu.matmul %55, %57, %cst_31 {dimension_numbers = #tpu.dot_dimension_numbers<[1], [0], [0], [1], [0, 0, 1, 1], [], []>} : vector<256x44xf32>, vector<44x128xf32>, vector<256x128xf32> -> vector<256x128xf32>
    %59 = arith.addf %52, %58 : vector<256x128xf32>
    %c208_i32 = arith.constant 208 : i32
    %60 = arith.addi %2, %c208_i32 : i32
    %61 = arith.index_cast %60 : i32 to index
    %c0_32 = arith.constant 0 : index
    %62 = vector.load %arg2[%61, %c0_32] : memref<1448x44xf32, #tpu.memory_space<vmem>>, vector<256x44xf32>
    %c8 = arith.constant 8 : index
    %c0_33 = arith.constant 0 : index
    %c0_34 = arith.constant 0 : index
    %63 = vector.load %arg3[%c8, %c0_33, %c0_34] : memref<11x44x128xf32, #tpu.memory_space<vmem>>, vector<1x44x128xf32>
    %64 = vector.shape_cast %63 : vector<1x44x128xf32> to vector<44x128xf32>
    %cst_35 = arith.constant dense<0.000000e+00> : vector<256x128xf32>
    %65 = tpu.matmul %62, %64, %cst_35 {dimension_numbers = #tpu.dot_dimension_numbers<[1], [0], [0], [1], [0, 0, 1, 1], [], []>} : vector<256x44xf32>, vector<44x128xf32>, vector<256x128xf32> -> vector<256x128xf32>
    %66 = arith.addf %59, %65 : vector<256x128xf32>
    %c234_i32 = arith.constant 234 : i32
    %67 = arith.addi %2, %c234_i32 : i32
    %68 = arith.index_cast %67 : i32 to index
    %c0_36 = arith.constant 0 : index
    %69 = vector.load %arg2[%68, %c0_36] : memref<1448x44xf32, #tpu.memory_space<vmem>>, vector<256x44xf32>
    %c9 = arith.constant 9 : index
    %c0_37 = arith.constant 0 : index
    %c0_38 = arith.constant 0 : index
    %70 = vector.load %arg3[%c9, %c0_37, %c0_38] : memref<11x44x128xf32, #tpu.memory_space<vmem>>, vector<1x44x128xf32>
    %71 = vector.shape_cast %70 : vector<1x44x128xf32> to vector<44x128xf32>
    %cst_39 = arith.constant dense<0.000000e+00> : vector<256x128xf32>
    %72 = tpu.matmul %69, %71, %cst_39 {dimension_numbers = #tpu.dot_dimension_numbers<[1], [0], [0], [1], [0, 0, 1, 1], [], []>} : vector<256x44xf32>, vector<44x128xf32>, vector<256x128xf32> -> vector<256x128xf32>
    %73 = arith.addf %66, %72 : vector<256x128xf32>
    %c260_i32 = arith.constant 260 : i32
    %74 = arith.addi %2, %c260_i32 : i32
    %75 = arith.index_cast %74 : i32 to index
    %c0_40 = arith.constant 0 : index
    %76 = vector.load %arg2[%75, %c0_40] : memref<1448x44xf32, #tpu.memory_space<vmem>>, vector<256x44xf32>
    %c10 = arith.constant 10 : index
    %c0_41 = arith.constant 0 : index
    %c0_42 = arith.constant 0 : index
    %77 = vector.load %arg3[%c10, %c0_41, %c0_42] : memref<11x44x128xf32, #tpu.memory_space<vmem>>, vector<1x44x128xf32>
    %78 = vector.shape_cast %77 : vector<1x44x128xf32> to vector<44x128xf32>
    %cst_43 = arith.constant dense<0.000000e+00> : vector<256x128xf32>
    %79 = tpu.matmul %76, %78, %cst_43 {dimension_numbers = #tpu.dot_dimension_numbers<[1], [0], [0], [1], [0, 0, 1, 1], [], []>} : vector<256x44xf32>, vector<44x128xf32>, vector<256x128xf32> -> vector<256x128xf32>
    %80 = arith.addf %73, %79 : vector<256x128xf32>
    %81 = vector.extract_strided_slice %80 {offsets = [0, 0], sizes = [256, 8], strides = [1, 1]} : vector<256x128xf32> to vector<256x8xf32>
    %c0_44 = arith.constant 0 : index
    %c0_45 = arith.constant 0 : index
    %82 = vector.load %arg4[%c0_44, %c0_45] : memref<1x8xf32, #tpu.memory_space<vmem>>, vector<1x8xf32>
    %83 = vector.broadcast %82 : vector<1x8xf32> to vector<256x8xf32>
    %84 = arith.addf %81, %83 : vector<256x8xf32>
    %c0_46 = arith.constant 0 : index
    %c0_47 = arith.constant 0 : index
    %c0_48 = arith.constant 0 : index
    %85 = vector.load %arg5[%c0_46, %c0_47, %c0_48] : memref<1x256x8xf32, #tpu.memory_space<vmem>>, vector<1x256x8xf32>
    %86 = vector.shape_cast %85 : vector<1x256x8xf32> to vector<256x8xf32>
    %87 = vector.shape_cast %84 : vector<256x8xf32> to vector<1x256x8xf32>
    tpu.vector_store %arg5[%c0_46, %c0_47, %c0_48], %87 {strides = array<i32>} : memref<1x256x8xf32, #tpu.memory_space<vmem>>, vector<1x256x8xf32>,
    return
  }
  func.func @transform_0(%arg0: i32, %arg1: i32) -> (i32, i32) {
    %c0_i32 = arith.constant 0 : i32
    %c0_i32_0 = arith.constant 0 : i32
    %c0_i32_1 = arith.constant 0 : i32
    return %c0_i32, %c0_i32_0 : i32, i32
  }
  func.func @transform_1(%arg0: i32, %arg1: i32) -> (i32, i32, i32) {
    %c0_i32 = arith.constant 0 : i32
    %c0_i32_0 = arith.constant 0 : i32
    %c0_i32_1 = arith.constant 0 : i32
    %c0_i32_2 = arith.constant 0 : i32
    return %c0_i32, %c0_i32_0, %c0_i32_1 : i32, i32, i32
  }
  func.func @transform_2(%arg0: i32, %arg1: i32) -> (i32, i32) {
    %c0_i32 = arith.constant 0 : i32
    %c0_i32_0 = arith.constant 0 : i32
    %c0_i32_1 = arith.constant 0 : i32
    return %c0_i32, %c0_i32_0 : i32, i32
  }
  func.func @transform_3(%arg0: i32, %arg1: i32) -> (i32, i32, i32) {
    %c0_i32 = arith.constant 0 : i32
    %c0_i32_0 = arith.constant 0 : i32
    return %arg0, %arg1, %c0_i32 : i32, i32, i32
  }
}

</mosaic_0001>

<llo_original>
// kernel: inception_block_v1.1
$region0: #{inception_block_v1.1}
  #allocation0 [shape = 'u32[]', space=smem, size = 0x4, offset = 0x4, fixed_abs, tag = 'smem constant byte address 0x4 - core index']
  #allocation1 [shape = 'u32[144,128]{1,0:T(1,128)}', space=vmem, size = 0x12000, scoped, tag = 'internal scratch']
  %s0 = inlined_call_operand.vmem [shape: f32[1448,44], index: 0, kind: input, shape index: {}]
  %s1 = inlined_call_operand.vmem [shape: f32[11,44,128], index: 1, kind: input, shape index: {}]
  %s2 = inlined_call_operand.vmem [shape: f32[1,8], index: 2, kind: input, shape index: {}]
  %s3 = inlined_call_operand.vmem [shape: f32[2,512,8], index: 3, kind: output, shape index: {}]
  %s4 = sld [smem:[#allocation0]]
  $region45: #{inception_block_v1.1} parent=0
    _
  %s6 = ssub.s32 1, %s4
  %s7 = scalar_select 0, %s6, %s4
  loop: start=0, step=1, limit=6
  $region2: #{inception_block_v1.1} parent=0 // loop_pre_header
    _
  $region3: #{inception_block_v1.1} parent=0 // loop_header
    %s9 = sphi 0, %s13
    %p10 = scmp.ge.s32.totalorder %s9, 6
    %s16 = sphi 0, %s28
    %s17 = sphi 0, %s24
    %s18 = sphi 0, %s16
    %s19 = sphi 0, %s17
    %s20 = sphi 0, %s18
    %s21 = sphi 0, %s19
    %s29 = sphi 0, %s29
    %s31 = sphi 0, %s29
    %s32 = sphi 0, %s31
    %s46 = sphi 0, %s32
    %s50 = sphi 0, %s50
    %s52 = sphi 0, %s50
    %s53 = sphi 0, %s52
    %s67 = sphi 0, %s53
    %s71 = sphi 0, %s71
    %s73 = sphi 0, %s71
    %s74 = sphi 0, %s73
    %s88 = sphi 0, %s74
    %s96 = sphi 0, %s98
    %s99 = sphi 0, %s96
    %s100 = sphi 0, %s99
    %s116 = sphi 0, %s100
  $region4: #{inception_block_v1.1} parent=0 // loop_header_branch
    %12 = sbr.rel (%p10) target = $region8
  $region5: #{inception_block_v1.1} parent=0 // loop_body
    %s14 = ssub.s32 %s9, 1
    %s15 = ssub.s32 %s9, 2
    %s22 = sadd.s32 1, %s17
    %p23 = scmp.ge.s32.totalorder %s22, 2
    %s24 = scalar_select %p23, 0, %s22
    %s25 = sadd.s32 1, %s16
    %s26 = scalar_select %p23, %s25, %s16
    %p27 = scmp.ge.s32.totalorder %s26, 2
    %s28 = scalar_select %p27, 0, %s26
    %s30 = sadd.s32 %s29, 1
    %p33 = scmp.eq.s32.totalorder %s9, 3
    %p34 = scmp.ne.s32.totalorder %s29, %s31
    %p35 = scmp.eq.s32.totalorder %s9, 0
    %p36 = por %p34, %p35
    %p37 = scmp.ne.s32.totalorder %s29, %s31
    %p38 = scmp.eq.s32.totalorder %s14, 3
    %p39 = por %p37, %p38
    %p40 = scmp.ne.s32.totalorder %s31, %s32
    %p41 = scmp.eq.s32.totalorder %s14, 0
    %p42 = por %p40, %p41
    %p43 = scmp.ne.s32.totalorder %s31, %s32
    %p44 = scmp.eq.s32.totalorder %s15, 3
    %p45 = por %p43, %p44
    %p47 = scmp.ne.s32.totalorder %s32, %s46
    %p48 = scmp.eq.s32.totalorder %s15, 0
    %p49 = por %p47, %p48
    %s51 = sadd.s32 %s50, 1
    %p54 = scmp.eq.s32.totalorder %s9, 3
    %p55 = scmp.ne.s32.totalorder %s50, %s52
    %p56 = scmp.eq.s32.totalorder %s9, 0
    %p57 = por %p55, %p56
    %p58 = scmp.ne.s32.totalorder %s50, %s52
    %p59 = scmp.eq.s32.totalorder %s14, 3
    %p60 = por %p58, %p59
    %p61 = scmp.ne.s32.totalorder %s52, %s53
    %p62 = scmp.eq.s32.totalorder %s14, 0
    %p63 = por %p61, %p62
    %p64 = scmp.ne.s32.totalorder %s52, %s53
    %p65 = scmp.eq.s32.totalorder %s15, 3
    %p66 = por %p64, %p65
    %p68 = scmp.ne.s32.totalorder %s53, %s67
    %p69 = scmp.eq.s32.totalorder %s15, 0
    %p70 = por %p68, %p69
    %s72 = sadd.s32 %s71, 1
    %p75 = scmp.eq.s32.totalorder %s9, 3
    %p76 = scmp.ne.s32.totalorder %s71, %s73
    %p77 = scmp.eq.s32.totalorder %s9, 0
    %p78 = por %p76, %p77
    %p79 = scmp.ne.s32.totalorder %s71, %s73
    %p80 = scmp.eq.s32.totalorder %s14, 3
    %p81 = por %p79, %p80
    %p82 = scmp.ne.s32.totalorder %s73, %s74
    %p83 = scmp.eq.s32.totalorder %s14, 0
    %p84 = por %p82, %p83
    %p85 = scmp.ne.s32.totalorder %s73, %s74
    %p86 = scmp.eq.s32.totalorder %s15, 3
    %p87 = por %p85, %p86
    %p89 = scmp.ne.s32.totalorder %s74, %s88
    %p90 = scmp.eq.s32.totalorder %s15, 0
    %p91 = por %p89, %p90
    %s92 = ssub.s32 %s16, %s28
    %s93 = ssub.s32 %s17, %s24
    %s94 = sor.u32 %s92, %s93
    %p95 = scmp.eq.s32.totalorder %s94, 0
    %s97 = sadd.s32 %s96, 1
    %s98 = scalar_select %p95, %s96, %s97
    %p101 = pneg %p95
    %p102 = scmp.eq.s32.totalorder %s9, 3
    %p103 = por %p101, %p102
    %p104 = scmp.ne.s32.totalorder %s96, %s99
    %p105 = scmp.eq.s32.totalorder %s9, 0
    %p106 = por %p104, %p105
    %p107 = scmp.ne.s32.totalorder %s96, %s99
    %p108 = scmp.eq.s32.totalorder %s14, 3
    %p109 = por %p107, %p108
    %p110 = scmp.ne.s32.totalorder %s99, %s100
    %p111 = scmp.eq.s32.totalorder %s14, 0
    %p112 = por %p110, %p111
    %p113 = scmp.ne.s32.totalorder %s99, %s100
    %p114 = scmp.eq.s32.totalorder %s15, 3
    %p115 = por %p113, %p114
    %p117 = scmp.ne.s32.totalorder %s100, %s116
    %p118 = scmp.eq.s32.totalorder %s15, 0
    %p119 = por %p117, %p118
    %p120 = scmp.le.s32.totalorder 1, %s9
    %p121 = scmp.lt.s32.totalorder %s9, 5
    %p122 = pnand %p120, %p121
    %p123 = pneg %p122
    // Predicated region
    $region9: #{inception_block_v1.1} parent=5 // pred_check
      _
    $region10: #{inception_block_v1.1} parent=5 // pred_check_branch
      %125 = sbr.rel (%p122) target = $region12
    $region11: #{inception_block_v1.1} parent=5 // pred_region
      %s126 = ssub.s32 %s9, 1
      // Predicated region
      $region13: #{inception_block_v1.1} parent=11 // pred_check
        %p127 = pneg %p42
      $region14: #{inception_block_v1.1} parent=11 // pred_check_branch
        %129 = sbr.rel (%p127) target = $region16
      $region15: #{inception_block_v1.1} parent=11 // pred_region
        _
      $region16: #{inception_block_v1.1} parent=11 // pred_fallthru
        _
      // Predicated region
      $region17: #{inception_block_v1.1} parent=11 // pred_check
        %p130 = pneg %p63
      $region18: #{inception_block_v1.1} parent=11 // pred_check_branch
        %132 = sbr.rel (%p130) target = $region20
      $region19: #{inception_block_v1.1} parent=11 // pred_region
        _
      $region20: #{inception_block_v1.1} parent=11 // pred_fallthru
        _
      // Predicated region
      $region21: #{inception_block_v1.1} parent=11 // pred_check
        %p133 = pneg %p84
      $region22: #{inception_block_v1.1} parent=11 // pred_check_branch
        %135 = sbr.rel (%p133) target = $region24
      $region23: #{inception_block_v1.1} parent=11 // pred_region
        _
      $region24: #{inception_block_v1.1} parent=11 // pred_fallthru
        _
    $region12: #{inception_block_v1.1} parent=5 // pred_fallthru
      _
    %p136 = scmp.lt.s32.totalorder %s9, 4
    // Predicated region
    $region25: #{inception_block_v1.1} parent=5 // pred_check
      %p137 = pneg %p136
    $region26: #{inception_block_v1.1} parent=5 // pred_check_branch
      %139 = sbr.rel (%p137) target = $region28
    $region27: #{inception_block_v1.1} parent=5 // pred_region
      _
    $region28: #{inception_block_v1.1} parent=5 // pred_fallthru
      _
    %p140 = scmp.le.s32.totalorder 1, %s9
    %p141 = scmp.lt.s32.totalorder %s9, 5
    %p142 = pnand %p140, %p141
    %p143 = pneg %p142
    // Predicated region
    $region29: #{inception_block_v1.1} parent=5 // pred_check
      _
    $region30: #{inception_block_v1.1} parent=5 // pred_check_branch
      %145 = sbr.rel (%p142) target = $region32
    $region31: #{inception_block_v1.1} parent=5 // pred_region
      %s146 = ssub.s32 %s9, 1
      %p147 = pneg %p42
      %p148 = pneg %p39
      %p149 = pneg %p63
      %p150 = pneg %p60
      %p151 = pneg %p84
      %p152 = pneg %p81
      %p153 = pneg %p112
      %p154 = pneg %p109
      %s155 = smul.u32 32, %s19
      %p156 = scmp.lt.s32.totalorder %s18, 1
      %s157 = scalar_select %p156, %s18, 1
      %p158 = scmp.lt.s32.totalorder %s155, 63
      %s159 = scalar_select %p158, %s155, 63
      %s160 = smul.addr %s157, 64
      %s161 = sadd.s32 %s159, %s160
      %s162 = smul.addr %s161, 8
      %s163 = scalar_lea.vmem %s3, %s162
      %s164 = smul.u32 32, %s19
      %p165 = scmp.lt.s32.totalorder %s18, 1
      %s166 = scalar_select %p165, %s18, 1
      %p167 = scmp.lt.s32.totalorder %s164, 63
      %s168 = scalar_select %p167, %s164, 63
      %s169 = smul.addr %s166, 64
      %s170 = sadd.s32 %s168, %s169
      %s171 = smul.addr %s170, 8
      %s172 = scalar_lea.vmem %s3, %s171
      %s173 = smul.u32 32, %s19
      %s174 = smul.u32 %s18, 676
      %s175 = smul.u32 %s19, 256
      %s176 = sadd.s32 %s174, %s175
      %s177 = scalar_lea.vmem %s0, %s176
      %v178 = vld [vmem:[%s177] sm:$0xff]
      %v179 = vld [vmem:[%s177 + $0x8] sm:$0xff]
      %v180 = vld [vmem:[%s177 + $0x10] sm:$0xff]
      %v181 = vld [vmem:[%s177 + $0x18] sm:$0xff]
      %v182 = vld [vmem:[%s177 + $0x20] sm:$0xff]
      %v183 = vld [vmem:[%s177 + $0x28] sm:$0xff]
      %v184 = vld [vmem:[%s177 + $0x30] sm:$0xff]
      %v185 = vld [vmem:[%s177 + $0x38] sm:$0xff]
      %v186 = vld [vmem:[%s177 + $0x40] sm:$0xff]
      %v187 = vld [vmem:[%s177 + $0x48] sm:$0xff]
      %v188 = vld [vmem:[%s177 + $0x50] sm:$0xff]
      %v189 = vld [vmem:[%s177 + $0x58] sm:$0xff]
      %v190 = vld [vmem:[%s177 + $0x60] sm:$0xff]
      %v191 = vld [vmem:[%s177 + $0x68] sm:$0xff]
      %v192 = vld [vmem:[%s177 + $0x70] sm:$0xff]
      %v193 = vld [vmem:[%s177 + $0x78] sm:$0xff]
      %v194 = vld [vmem:[%s177 + $0x80] sm:$0xff]
      %v195 = vld [vmem:[%s177 + $0x88] sm:$0xff]
      %v196 = vld [vmem:[%s177 + $0x90] sm:$0xff]
      %v197 = vld [vmem:[%s177 + $0x98] sm:$0xff]
      %v198 = vld [vmem:[%s177 + $0xa0] sm:$0xff]
      %v199 = vld [vmem:[%s177 + $0xa8] sm:$0xff]
      %v200 = vld [vmem:[%s177 + $0xb0] sm:$0xff]
      %v201 = vld [vmem:[%s177 + $0xb8] sm:$0xff]
      %v202 = vld [vmem:[%s177 + $0xc0] sm:$0xff]
      %v203 = vld [vmem:[%s177 + $0xc8] sm:$0xff]
      %v204 = vld [vmem:[%s177 + $0xd0] sm:$0xff]
      %v205 = vld [vmem:[%s177 + $0xd8] sm:$0xff]
      %v206 = vld [vmem:[%s177 + $0xe0] sm:$0xff]
      %v207 = vld [vmem:[%s177 + $0xe8] sm:$0xff]
      %v208 = vld [vmem:[%s177 + $0xf0] sm:$0xff]
      %v209 = vld [vmem:[%s177 + $0xf8] sm:$0xff]
      %v210 = vld [vmem:[%s1] sm:$0xff]
      %v211 = vld [vmem:[%s1 + $0x8] sm:$0xff]
      %v212 = vld [vmem:[%s1 + $0x10] sm:$0xff]
      %v213 = vld [vmem:[%s1 + $0x18] sm:$0xff]
      %v214 = vld [vmem:[%s1 + $0x20] sm:$0xff]
      %v215 = vld [vmem:[%s1 + $0x28] sm:$0xf]
      %s216 = sadd.s32 %s176, 26
      %s217 = scalar_lea.vmem %s0, %s216
      %v218 = vld [vmem:[%s217] sm:$0xff]
      %v219 = vld [vmem:[%s217 + $0x8] sm:$0xff]
      %v220 = vld [vmem:[%s217 + $0x10] sm:$0xff]
      %v221 = vld [vmem:[%s217 + $0x18] sm:$0xff]
      %v222 = vld [vmem:[%s217 + $0x20] sm:$0xff]
      %v223 = vld [vmem:[%s217 + $0x28] sm:$0xff]
      %v224 = vld [vmem:[%s217 + $0x30] sm:$0xff]
      %v225 = vld [vmem:[%s217 + $0x38] sm:$0xff]
      %v226 = vld [vmem:[%s217 + $0x40] sm:$0xff]
      %v227 = vld [vmem:[%s217 + $0x48] sm:$0xff]
      %v228 = vld [vmem:[%s217 + $0x50] sm:$0xff]
      %v229 = vld [vmem:[%s217 + $0x58] sm:$0xff]
      %v230 = vld [vmem:[%s217 + $0x60] sm:$0xff]
      %v231 = vld [vmem:[%s217 + $0x68] sm:$0xff]
      %v232 = vld [vmem:[%s217 + $0x70] sm:$0xff]
      %v233 = vld [vmem:[%s217 + $0x78] sm:$0xff]
      %v234 = vld [vmem:[%s217 + $0x80] sm:$0xff]
      %v235 = vld [vmem:[%s217 + $0x88] sm:$0xff]
      %v236 = vld [vmem:[%s217 + $0x90] sm:$0xff]
      %v237 = vld [vmem:[%s217 + $0x98] sm:$0xff]
      %v238 = vld [vmem:[%s217 + $0xa0] sm:$0xff]
      %v239 = vld [vmem:[%s217 + $0xa8] sm:$0xff]
      %v240 = vld [vmem:[%s217 + $0xb0] sm:$0xff]
      %v241 = vld [vmem:[%s217 + $0xb8] sm:$0xff]
      %v242 = vld [vmem:[%s217 + $0xc0] sm:$0xff]
      %v243 = vld [vmem:[%s217 + $0xc8] sm:$0xff]
      %v244 = vld [vmem:[%s217 + $0xd0] sm:$0xff]
      %v245 = vld [vmem:[%s217 + $0xd8] sm:$0xff]
      %v246 = vld [vmem:[%s217 + $0xe0] sm:$0xff]
      %v247 = vld [vmem:[%s217 + $0xe8] sm:$0xff]
      %v248 = vld [vmem:[%s217 + $0xf0] sm:$0xff]
      %v249 = vld [vmem:[%s217 + $0xf8] sm:$0xff]
      %s250 = scalar_lea.vmem %s1, 48
      %v251 = vld [vmem:[%s250] sm:$0xff]
      %v252 = vld [vmem:[%s250 + $0x8] sm:$0xff]
      %v253 = vld [vmem:[%s250 + $0x10] sm:$0xff]
      %v254 = vld [vmem:[%s250 + $0x18] sm:$0xff]
      %v255 = vld [vmem:[%s250 + $0x20] sm:$0xff]
      %v256 = vld [vmem:[%s250 + $0x28] sm:$0xf]
      %vm257 = vcmask 359424
      %v259 = vsel %vm257, %v218, 0
      %v262 = vsel %vm257, %v219, 0
      %v265 = vsel %vm257, %v220, 0
      %v268 = vsel %vm257, %v221, 0
      %v271 = vsel %vm257, %v222, 0
      %v274 = vsel %vm257, %v223, 0
      %v277 = vsel %vm257, %v224, 0
      %v280 = vsel %vm257, %v225, 0
      %v283 = vsel %vm257, %v226, 0
      %v286 = vsel %vm257, %v227, 0
      %v289 = vsel %vm257, %v228, 0
      %v292 = vsel %vm257, %v229, 0
      %v295 = vsel %vm257, %v230, 0
      %v298 = vsel %vm257, %v231, 0
      %v301 = vsel %vm257, %v232, 0
      %v304 = vsel %vm257, %v233, 0
      %v307 = vsel %vm257, %v234, 0
      %v310 = vsel %vm257, %v235, 0
      %v313 = vsel %vm257, %v236, 0
      %v316 = vsel %vm257, %v237, 0
      %v319 = vsel %vm257, %v238, 0
      %v322 = vsel %vm257, %v239, 0
      %v325 = vsel %vm257, %v240, 0
      %v328 = vsel %vm257, %v241, 0
      %v331 = vsel %vm257, %v242, 0
      %v334 = vsel %vm257, %v243, 0
      %v337 = vsel %vm257, %v244, 0
      %v340 = vsel %vm257, %v245, 0
      %v343 = vsel %vm257, %v246, 0
      %v346 = vsel %vm257, %v247, 0
      %v349 = vsel %vm257, %v248, 0
      %v352 = vsel %vm257, %v249, 0
      %vm354 = vcmask 1043456
      %v356 = vsel %vm354, %v256, 0
      %358 = vmatprep.subr.mxu0 0.0
      %359 = vmatpush1.msra.mxu0 0.0
      %360 = vmatprep.subr.mxu0 0.0
      %361 = vmatpush1.msra.mxu0 0.0
      %362 = vmatprep.subr.mxu0 0.0
      %363 = vmatpush1.msra.mxu0 0.0
      %364 = vmatprep.subr.mxu0 0.0
      %365 = vmatpush1.msra.mxu0 0.0
      %366 = vmatprep.subr.mxu0 0.0
      %367 = vmatpush1.msra.mxu0 0.0
      %368 = vmatprep.subr.mxu0 0.0
      %369 = vmatpush1.msra.mxu0 0.0
      %370 = vmatprep.subr.mxu0 0.0
      %371 = vmatpush1.msra.mxu0 0.0
      %372 = vmatprep.subr.mxu0 0.0
      %373 = vmatpush1.msra.mxu0 0.0
      %374 = vmatprep.subr.mxu0 0.0
      %375 = vmatpush1.msra.mxu0 0.0
      %376 = vmatprep.subr.mxu0 0.0
      %377 = vmatpush1.msra.mxu0 0.0
      %378 = vmatprep.subr.mxu0 0.0
      %379 = vmatpush1.msra.mxu0 %v356
      %380 = vmatprep.subr.mxu0 0.0
      %381 = vmatpush1.msra.mxu0 %v255
      %382 = vmatprep.subr.mxu0 0.0
      %383 = vmatpush1.msra.mxu0 %v254
      %384 = vmatprep.subr.mxu0 0.0
      %385 = vmatpush1.msra.mxu0 %v253
      %386 = vmatprep.subr.mxu0 0.0
      %387 = vmatpush1.msra.mxu0 %v252
      %388 = vmatprep.subr.mxu0 0.0
      %389 = vmatpush1.msra.mxu0 %v251
      %390 = vmatprep.subr.mxu0 0.0
      %391 = vmatpush2.msra.mxu0 0.0
      %392 = vmatprep.subr.mxu0 0.0
      %393 = vmatpush2.msra.mxu0 0.0
      %394 = vmatprep.subr.mxu0 0.0
      %395 = vmatpush2.msra.mxu0 0.0
      %396 = vmatprep.subr.mxu0 0.0
      %397 = vmatpush2.msra.mxu0 0.0
      %398 = vmatprep.subr.mxu0 0.0
      %399 = vmatpush2.msra.mxu0 0.0
      %400 = vmatprep.subr.mxu0 0.0
      %401 = vmatpush2.msra.mxu0 0.0
      %402 = vmatprep.subr.mxu0 0.0
      %403 = vmatpush2.msra.mxu0 0.0
      %404 = vmatprep.subr.mxu0 0.0
      %405 = vmatpush2.msra.mxu0 0.0
      %406 = vmatprep.subr.mxu0 0.0
      %407 = vmatpush2.msra.mxu0 0.0
      %408 = vmatprep.subr.mxu0 0.0
      %409 = vmatpush2.msra.mxu0 0.0
      %410 = vmatprep.subr.mxu0 0.0
      %411 = vmatpush2.msra.mxu0 0.0
      %412 = vmatprep.subr.mxu0 0.0
      %413 = vmatpush2.msra.mxu0 0.0
      %414 = vmatprep.subr.mxu0 0.0
      %415 = vmatpush2.msra.mxu0 0.0
      %416 = vmatprep.subr.mxu0 0.0
      %417 = vmatpush2.msra.mxu0 0.0
      %418 = vmatprep.subr.mxu0 0.0
      %419 = vmatpush2.msra.mxu0 0.0
      %420 = vmatprep.subr.mxu0 0.0
      %421 = vmatpush2.msra.mxu0 0.0
      %422 = vmatprep.mubr.f32.mxu0 0.0
      %423 = vmatmul.mubr.f32.gmra.mxu0 %v259
      %v424 = vpop.f32.mrf.mxu0
      %v425 = vadd.f32 0.0, %v424
      %v426 = vpop.f32.mrf.mxu0
      %427 = vmatprep.mubr.f32.mxu0 0.0
      %428 = vmatmul.mubr.f32.gmra.mxu0 %v262
      %v429 = vpop.f32.mrf.mxu0
      %v430 = vadd.f32 0.0, %v429
      %v431 = vpop.f32.mrf.mxu0
      %432 = vmatprep.mubr.f32.mxu0 0.0
      %433 = vmatmul.mubr.f32.gmra.mxu0 %v265
      %v434 = vpop.f32.mrf.mxu0
      %v435 = vadd.f32 0.0, %v434
      %v436 = vpop.f32.mrf.mxu0
      %437 = vmatprep.mubr.f32.mxu0 0.0
      %438 = vmatmul.mubr.f32.gmra.mxu0 %v268
      %v439 = vpop.f32.mrf.mxu0
      %v440 = vadd.f32 0.0, %v439
      %v441 = vpop.f32.mrf.mxu0
      %442 = vmatprep.mubr.f32.mxu0 0.0
      %443 = vmatmul.mubr.f32.gmra.mxu0 %v271
      %v444 = vpop.f32.mrf.mxu0
      %v445 = vadd.f32 0.0, %v444
      %v446 = vpop.f32.mrf.mxu0
      %447 = vmatprep.mubr.f32.mxu0 0.0
      %448 = vmatmul.mubr.f32.gmra.mxu0 %v274
      %v449 = vpop.f32.mrf.mxu0
      %v450 = vadd.f32 0.0, %v449
      %v451 = vpop.f32.mrf.mxu0
      %452 = vmatprep.mubr.f32.mxu0 0.0
      %453 = vmatmul.mubr.f32.gmra.mxu0 %v277
      %v454 = vpop.f32.mrf.mxu0
      %v455 = vadd.f32 0.0, %v454
      %v456 = vpop.f32.mrf.mxu0
      %457 = vmatprep.mubr.f32.mxu0 0.0
      %458 = vmatmul.mubr.f32.gmra.mxu0 %v280
      %v459 = vpop.f32.mrf.mxu0
      %v460 = vadd.f32 0.0, %v459
      %v461 = vpop.f32.mrf.mxu0
      %462 = vmatprep.mubr.f32.mxu0 0.0
      %463 = vmatmul.mubr.f32.gmra.mxu0 %v283
      %v464 = vpop.f32.mrf.mxu0
      %v465 = vadd.f32 0.0, %v464
      %v466 = vpop.f32.mrf.mxu0
      %467 = vmatprep.mubr.f32.mxu0 0.0
      %468 = vmatmul.mubr.f32.gmra.mxu0 %v286
      %v469 = vpop.f32.mrf.mxu0
      %v470 = vadd.f32 0.0, %v469
      %v471 = vpop.f32.mrf.mxu0
      %472 = vmatprep.mubr.f32.mxu0 0.0
      %473 = vmatmul.mubr.f32.gmra.mxu0 %v289
      %v474 = vpop.f32.mrf.mxu0
      %v475 = vadd.f32 0.0, %v474
      %v476 = vpop.f32.mrf.mxu0
      %477 = vmatprep.mubr.f32.mxu0 0.0
      %478 = vmatmul.mubr.f32.gmra.mxu0 %v292
      %v479 = vpop.f32.mrf.mxu0
      %v480 = vadd.f32 0.0, %v479
      %v481 = vpop.f32.mrf.mxu0
      %482 = vmatprep.mubr.f32.mxu0 0.0
      %483 = vmatmul.mubr.f32.gmra.mxu0 %v295
      %v484 = vpop.f32.mrf.mxu0
      %v485 = vadd.f32 0.0, %v484
      %v486 = vpop.f32.mrf.mxu0
      %487 = vmatprep.mubr.f32.mxu0 0.0
      %488 = vmatmul.mubr.f32.gmra.mxu0 %v298
      %v489 = vpop.f32.mrf.mxu0
      %v490 = vadd.f32 0.0, %v489
      %v491 = vpop.f32.mrf.mxu0
      %492 = vmatprep.mubr.f32.mxu0 0.0
      %493 = vmatmul.mubr.f32.gmra.mxu0 %v301
      %v494 = vpop.f32.mrf.mxu0
      %v495 = vadd.f32 0.0, %v494
      %v496 = vpop.f32.mrf.mxu0
      %497 = vmatprep.mubr.f32.mxu0 0.0
      %498 = vmatmul.mubr.f32.gmra.mxu0 %v304
      %v499 = vpop.f32.mrf.mxu0
      %v500 = vadd.f32 0.0, %v499
      %v501 = vpop.f32.mrf.mxu0
      %502 = vmatprep.mubr.f32.mxu0 0.0
      %503 = vmatmul.mubr.f32.gmra.mxu0 %v307
      %v504 = vpop.f32.mrf.mxu0
      %v505 = vadd.f32 0.0, %v504
      %v506 = vpop.f32.mrf.mxu0
      %507 = vmatprep.mubr.f32.mxu0 0.0
      %508 = vmatmul.mubr.f32.gmra.mxu0 %v310
      %v509 = vpop.f32.mrf.mxu0
      %v510 = vadd.f32 0.0, %v509
      %v511 = vpop.f32.mrf.mxu0
      %512 = vmatprep.mubr.f32.mxu0 0.0
      %513 = vmatmul.mubr.f32.gmra.mxu0 %v313
      %v514 = vpop.f32.mrf.mxu0
      %v515 = vadd.f32 0.0, %v514
      %v516 = vpop.f32.mrf.mxu0
      %517 = vmatprep.mubr.f32.mxu0 0.0
      %518 = vmatmul.mubr.f32.gmra.mxu0 %v316
      %v519 = vpop.f32.mrf.mxu0
      %v520 = vadd.f32 0.0, %v519
      %v521 = vpop.f32.mrf.mxu0
      %522 = vmatprep.mubr.f32.mxu0 0.0
      %523 = vmatmul.mubr.f32.gmra.mxu0 %v319
      %v524 = vpop.f32.mrf.mxu0
      %v525 = vadd.f32 0.0, %v524
      %v526 = vpop.f32.mrf.mxu0
      %527 = vmatprep.mubr.f32.mxu0 0.0
      %528 = vmatmul.mubr.f32.gmra.mxu0 %v322
      %v529 = vpop.f32.mrf.mxu0
      %v530 = vadd.f32 0.0, %v529
      %v531 = vpop.f32.mrf.mxu0
      %532 = vmatprep.mubr.f32.mxu0 0.0
      %533 = vmatmul.mubr.f32.gmra.mxu0 %v325
      %v534 = vpop.f32.mrf.mxu0
      %v535 = vadd.f32 0.0, %v534
      %v536 = vpop.f32.mrf.mxu0
      %537 = vmatprep.mubr.f32.mxu0 0.0
      %538 = vmatmul.mubr.f32.gmra.mxu0 %v328
      %v539 = vpop.f32.mrf.mxu0
      %v540 = vadd.f32 0.0, %v539
      %v541 = vpop.f32.mrf.mxu0
      %542 = vmatprep.mubr.f32.mxu0 0.0
      %543 = vmatmul.mubr.f32.gmra.mxu0 %v331
      %v544 = vpop.f32.mrf.mxu0
      %v545 = vadd.f32 0.0, %v544
      %v546 = vpop.f32.mrf.mxu0
      %547 = vmatprep.mubr.f32.mxu0 0.0
      %548 = vmatmul.mubr.f32.gmra.mxu0 %v334
      %v549 = vpop.f32.mrf.mxu0
      %v550 = vadd.f32 0.0, %v549
      %v551 = vpop.f32.mrf.mxu0
      %552 = vmatprep.mubr.f32.mxu0 0.0
      %553 = vmatmul.mubr.f32.gmra.mxu0 %v337
      %v554 = vpop.f32.mrf.mxu0
      %v555 = vadd.f32 0.0, %v554
      %v556 = vpop.f32.mrf.mxu0
      %557 = vmatprep.mubr.f32.mxu0 0.0
      %558 = vmatmul.mubr.f32.gmra.mxu0 %v340
      %v559 = vpop.f32.mrf.mxu0
      %v560 = vadd.f32 0.0, %v559
      %v561 = vpop.f32.mrf.mxu0
      %562 = vmatprep.mubr.f32.mxu0 0.0
      %563 = vmatmul.mubr.f32.gmra.mxu0 %v343
      %v564 = vpop.f32.mrf.mxu0
      %v565 = vadd.f32 0.0, %v564
      %v566 = vpop.f32.mrf.mxu0
      %567 = vmatprep.mubr.f32.mxu0 0.0
      %568 = vmatmul.mubr.f32.gmra.mxu0 %v346
      %v569 = vpop.f32.mrf.mxu0
      %v570 = vadd.f32 0.0, %v569
      %v571 = vpop.f32.mrf.mxu0
      %572 = vmatprep.mubr.f32.mxu0 0.0
      %573 = vmatmul.mubr.f32.gmra.mxu0 %v349
      %v574 = vpop.f32.mrf.mxu0
      %v575 = vadd.f32 0.0, %v574
      %v576 = vpop.f32.mrf.mxu0
      %577 = vmatprep.mubr.f32.mxu0 0.0
      %578 = vmatmul.mubr.f32.gmra.mxu0 %v352
      %v579 = vpop.f32.mrf.mxu0
      %v580 = vadd.f32 0.0, %v579
      %v581 = vpop.f32.mrf.mxu0
      %582 = vdwg.mxu0
      %v584 = vsel %vm257, %v178, 0
      %v587 = vsel %vm257, %v179, 0
      %v590 = vsel %vm257, %v180, 0
      %v593 = vsel %vm257, %v181, 0
      %v596 = vsel %vm257, %v182, 0
      %v599 = vsel %vm257, %v183, 0
      %v602 = vsel %vm257, %v184, 0
      %v605 = vsel %vm257, %v185, 0
      %v608 = vsel %vm257, %v186, 0
      %v611 = vsel %vm257, %v187, 0
      %v614 = vsel %vm257, %v188, 0
      %v617 = vsel %vm257, %v189, 0
      %v620 = vsel %vm257, %v190, 0
      %v623 = vsel %vm257, %v191, 0
      %v626 = vsel %vm257, %v192, 0
      %v629 = vsel %vm257, %v193, 0
      %v632 = vsel %vm257, %v194, 0
      %v635 = vsel %vm257, %v195, 0
      %v638 = vsel %vm257, %v196, 0
      %v641 = vsel %vm257, %v197, 0
      %v644 = vsel %vm257, %v198, 0
      %v647 = vsel %vm257, %v199, 0
      %v650 = vsel %vm257, %v200, 0
      %v653 = vsel %vm257, %v201, 0
      %v656 = vsel %vm257, %v202, 0
      %v659 = vsel %vm257, %v203, 0
      %v662 = vsel %vm257, %v204, 0
      %v665 = vsel %vm257, %v205, 0
      %v668 = vsel %vm257, %v206, 0
      %v671 = vsel %vm257, %v207, 0
      %v674 = vsel %vm257, %v208, 0
      %v677 = vsel %vm257, %v209, 0
      %v680 = vsel %vm354, %v215, 0
      %682 = vmatprep.subr.mxu0 0.0
      %683 = vmatpush1.msra.mxu0 0.0
      %684 = vmatprep.subr.mxu0 0.0
      %685 = vmatpush1.msra.mxu0 0.0
      %686 = vmatprep.subr.mxu0 0.0
      %687 = vmatpush1.msra.mxu0 0.0
      %688 = vmatprep.subr.mxu0 0.0
      %689 = vmatpush1.msra.mxu0 0.0
      %690 = vmatprep.subr.mxu0 0.0
      %691 = vmatpush1.msra.mxu0 0.0
      %692 = vmatprep.subr.mxu0 0.0
      %693 = vmatpush1.msra.mxu0 0.0
      %694 = vmatprep.subr.mxu0 0.0
      %695 = vmatpush1.msra.mxu0 0.0
      %696 = vmatprep.subr.mxu0 0.0
      %697 = vmatpush1.msra.mxu0 0.0
      %698 = vmatprep.subr.mxu0 0.0
      %699 = vmatpush1.msra.mxu0 0.0
      %700 = vmatprep.subr.mxu0 0.0
      %701 = vmatpush1.msra.mxu0 0.0
      %702 = vmatprep.subr.mxu0 0.0
      %703 = vmatpush1.msra.mxu0 %v680
      %704 = vmatprep.subr.mxu0 0.0
      %705 = vmatpush1.msra.mxu0 %v214
      %706 = vmatprep.subr.mxu0 0.0
      %707 = vmatpush1.msra.mxu0 %v213
      %708 = vmatprep.subr.mxu0 0.0
      %709 = vmatpush1.msra.mxu0 %v212
      %710 = vmatprep.subr.mxu0 0.0
      %711 = vmatpush1.msra.mxu0 %v211
      %712 = vmatprep.subr.mxu0 0.0
      %713 = vmatpush1.msra.mxu0 %v210
      %714 = vmatprep.subr.mxu0 0.0
      %715 = vmatpush2.msra.mxu0 0.0
      %716 = vmatprep.subr.mxu0 0.0
      %717 = vmatpush2.msra.mxu0 0.0
      %718 = vmatprep.subr.mxu0 0.0
      %719 = vmatpush2.msra.mxu0 0.0
      %720 = vmatprep.subr.mxu0 0.0
      %721 = vmatpush2.msra.mxu0 0.0
      %722 = vmatprep.subr.mxu0 0.0
      %723 = vmatpush2.msra.mxu0 0.0
      %724 = vmatprep.subr.mxu0 0.0
      %725 = vmatpush2.msra.mxu0 0.0
      %726 = vmatprep.subr.mxu0 0.0
      %727 = vmatpush2.msra.mxu0 0.0
      %728 = vmatprep.subr.mxu0 0.0
      %729 = vmatpush2.msra.mxu0 0.0
      %730 = vmatprep.subr.mxu0 0.0
      %731 = vmatpush2.msra.mxu0 0.0
      %732 = vmatprep.subr.mxu0 0.0
      %733 = vmatpush2.msra.mxu0 0.0
      %734 = vmatprep.subr.mxu0 0.0
      %735 = vmatpush2.msra.mxu0 0.0
      %736 = vmatprep.subr.mxu0 0.0
      %737 = vmatpush2.msra.mxu0 0.0
      %738 = vmatprep.subr.mxu0 0.0
      %739 = vmatpush2.msra.mxu0 0.0
      %740 = vmatprep.subr.mxu0 0.0
      %741 = vmatpush2.msra.mxu0 0.0
      %742 = vmatprep.subr.mxu0 0.0
      %743 = vmatpush2.msra.mxu0 0.0
      %744 = vmatprep.subr.mxu0 0.0
      %745 = vmatpush2.msra.mxu0 0.0
      %746 = vmatprep.mubr.f32.mxu0 0.0
      %747 = vmatmul.mubr.f32.gmra.mxu0 %v584
      %v748 = vpop.f32.mrf.mxu0
      %v749 = vadd.f32 %v425, %v748
      %v750 = vpop.f32.mrf.mxu0
      %751 = vmatprep.mubr.f32.mxu0 0.0
      %752 = vmatmul.mubr.f32.gmra.mxu0 %v587
      %v753 = vpop.f32.mrf.mxu0
      %v754 = vadd.f32 %v430, %v753
      %v755 = vpop.f32.mrf.mxu0
      %756 = vmatprep.mubr.f32.mxu0 0.0
      %757 = vmatmul.mubr.f32.gmra.mxu0 %v590
      %v758 = vpop.f32.mrf.mxu0
      %v759 = vadd.f32 %v435, %v758
      %v760 = vpop.f32.mrf.mxu0
      %761 = vmatprep.mubr.f32.mxu0 0.0
      %762 = vmatmul.mubr.f32.gmra.mxu0 %v593
      %v763 = vpop.f32.mrf.mxu0
      %v764 = vadd.f32 %v440, %v763
      %v765 = vpop.f32.mrf.mxu0
      %766 = vmatprep.mubr.f32.mxu0 0.0
      %767 = vmatmul.mubr.f32.gmra.mxu0 %v596
      %v768 = vpop.f32.mrf.mxu0
      %v769 = vadd.f32 %v445, %v768
      %v770 = vpop.f32.mrf.mxu0
      %771 = vmatprep.mubr.f32.mxu0 0.0
      %772 = vmatmul.mubr.f32.gmra.mxu0 %v599
      %v773 = vpop.f32.mrf.mxu0
      %v774 = vadd.f32 %v450, %v773
      %v775 = vpop.f32.mrf.mxu0
      %776 = vmatprep.mubr.f32.mxu0 0.0
      %777 = vmatmul.mubr.f32.gmra.mxu0 %v602
      %v778 = vpop.f32.mrf.mxu0
      %v779 = vadd.f32 %v455, %v778
      %v780 = vpop.f32.mrf.mxu0
      %781 = vmatprep.mubr.f32.mxu0 0.0
      %782 = vmatmul.mubr.f32.gmra.mxu0 %v605
      %v783 = vpop.f32.mrf.mxu0
      %v784 = vadd.f32 %v460, %v783
      %v785 = vpop.f32.mrf.mxu0
      %786 = vmatprep.mubr.f32.mxu0 0.0
      %787 = vmatmul.mubr.f32.gmra.mxu0 %v608
      %v788 = vpop.f32.mrf.mxu0
      %v789 = vadd.f32 %v465, %v788
      %v790 = vpop.f32.mrf.mxu0
      %791 = vmatprep.mubr.f32.mxu0 0.0
      %792 = vmatmul.mubr.f32.gmra.mxu0 %v611
      %v793 = vpop.f32.mrf.mxu0
      %v794 = vadd.f32 %v470, %v793
      %v795 = vpop.f32.mrf.mxu0
      %796 = vmatprep.mubr.f32.mxu0 0.0
      %797 = vmatmul.mubr.f32.gmra.mxu0 %v614
      %v798 = vpop.f32.mrf.mxu0
      %v799 = vadd.f32 %v475, %v798
      %v800 = vpop.f32.mrf.mxu0
      %801 = vmatprep.mubr.f32.mxu0 0.0
      %802 = vmatmul.mubr.f32.gmra.mxu0 %v617
      %v803 = vpop.f32.mrf.mxu0
      %v804 = vadd.f32 %v480, %v803
      %v805 = vpop.f32.mrf.mxu0
      %806 = vmatprep.mubr.f32.mxu0 0.0
      %807 = vmatmul.mubr.f32.gmra.mxu0 %v620
      %v808 = vpop.f32.mrf.mxu0
      %v809 = vadd.f32 %v485, %v808
      %v810 = vpop.f32.mrf.mxu0
      %811 = vmatprep.mubr.f32.mxu0 0.0
      %812 = vmatmul.mubr.f32.gmra.mxu0 %v623
      %v813 = vpop.f32.mrf.mxu0
      %v814 = vadd.f32 %v490, %v813
      %v815 = vpop.f32.mrf.mxu0
      %816 = vmatprep.mubr.f32.mxu0 0.0
      %817 = vmatmul.mubr.f32.gmra.mxu0 %v626
      %v818 = vpop.f32.mrf.mxu0
      %v819 = vadd.f32 %v495, %v818
      %v820 = vpop.f32.mrf.mxu0
      %821 = vmatprep.mubr.f32.mxu0 0.0
      %822 = vmatmul.mubr.f32.gmra.mxu0 %v629
      %v823 = vpop.f32.mrf.mxu0
      %v824 = vadd.f32 %v500, %v823
      %v825 = vpop.f32.mrf.mxu0
      %826 = vmatprep.mubr.f32.mxu0 0.0
      %827 = vmatmul.mubr.f32.gmra.mxu0 %v632
      %v828 = vpop.f32.mrf.mxu0
      %v829 = vadd.f32 %v505, %v828
      %v830 = vpop.f32.mrf.mxu0
      %831 = vmatprep.mubr.f32.mxu0 0.0
      %832 = vmatmul.mubr.f32.gmra.mxu0 %v635
      %v833 = vpop.f32.mrf.mxu0
      %v834 = vadd.f32 %v510, %v833
      %v835 = vpop.f32.mrf.mxu0
      %836 = vmatprep.mubr.f32.mxu0 0.0
      %837 = vmatmul.mubr.f32.gmra.mxu0 %v638
      %v838 = vpop.f32.mrf.mxu0
      %v839 = vadd.f32 %v515, %v838
      %v840 = vpop.f32.mrf.mxu0
      %841 = vmatprep.mubr.f32.mxu0 0.0
      %842 = vmatmul.mubr.f32.gmra.mxu0 %v641
      %v843 = vpop.f32.mrf.mxu0
      %v844 = vadd.f32 %v520, %v843
      %v845 = vpop.f32.mrf.mxu0
      %846 = vmatprep.mubr.f32.mxu0 0.0
      %847 = vmatmul.mubr.f32.gmra.mxu0 %v644
      %v848 = vpop.f32.mrf.mxu0
      %v849 = vadd.f32 %v525, %v848
      %v850 = vpop.f32.mrf.mxu0
      %851 = vmatprep.mubr.f32.mxu0 0.0
      %852 = vmatmul.mubr.f32.gmra.mxu0 %v647
      %v853 = vpop.f32.mrf.mxu0
      %v854 = vadd.f32 %v530, %v853
      %v855 = vpop.f32.mrf.mxu0
      %856 = vmatprep.mubr.f32.mxu0 0.0
      %857 = vmatmul.mubr.f32.gmra.mxu0 %v650
      %v858 = vpop.f32.mrf.mxu0
      %v859 = vadd.f32 %v535, %v858
      %v860 = vpop.f32.mrf.mxu0
      %861 = vmatprep.mubr.f32.mxu0 0.0
      %862 = vmatmul.mubr.f32.gmra.mxu0 %v653
      %v863 = vpop.f32.mrf.mxu0
      %v864 = vadd.f32 %v540, %v863
      %v865 = vpop.f32.mrf.mxu0
      %866 = vmatprep.mubr.f32.mxu0 0.0
      %867 = vmatmul.mubr.f32.gmra.mxu0 %v656
      %v868 = vpop.f32.mrf.mxu0
      %v869 = vadd.f32 %v545, %v868
      %v870 = vpop.f32.mrf.mxu0
      %871 = vmatprep.mubr.f32.mxu0 0.0
      %872 = vmatmul.mubr.f32.gmra.mxu0 %v659
      %v873 = vpop.f32.mrf.mxu0
      %v874 = vadd.f32 %v550, %v873
      %v875 = vpop.f32.mrf.mxu0
      %876 = vmatprep.mubr.f32.mxu0 0.0
      %877 = vmatmul.mubr.f32.gmra.mxu0 %v662
      %v878 = vpop.f32.mrf.mxu0
      %v879 = vadd.f32 %v555, %v878
      %v880 = vpop.f32.mrf.mxu0
      %881 = vmatprep.mubr.f32.mxu0 0.0
      %882 = vmatmul.mubr.f32.gmra.mxu0 %v665
      %v883 = vpop.f32.mrf.mxu0
      %v884 = vadd.f32 %v560, %v883
      %v885 = vpop.f32.mrf.mxu0
      %886 = vmatprep.mubr.f32.mxu0 0.0
      %887 = vmatmul.mubr.f32.gmra.mxu0 %v668
      %v888 = vpop.f32.mrf.mxu0
      %v889 = vadd.f32 %v565, %v888
      %v890 = vpop.f32.mrf.mxu0
      %891 = vmatprep.mubr.f32.mxu0 0.0
      %892 = vmatmul.mubr.f32.gmra.mxu0 %v671
      %v893 = vpop.f32.mrf.mxu0
      %v894 = vadd.f32 %v570, %v893
      %v895 = vpop.f32.mrf.mxu0
      %896 = vmatprep.mubr.f32.mxu0 0.0
      %897 = vmatmul.mubr.f32.gmra.mxu0 %v674
      %v898 = vpop.f32.mrf.mxu0
      %v899 = vadd.f32 %v575, %v898
      %v900 = vpop.f32.mrf.mxu0
      %901 = vmatprep.mubr.f32.mxu0 0.0
      %902 = vmatmul.mubr.f32.gmra.mxu0 %v677
      %v903 = vpop.f32.mrf.mxu0
      %v904 = vadd.f32 %v580, %v903
      %v905 = vpop.f32.mrf.mxu0
      %906 = vdwg.mxu0
      %s907 = sadd.s32 %s176, 52
      %s908 = scalar_lea.vmem %s0, %s907
      %v909 = vld [vmem:[%s908] sm:$0xff]
      %v910 = vld [vmem:[%s908 + $0x8] sm:$0xff]
      %v911 = vld [vmem:[%s908 + $0x10] sm:$0xff]
      %v912 = vld [vmem:[%s908 + $0x18] sm:$0xff]
      %v913 = vld [vmem:[%s908 + $0x20] sm:$0xff]
      %v914 = vld [vmem:[%s908 + $0x28] sm:$0xff]
      %v915 = vld [vmem:[%s908 + $0x30] sm:$0xff]
      %v916 = vld [vmem:[%s908 + $0x38] sm:$0xff]
      %v917 = vld [vmem:[%s908 + $0x40] sm:$0xff]
      %v918 = vld [vmem:[%s908 + $0x48] sm:$0xff]
      %v919 = vld [vmem:[%s908 + $0x50] sm:$0xff]
      %v920 = vld [vmem:[%s908 + $0x58] sm:$0xff]
      %v921 = vld [vmem:[%s908 + $0x60] sm:$0xff]
      %v922 = vld [vmem:[%s908 + $0x68] sm:$0xff]
      %v923 = vld [vmem:[%s908 + $0x70] sm:$0xff]
      %v924 = vld [vmem:[%s908 + $0x78] sm:$0xff]
      %v925 = vld [vmem:[%s908 + $0x80] sm:$0xff]
      %v926 = vld [vmem:[%s908 + $0x88] sm:$0xff]
      %v927 = vld [vmem:[%s908 + $0x90] sm:$0xff]
      %v928 = vld [vmem:[%s908 + $0x98] sm:$0xff]
      %v929 = vld [vmem:[%s908 + $0xa0] sm:$0xff]
      %v930 = vld [vmem:[%s908 + $0xa8] sm:$0xff]
      %v931 = vld [vmem:[%s908 + $0xb0] sm:$0xff]
      %v932 = vld [vmem:[%s908 + $0xb8] sm:$0xff]
      %v933 = vld [vmem:[%s908 + $0xc0] sm:$0xff]
      %v934 = vld [vmem:[%s908 + $0xc8] sm:$0xff]
      %v935 = vld [vmem:[%s908 + $0xd0] sm:$0xff]
      %v936 = vld [vmem:[%s908 + $0xd8] sm:$0xff]
      %v937 = vld [vmem:[%s908 + $0xe0] sm:$0xff]
      %v938 = vld [vmem:[%s908 + $0xe8] sm:$0xff]
      %v939 = vld [vmem:[%s908 + $0xf0] sm:$0xff]
      %v940 = vld [vmem:[%s908 + $0xf8] sm:$0xff]
      %s941 = scalar_lea.vmem %s1, 96
      %v942 = vld [vmem:[%s941] sm:$0xff]
      %v943 = vld [vmem:[%s941 + $0x8] sm:$0xff]
      %v944 = vld [vmem:[%s941 + $0x10] sm:$0xff]
      %v945 = vld [vmem:[%s941 + $0x18] sm:$0xff]
      %v946 = vld [vmem:[%s941 + $0x20] sm:$0xff]
      %v947 = vld [vmem:[%s941 + $0x28] sm:$0xf]
      %v949 = vsel %vm257, %v909, 0
      %v952 = vsel %vm257, %v910, 0
      %v955 = vsel %vm257, %v911, 0
      %v958 = vsel %vm257, %v912, 0
      %v961 = vsel %vm257, %v913, 0
      %v964 = vsel %vm257, %v914, 0
      %v967 = vsel %vm257, %v915, 0
      %v970 = vsel %vm257, %v916, 0
      %v973 = vsel %vm257, %v917, 0
      %v976 = vsel %vm257, %v918, 0
      %v979 = vsel %vm257, %v919, 0
      %v982 = vsel %vm257, %v920, 0
      %v985 = vsel %vm257, %v921, 0
      %v988 = vsel %vm257, %v922, 0
      %v991 = vsel %vm257, %v923, 0
      %v994 = vsel %vm257, %v924, 0
      %v997 = vsel %vm257, %v925, 0
      %v1000 = vsel %vm257, %v926, 0
      %v1003 = vsel %vm257, %v927, 0
      %v1006 = vsel %vm257, %v928, 0
      %v1009 = vsel %vm257, %v929, 0
      %v1012 = vsel %vm257, %v930, 0
      %v1015 = vsel %vm257, %v931, 0
      %v1018 = vsel %vm257, %v932, 0
      %v1021 = vsel %vm257, %v933, 0
      %v1024 = vsel %vm257, %v934, 0
      %v1027 = vsel %vm257, %v935, 0
      %v1030 = vsel %vm257, %v936, 0
      %v1033 = vsel %vm257, %v937, 0
      %v1036 = vsel %vm257, %v938, 0
      %v1039 = vsel %vm257, %v939, 0
      %v1042 = vsel %vm257, %v940, 0
      %v1045 = vsel %vm354, %v947, 0
      %1047 = vmatprep.subr.mxu0 0.0
      %1048 = vmatpush1.msra.mxu0 0.0
      %1049 = vmatprep.subr.mxu0 0.0
      %1050 = vmatpush1.msra.mxu0 0.0
      %1051 = vmatprep.subr.mxu0 0.0
      %1052 = vmatpush1.msra.mxu0 0.0
      %1053 = vmatprep.subr.mxu0 0.0
      %1054 = vmatpush1.msra.mxu0 0.0
      %1055 = vmatprep.subr.mxu0 0.0
      %1056 = vmatpush1.msra.mxu0 0.0
      %1057 = vmatprep.subr.mxu0 0.0
      %1058 = vmatpush1.msra.mxu0 0.0
      %1059 = vmatprep.subr.mxu0 0.0
      %1060 = vmatpush1.msra.mxu0 0.0
      %1061 = vmatprep.subr.mxu0 0.0
      %1062 = vmatpush1.msra.mxu0 0.0
      %1063 = vmatprep.subr.mxu0 0.0
      %1064 = vmatpush1.msra.mxu0 0.0
      %1065 = vmatprep.subr.mxu0 0.0
      %1066 = vmatpush1.msra.mxu0 0.0
      %1067 = vmatprep.subr.mxu0 0.0
      %1068 = vmatpush1.msra.mxu0 %v1045
      %1069 = vmatprep.subr.mxu0 0.0
      %1070 = vmatpush1.msra.mxu0 %v946
      %1071 = vmatprep.subr.mxu0 0.0
      %1072 = vmatpush1.msra.mxu0 %v945
      %1073 = vmatprep.subr.mxu0 0.0
      %1074 = vmatpush1.msra.mxu0 %v944
      %1075 = vmatprep.subr.mxu0 0.0
      %1076 = vmatpush1.msra.mxu0 %v943
      %1077 = vmatprep.subr.mxu0 0.0
      %1078 = vmatpush1.msra.mxu0 %v942
      %1079 = vmatprep.subr.mxu0 0.0
      %1080 = vmatpush2.msra.mxu0 0.0
      %1081 = vmatprep.subr.mxu0 0.0
      %1082 = vmatpush2.msra.mxu0 0.0
      %1083 = vmatprep.subr.mxu0 0.0
      %1084 = vmatpush2.msra.mxu0 0.0
      %1085 = vmatprep.subr.mxu0 0.0
      %1086 = vmatpush2.msra.mxu0 0.0
      %1087 = vmatprep.subr.mxu0 0.0
      %1088 = vmatpush2.msra.mxu0 0.0
      %1089 = vmatprep.subr.mxu0 0.0
      %1090 = vmatpush2.msra.mxu0 0.0
      %1091 = vmatprep.subr.mxu0 0.0
      %1092 = vmatpush2.msra.mxu0 0.0
      %1093 = vmatprep.subr.mxu0 0.0
      %1094 = vmatpush2.msra.mxu0 0.0
      %1095 = vmatprep.subr.mxu0 0.0
      %1096 = vmatpush2.msra.mxu0 0.0
      %1097 = vmatprep.subr.mxu0 0.0
      %1098 = vmatpush2.msra.mxu0 0.0
      %1099 = vmatprep.subr.mxu0 0.0
      %1100 = vmatpush2.msra.mxu0 0.0
      %1101 = vmatprep.subr.mxu0 0.0
      %1102 = vmatpush2.msra.mxu0 0.0
      %1103 = vmatprep.subr.mxu0 0.0
      %1104 = vmatpush2.msra.mxu0 0.0
      %1105 = vmatprep.subr.mxu0 0.0
      %1106 = vmatpush2.msra.mxu0 0.0
      %1107 = vmatprep.subr.mxu0 0.0
      %1108 = vmatpush2.msra.mxu0 0.0
      %1109 = vmatprep.subr.mxu0 0.0
      %1110 = vmatpush2.msra.mxu0 0.0
      %1111 = vmatprep.mubr.f32.mxu0 0.0
      %1112 = vmatmul.mubr.f32.gmra.mxu0 %v949
      %v1113 = vpop.f32.mrf.mxu0
      %v1114 = vadd.f32 0.0, %v1113
      %v1115 = vpop.f32.mrf.mxu0
      %1116 = vmatprep.mubr.f32.mxu0 0.0
      %1117 = vmatmul.mubr.f32.gmra.mxu0 %v952
      %v1118 = vpop.f32.mrf.mxu0
      %v1119 = vadd.f32 0.0, %v1118
      %v1120 = vpop.f32.mrf.mxu0
      %1121 = vmatprep.mubr.f32.mxu0 0.0
      %1122 = vmatmul.mubr.f32.gmra.mxu0 %v955
      %v1123 = vpop.f32.mrf.mxu0
      %v1124 = vadd.f32 0.0, %v1123
      %v1125 = vpop.f32.mrf.mxu0
      %1126 = vmatprep.mubr.f32.mxu0 0.0
      %1127 = vmatmul.mubr.f32.gmra.mxu0 %v958
      %v1128 = vpop.f32.mrf.mxu0
      %v1129 = vadd.f32 0.0, %v1128
      %v1130 = vpop.f32.mrf.mxu0
      %1131 = vmatprep.mubr.f32.mxu0 0.0
      %1132 = vmatmul.mubr.f32.gmra.mxu0 %v961
      %v1133 = vpop.f32.mrf.mxu0
      %v1134 = vadd.f32 0.0, %v1133
      %v1135 = vpop.f32.mrf.mxu0
      %1136 = vmatprep.mubr.f32.mxu0 0.0
      %1137 = vmatmul.mubr.f32.gmra.mxu0 %v964
      %v1138 = vpop.f32.mrf.mxu0
      %v1139 = vadd.f32 0.0, %v1138
      %v1140 = vpop.f32.mrf.mxu0
      %1141 = vmatprep.mubr.f32.mxu0 0.0
      %1142 = vmatmul.mubr.f32.gmra.mxu0 %v967
      %v1143 = vpop.f32.mrf.mxu0
      %v1144 = vadd.f32 0.0, %v1143
      %v1145 = vpop.f32.mrf.mxu0
      %1146 = vmatprep.mubr.f32.mxu0 0.0
      %1147 = vmatmul.mubr.f32.gmra.mxu0 %v970
      %v1148 = vpop.f32.mrf.mxu0
      %v1149 = vadd.f32 0.0, %v1148
      %v1150 = vpop.f32.mrf.mxu0
      %1151 = vmatprep.mubr.f32.mxu0 0.0
      %1152 = vmatmul.mubr.f32.gmra.mxu0 %v973
      %v1153 = vpop.f32.mrf.mxu0
      %v1154 = vadd.f32 0.0, %v1153
      %v1155 = vpop.f32.mrf.mxu0
      %1156 = vmatprep.mubr.f32.mxu0 0.0
      %1157 = vmatmul.mubr.f32.gmra.mxu0 %v976
      %v1158 = vpop.f32.mrf.mxu0
      %v1159 = vadd.f32 0.0, %v1158
      %v1160 = vpop.f32.mrf.mxu0
      %1161 = vmatprep.mubr.f32.mxu0 0.0
      %1162 = vmatmul.mubr.f32.gmra.mxu0 %v979
      %v1163 = vpop.f32.mrf.mxu0
      %v1164 = vadd.f32 0.0, %v1163
      %v1165 = vpop.f32.mrf.mxu0
      %1166 = vmatprep.mubr.f32.mxu0 0.0
      %1167 = vmatmul.mubr.f32.gmra.mxu0 %v982
      %v1168 = vpop.f32.mrf.mxu0
      %v1169 = vadd.f32 0.0, %v1168
      %v1170 = vpop.f32.mrf.mxu0
      %1171 = vmatprep.mubr.f32.mxu0 0.0
      %1172 = vmatmul.mubr.f32.gmra.mxu0 %v985
      %v1173 = vpop.f32.mrf.mxu0
      %v1174 = vadd.f32 0.0, %v1173
      %v1175 = vpop.f32.mrf.mxu0
      %1176 = vmatprep.mubr.f32.mxu0 0.0
      %1177 = vmatmul.mubr.f32.gmra.mxu0 %v988
      %v1178 = vpop.f32.mrf.mxu0
      %v1179 = vadd.f32 0.0, %v1178
      %v1180 = vpop.f32.mrf.mxu0
      %1181 = vmatprep.mubr.f32.mxu0 0.0
      %1182 = vmatmul.mubr.f32.gmra.mxu0 %v991
      %v1183 = vpop.f32.mrf.mxu0
      %v1184 = vadd.f32 0.0, %v1183
      %v1185 = vpop.f32.mrf.mxu0
      %1186 = vmatprep.mubr.f32.mxu0 0.0
      %1187 = vmatmul.mubr.f32.gmra.mxu0 %v994
      %v1188 = vpop.f32.mrf.mxu0
      %v1189 = vadd.f32 0.0, %v1188
      %v1190 = vpop.f32.mrf.mxu0
      %1191 = vmatprep.mubr.f32.mxu0 0.0
      %1192 = vmatmul.mubr.f32.gmra.mxu0 %v997
      %v1193 = vpop.f32.mrf.mxu0
      %v1194 = vadd.f32 0.0, %v1193
      %v1195 = vpop.f32.mrf.mxu0
      %1196 = vmatprep.mubr.f32.mxu0 0.0
      %1197 = vmatmul.mubr.f32.gmra.mxu0 %v1000
      %v1198 = vpop.f32.mrf.mxu0
      %v1199 = vadd.f32 0.0, %v1198
      %v1200 = vpop.f32.mrf.mxu0
      %1201 = vmatprep.mubr.f32.mxu0 0.0
      %1202 = vmatmul.mubr.f32.gmra.mxu0 %v1003
      %v1203 = vpop.f32.mrf.mxu0
      %v1204 = vadd.f32 0.0, %v1203
      %v1205 = vpop.f32.mrf.mxu0
      %1206 = vmatprep.mubr.f32.mxu0 0.0
      %1207 = vmatmul.mubr.f32.gmra.mxu0 %v1006
      %v1208 = vpop.f32.mrf.mxu0
      %v1209 = vadd.f32 0.0, %v1208
      %v1210 = vpop.f32.mrf.mxu0
      %1211 = vmatprep.mubr.f32.mxu0 0.0
      %1212 = vmatmul.mubr.f32.gmra.mxu0 %v1009
      %v1213 = vpop.f32.mrf.mxu0
      %v1214 = vadd.f32 0.0, %v1213
      %v1215 = vpop.f32.mrf.mxu0
      %1216 = vmatprep.mubr.f32.mxu0 0.0
      %1217 = vmatmul.mubr.f32.gmra.mxu0 %v1012
      %v1218 = vpop.f32.mrf.mxu0
      %v1219 = vadd.f32 0.0, %v1218
      %v1220 = vpop.f32.mrf.mxu0
      %1221 = vmatprep.mubr.f32.mxu0 0.0
      %1222 = vmatmul.mubr.f32.gmra.mxu0 %v1015
      %v1223 = vpop.f32.mrf.mxu0
      %v1224 = vadd.f32 0.0, %v1223
      %v1225 = vpop.f32.mrf.mxu0
      %1226 = vmatprep.mubr.f32.mxu0 0.0
      %1227 = vmatmul.mubr.f32.gmra.mxu0 %v1018
      %v1228 = vpop.f32.mrf.mxu0
      %v1229 = vadd.f32 0.0, %v1228
      %v1230 = vpop.f32.mrf.mxu0
      %1231 = vmatprep.mubr.f32.mxu0 0.0
      %1232 = vmatmul.mubr.f32.gmra.mxu0 %v1021
      %v1233 = vpop.f32.mrf.mxu0
      %v1234 = vadd.f32 0.0, %v1233
      %v1235 = vpop.f32.mrf.mxu0
      %1236 = vmatprep.mubr.f32.mxu0 0.0
      %1237 = vmatmul.mubr.f32.gmra.mxu0 %v1024
      %v1238 = vpop.f32.mrf.mxu0
      %v1239 = vadd.f32 0.0, %v1238
      %v1240 = vpop.f32.mrf.mxu0
      %1241 = vmatprep.mubr.f32.mxu0 0.0
      %1242 = vmatmul.mubr.f32.gmra.mxu0 %v1027
      %v1243 = vpop.f32.mrf.mxu0
      %v1244 = vadd.f32 0.0, %v1243
      %v1245 = vpop.f32.mrf.mxu0
      %1246 = vmatprep.mubr.f32.mxu0 0.0
      %1247 = vmatmul.mubr.f32.gmra.mxu0 %v1030
      %v1248 = vpop.f32.mrf.mxu0
      %v1249 = vadd.f32 0.0, %v1248
      %v1250 = vpop.f32.mrf.mxu0
      %1251 = vmatprep.mubr.f32.mxu0 0.0
      %1252 = vmatmul.mubr.f32.gmra.mxu0 %v1033
      %v1253 = vpop.f32.mrf.mxu0
      %v1254 = vadd.f32 0.0, %v1253
      %v1255 = vpop.f32.mrf.mxu0
      %1256 = vmatprep.mubr.f32.mxu0 0.0
      %1257 = vmatmul.mubr.f32.gmra.mxu0 %v1036
      %v1258 = vpop.f32.mrf.mxu0
      %v1259 = vadd.f32 0.0, %v1258
      %v1260 = vpop.f32.mrf.mxu0
      %1261 = vmatprep.mubr.f32.mxu0 0.0
      %1262 = vmatmul.mubr.f32.gmra.mxu0 %v1039
      %v1263 = vpop.f32.mrf.mxu0
      %v1264 = vadd.f32 0.0, %v1263
      %v1265 = vpop.f32.mrf.mxu0
      %1266 = vmatprep.mubr.f32.mxu0 0.0
      %1267 = vmatmul.mubr.f32.gmra.mxu0 %v1042
      %v1268 = vpop.f32.mrf.mxu0
      %v1269 = vadd.f32 0.0, %v1268
      %v1270 = vpop.f32.mrf.mxu0
      %1271 = vdwg.mxu0
      %v1272 = vadd.f32 %v749, %v1114
      %v1273 = vadd.f32 %v754, %v1119
      %v1274 = vadd.f32 %v759, %v1124
      %v1275 = vadd.f32 %v764, %v1129
      %v1276 = vadd.f32 %v769, %v1134
      %v1277 = vadd.f32 %v774, %v1139
      %v1278 = vadd.f32 %v779, %v1144
      %v1279 = vadd.f32 %v784, %v1149
      %v1280 = vadd.f32 %v789, %v1154
      %v1281 = vadd.f32 %v794, %v1159
      %v1282 = vadd.f32 %v799, %v1164
      %v1283 = vadd.f32 %v804, %v1169
      %v1284 = vadd.f32 %v809, %v1174
      %v1285 = vadd.f32 %v814, %v1179
      %v1286 = vadd.f32 %v819, %v1184
      %v1287 = vadd.f32 %v824, %v1189
      %v1288 = vadd.f32 %v829, %v1194
      %v1289 = vadd.f32 %v834, %v1199
      %v1290 = vadd.f32 %v839, %v1204
      %v1291 = vadd.f32 %v844, %v1209
      %v1292 = vadd.f32 %v849, %v1214
      %v1293 = vadd.f32 %v854, %v1219
      %v1294 = vadd.f32 %v859, %v1224
      %v1295 = vadd.f32 %v864, %v1229
      %v1296 = vadd.f32 %v869, %v1234
      %v1297 = vadd.f32 %v874, %v1239
      %v1298 = vadd.f32 %v879, %v1244
      %v1299 = vadd.f32 %v884, %v1249
      %v1300 = vadd.f32 %v889, %v1254
      %v1301 = vadd.f32 %v894, %v1259
      %v1302 = vadd.f32 %v899, %v1264
      %v1303 = vadd.f32 %v904, %v1269
      %s1304 = sadd.s32 %s176, 78
      %s1305 = scalar_lea.vmem %s0, %s1304
      %v1306 = vld [vmem:[%s1305] sm:$0xff]
      %v1307 = vld [vmem:[%s1305 + $0x8] sm:$0xff]
      %v1308 = vld [vmem:[%s1305 + $0x10] sm:$0xff]
      %v1309 = vld [vmem:[%s1305 + $0x18] sm:$0xff]
      %v1310 = vld [vmem:[%s1305 + $0x20] sm:$0xff]
      %v1311 = vld [vmem:[%s1305 + $0x28] sm:$0xff]
      %v1312 = vld [vmem:[%s1305 + $0x30] sm:$0xff]
      %v1313 = vld [vmem:[%s1305 + $0x38] sm:$0xff]
      %v1314 = vld [vmem:[%s1305 + $0x40] sm:$0xff]
      %v1315 = vld [vmem:[%s1305 + $0x48] sm:$0xff]
      %v1316 = vld [vmem:[%s1305 + $0x50] sm:$0xff]
      %v1317 = vld [vmem:[%s1305 + $0x58] sm:$0xff]
      %v1318 = vld [vmem:[%s1305 + $0x60] sm:$0xff]
      %v1319 = vld [vmem:[%s1305 + $0x68] sm:$0xff]
      %v1320 = vld [vmem:[%s1305 + $0x70] sm:$0xff]
      %v1321 = vld [vmem:[%s1305 + $0x78] sm:$0xff]
      %v1322 = vld [vmem:[%s1305 + $0x80] sm:$0xff]
      %v1323 = vld [vmem:[%s1305 + $0x88] sm:$0xff]
      %v1324 = vld [vmem:[%s1305 + $0x90] sm:$0xff]
      %v1325 = vld [vmem:[%s1305 + $0x98] sm:$0xff]
      %v1326 = vld [vmem:[%s1305 + $0xa0] sm:$0xff]
      %v1327 = vld [vmem:[%s1305 + $0xa8] sm:$0xff]
      %v1328 = vld [vmem:[%s1305 + $0xb0] sm:$0xff]
      %v1329 = vld [vmem:[%s1305 + $0xb8] sm:$0xff]
      %v1330 = vld [vmem:[%s1305 + $0xc0] sm:$0xff]
      %v1331 = vld [vmem:[%s1305 + $0xc8] sm:$0xff]
      %v1332 = vld [vmem:[%s1305 + $0xd0] sm:$0xff]
      %v1333 = vld [vmem:[%s1305 + $0xd8] sm:$0xff]
      %v1334 = vld [vmem:[%s1305 + $0xe0] sm:$0xff]
      %v1335 = vld [vmem:[%s1305 + $0xe8] sm:$0xff]
      %v1336 = vld [vmem:[%s1305 + $0xf0] sm:$0xff]
      %v1337 = vld [vmem:[%s1305 + $0xf8] sm:$0xff]
      %s1338 = scalar_lea.vmem %s1, 144
      %v1339 = vld [vmem:[%s1338] sm:$0xff]
      %v1340 = vld [vmem:[%s1338 + $0x8] sm:$0xff]
      %v1341 = vld [vmem:[%s1338 + $0x10] sm:$0xff]
      %v1342 = vld [vmem:[%s1338 + $0x18] sm:$0xff]
      %v1343 = vld [vmem:[%s1338 + $0x20] sm:$0xff]
      %v1344 = vld [vmem:[%s1338 + $0x28] sm:$0xf]
      %v1346 = vsel %vm257, %v1306, 0
      %v1349 = vsel %vm257, %v1307, 0
      %v1352 = vsel %vm257, %v1308, 0
      %v1355 = vsel %vm257, %v1309, 0
      %v1358 = vsel %vm257, %v1310, 0
      %v1361 = vsel %vm257, %v1311, 0
      %v1364 = vsel %vm257, %v1312, 0
      %v1367 = vsel %vm257, %v1313, 0
      %v1370 = vsel %vm257, %v1314, 0
      %v1373 = vsel %vm257, %v1315, 0
      %v1376 = vsel %vm257, %v1316, 0
      %v1379 = vsel %vm257, %v1317, 0
      %v1382 = vsel %vm257, %v1318, 0
      %v1385 = vsel %vm257, %v1319, 0
      %v1388 = vsel %vm257, %v1320, 0
      %v1391 = vsel %vm257, %v1321, 0
      %v1394 = vsel %vm257, %v1322, 0
      %v1397 = vsel %vm257, %v1323, 0
      %v1400 = vsel %vm257, %v1324, 0
      %v1403 = vsel %vm257, %v1325, 0
      %v1406 = vsel %vm257, %v1326, 0
      %v1409 = vsel %vm257, %v1327, 0
      %v1412 = vsel %vm257, %v1328, 0
      %v1415 = vsel %vm257, %v1329, 0
      %v1418 = vsel %vm257, %v1330, 0
      %v1421 = vsel %vm257, %v1331, 0
      %v1424 = vsel %vm257, %v1332, 0
      %v1427 = vsel %vm257, %v1333, 0
      %v1430 = vsel %vm257, %v1334, 0
      %v1433 = vsel %vm257, %v1335, 0
      %v1436 = vsel %vm257, %v1336, 0
      %v1439 = vsel %vm257, %v1337, 0
      %v1442 = vsel %vm354, %v1344, 0
      %1444 = vmatprep.subr.mxu0 0.0
      %1445 = vmatpush1.msra.mxu0 0.0
      %1446 = vmatprep.subr.mxu0 0.0
      %1447 = vmatpush1.msra.mxu0 0.0
      %1448 = vmatprep.subr.mxu0 0.0
      %1449 = vmatpush1.msra.mxu0 0.0
      %1450 = vmatprep.subr.mxu0 0.0
      %1451 = vmatpush1.msra.mxu0 0.0
      %1452 = vmatprep.subr.mxu0 0.0
      %1453 = vmatpush1.msra.mxu0 0.0
      %1454 = vmatprep.subr.mxu0 0.0
      %1455 = vmatpush1.msra.mxu0 0.0
      %1456 = vmatprep.subr.mxu0 0.0
      %1457 = vmatpush1.msra.mxu0 0.0
      %1458 = vmatprep.subr.mxu0 0.0
      %1459 = vmatpush1.msra.mxu0 0.0
      %1460 = vmatprep.subr.mxu0 0.0
      %1461 = vmatpush1.msra.mxu0 0.0
      %1462 = vmatprep.subr.mxu0 0.0
      %1463 = vmatpush1.msra.mxu0 0.0
      %1464 = vmatprep.subr.mxu0 0.0
      %1465 = vmatpush1.msra.mxu0 %v1442
      %1466 = vmatprep.subr.mxu0 0.0
      %1467 = vmatpush1.msra.mxu0 %v1343
      %1468 = vmatprep.subr.mxu0 0.0
      %1469 = vmatpush1.msra.mxu0 %v1342
      %1470 = vmatprep.subr.mxu0 0.0
      %1471 = vmatpush1.msra.mxu0 %v1341
      %1472 = vmatprep.subr.mxu0 0.0
      %1473 = vmatpush1.msra.mxu0 %v1340
      %1474 = vmatprep.subr.mxu0 0.0
      %1475 = vmatpush1.msra.mxu0 %v1339
      %1476 = vmatprep.subr.mxu0 0.0
      %1477 = vmatpush2.msra.mxu0 0.0
      %1478 = vmatprep.subr.mxu0 0.0
      %1479 = vmatpush2.msra.mxu0 0.0
      %1480 = vmatprep.subr.mxu0 0.0
      %1481 = vmatpush2.msra.mxu0 0.0
      %1482 = vmatprep.subr.mxu0 0.0
      %1483 = vmatpush2.msra.mxu0 0.0
      %1484 = vmatprep.subr.mxu0 0.0
      %1485 = vmatpush2.msra.mxu0 0.0
      %1486 = vmatprep.subr.mxu0 0.0
      %1487 = vmatpush2.msra.mxu0 0.0
      %1488 = vmatprep.subr.mxu0 0.0
      %1489 = vmatpush2.msra.mxu0 0.0
      %1490 = vmatprep.subr.mxu0 0.0
      %1491 = vmatpush2.msra.mxu0 0.0
      %1492 = vmatprep.subr.mxu0 0.0
      %1493 = vmatpush2.msra.mxu0 0.0
      %1494 = vmatprep.subr.mxu0 0.0
      %1495 = vmatpush2.msra.mxu0 0.0
      %1496 = vmatprep.subr.mxu0 0.0
      %1497 = vmatpush2.msra.mxu0 0.0
      %1498 = vmatprep.subr.mxu0 0.0
      %1499 = vmatpush2.msra.mxu0 0.0
      %1500 = vmatprep.subr.mxu0 0.0
      %1501 = vmatpush2.msra.mxu0 0.0
      %1502 = vmatprep.subr.mxu0 0.0
      %1503 = vmatpush2.msra.mxu0 0.0
      %1504 = vmatprep.subr.mxu0 0.0
      %1505 = vmatpush2.msra.mxu0 0.0
      %1506 = vmatprep.subr.mxu0 0.0
      %1507 = vmatpush2.msra.mxu0 0.0
      %1508 = vmatprep.mubr.f32.mxu0 0.0
      %1509 = vmatmul.mubr.f32.gmra.mxu0 %v1346
      %v1510 = vpop.f32.mrf.mxu0
      %v1511 = vadd.f32 0.0, %v1510
      %v1512 = vpop.f32.mrf.mxu0
      %1513 = vmatprep.mubr.f32.mxu0 0.0
      %1514 = vmatmul.mubr.f32.gmra.mxu0 %v1349
      %v1515 = vpop.f32.mrf.mxu0
      %v1516 = vadd.f32 0.0, %v1515
      %v1517 = vpop.f32.mrf.mxu0
      %1518 = vmatprep.mubr.f32.mxu0 0.0
      %1519 = vmatmul.mubr.f32.gmra.mxu0 %v1352
      %v1520 = vpop.f32.mrf.mxu0
      %v1521 = vadd.f32 0.0, %v1520
      %v1522 = vpop.f32.mrf.mxu0
      %1523 = vmatprep.mubr.f32.mxu0 0.0
      %1524 = vmatmul.mubr.f32.gmra.mxu0 %v1355
      %v1525 = vpop.f32.mrf.mxu0
      %v1526 = vadd.f32 0.0, %v1525
      %v1527 = vpop.f32.mrf.mxu0
      %1528 = vmatprep.mubr.f32.mxu0 0.0
      %1529 = vmatmul.mubr.f32.gmra.mxu0 %v1358
      %v1530 = vpop.f32.mrf.mxu0
      %v1531 = vadd.f32 0.0, %v1530
      %v1532 = vpop.f32.mrf.mxu0
      %1533 = vmatprep.mubr.f32.mxu0 0.0
      %1534 = vmatmul.mubr.f32.gmra.mxu0 %v1361
      %v1535 = vpop.f32.mrf.mxu0
      %v1536 = vadd.f32 0.0, %v1535
      %v1537 = vpop.f32.mrf.mxu0
      %1538 = vmatprep.mubr.f32.mxu0 0.0
      %1539 = vmatmul.mubr.f32.gmra.mxu0 %v1364
      %v1540 = vpop.f32.mrf.mxu0
      %v1541 = vadd.f32 0.0, %v1540
      %v1542 = vpop.f32.mrf.mxu0
      %1543 = vmatprep.mubr.f32.mxu0 0.0
      %1544 = vmatmul.mubr.f32.gmra.mxu0 %v1367
      %v1545 = vpop.f32.mrf.mxu0
      %v1546 = vadd.f32 0.0, %v1545
      %v1547 = vpop.f32.mrf.mxu0
      %1548 = vmatprep.mubr.f32.mxu0 0.0
      %1549 = vmatmul.mubr.f32.gmra.mxu0 %v1370
      %v1550 = vpop.f32.mrf.mxu0
      %v1551 = vadd.f32 0.0, %v1550
      %v1552 = vpop.f32.mrf.mxu0
      %1553 = vmatprep.mubr.f32.mxu0 0.0
      %1554 = vmatmul.mubr.f32.gmra.mxu0 %v1373
      %v1555 = vpop.f32.mrf.mxu0
      %v1556 = vadd.f32 0.0, %v1555
      %v1557 = vpop.f32.mrf.mxu0
      %1558 = vmatprep.mubr.f32.mxu0 0.0
      %1559 = vmatmul.mubr.f32.gmra.mxu0 %v1376
      %v1560 = vpop.f32.mrf.mxu0
      %v1561 = vadd.f32 0.0, %v1560
      %v1562 = vpop.f32.mrf.mxu0
      %1563 = vmatprep.mubr.f32.mxu0 0.0
      %1564 = vmatmul.mubr.f32.gmra.mxu0 %v1379
      %v1565 = vpop.f32.mrf.mxu0
      %v1566 = vadd.f32 0.0, %v1565
      %v1567 = vpop.f32.mrf.mxu0
      %1568 = vmatprep.mubr.f32.mxu0 0.0
      %1569 = vmatmul.mubr.f32.gmra.mxu0 %v1382
      %v1570 = vpop.f32.mrf.mxu0
      %v1571 = vadd.f32 0.0, %v1570
      %v1572 = vpop.f32.mrf.mxu0
      %1573 = vmatprep.mubr.f32.mxu0 0.0
      %1574 = vmatmul.mubr.f32.gmra.mxu0 %v1385
      %v1575 = vpop.f32.mrf.mxu0
      %v1576 = vadd.f32 0.0, %v1575
      %v1577 = vpop.f32.mrf.mxu0
      %1578 = vmatprep.mubr.f32.mxu0 0.0
      %1579 = vmatmul.mubr.f32.gmra.mxu0 %v1388
      %v1580 = vpop.f32.mrf.mxu0
      %v1581 = vadd.f32 0.0, %v1580
      %v1582 = vpop.f32.mrf.mxu0
      %1583 = vmatprep.mubr.f32.mxu0 0.0
      %1584 = vmatmul.mubr.f32.gmra.mxu0 %v1391
      %v1585 = vpop.f32.mrf.mxu0
      %v1586 = vadd.f32 0.0, %v1585
      %v1587 = vpop.f32.mrf.mxu0
      %1588 = vmatprep.mubr.f32.mxu0 0.0
      %1589 = vmatmul.mubr.f32.gmra.mxu0 %v1394
      %v1590 = vpop.f32.mrf.mxu0
      %v1591 = vadd.f32 0.0, %v1590
      %v1592 = vpop.f32.mrf.mxu0
      %1593 = vmatprep.mubr.f32.mxu0 0.0
      %1594 = vmatmul.mubr.f32.gmra.mxu0 %v1397
      %v1595 = vpop.f32.mrf.mxu0
      %v1596 = vadd.f32 0.0, %v1595
      %v1597 = vpop.f32.mrf.mxu0
      %1598 = vmatprep.mubr.f32.mxu0 0.0
      %1599 = vmatmul.mubr.f32.gmra.mxu0 %v1400
      %v1600 = vpop.f32.mrf.mxu0
      %v1601 = vadd.f32 0.0, %v1600
      %v1602 = vpop.f32.mrf.mxu0
      %1603 = vmatprep.mubr.f32.mxu0 0.0
      %1604 = vmatmul.mubr.f32.gmra.mxu0 %v1403
      %v1605 = vpop.f32.mrf.mxu0
      %v1606 = vadd.f32 0.0, %v1605
      %v1607 = vpop.f32.mrf.mxu0
      %1608 = vmatprep.mubr.f32.mxu0 0.0
      %1609 = vmatmul.mubr.f32.gmra.mxu0 %v1406
      %v1610 = vpop.f32.mrf.mxu0
      %v1611 = vadd.f32 0.0, %v1610
      %v1612 = vpop.f32.mrf.mxu0
      %1613 = vmatprep.mubr.f32.mxu0 0.0
      %1614 = vmatmul.mubr.f32.gmra.mxu0 %v1409
      %v1615 = vpop.f32.mrf.mxu0
      %v1616 = vadd.f32 0.0, %v1615
      %v1617 = vpop.f32.mrf.mxu0
      %1618 = vmatprep.mubr.f32.mxu0 0.0
      %1619 = vmatmul.mubr.f32.gmra.mxu0 %v1412
      %v1620 = vpop.f32.mrf.mxu0
      %v1621 = vadd.f32 0.0, %v1620
      %v1622 = vpop.f32.mrf.mxu0
      %1623 = vmatprep.mubr.f32.mxu0 0.0
      %1624 = vmatmul.mubr.f32.gmra.mxu0 %v1415
      %v1625 = vpop.f32.mrf.mxu0
      %v1626 = vadd.f32 0.0, %v1625
      %v1627 = vpop.f32.mrf.mxu0
      %1628 = vmatprep.mubr.f32.mxu0 0.0
      %1629 = vmatmul.mubr.f32.gmra.mxu0 %v1418
      %v1630 = vpop.f32.mrf.mxu0
      %v1631 = vadd.f32 0.0, %v1630
      %v1632 = vpop.f32.mrf.mxu0
      %1633 = vmatprep.mubr.f32.mxu0 0.0
      %1634 = vmatmul.mubr.f32.gmra.mxu0 %v1421
      %v1635 = vpop.f32.mrf.mxu0
      %v1636 = vadd.f32 0.0, %v1635
      %v1637 = vpop.f32.mrf.mxu0
      %1638 = vmatprep.mubr.f32.mxu0 0.0
      %1639 = vmatmul.mubr.f32.gmra.mxu0 %v1424
      %v1640 = vpop.f32.mrf.mxu0
      %v1641 = vadd.f32 0.0, %v1640
      %v1642 = vpop.f32.mrf.mxu0
      %1643 = vmatprep.mubr.f32.mxu0 0.0
      %1644 = vmatmul.mubr.f32.gmra.mxu0 %v1427
      %v1645 = vpop.f32.mrf.mxu0
      %v1646 = vadd.f32 0.0, %v1645
      %v1647 = vpop.f32.mrf.mxu0
      %1648 = vmatprep.mubr.f32.mxu0 0.0
      %1649 = vmatmul.mubr.f32.gmra.mxu0 %v1430
      %v1650 = vpop.f32.mrf.mxu0
      %v1651 = vadd.f32 0.0, %v1650
      %v1652 = vpop.f32.mrf.mxu0
      %1653 = vmatprep.mubr.f32.mxu0 0.0
      %1654 = vmatmul.mubr.f32.gmra.mxu0 %v1433
      %v1655 = vpop.f32.mrf.mxu0
      %v1656 = vadd.f32 0.0, %v1655
      %v1657 = vpop.f32.mrf.mxu0
      %1658 = vmatprep.mubr.f32.mxu0 0.0
      %1659 = vmatmul.mubr.f32.gmra.mxu0 %v1436
      %v1660 = vpop.f32.mrf.mxu0
      %v1661 = vadd.f32 0.0, %v1660
      %v1662 = vpop.f32.mrf.mxu0
      %1663 = vmatprep.mubr.f32.mxu0 0.0
      %1664 = vmatmul.mubr.f32.gmra.mxu0 %v1439
      %v1665 = vpop.f32.mrf.mxu0
      %v1666 = vadd.f32 0.0, %v1665
      %v1667 = vpop.f32.mrf.mxu0
      %1668 = vdwg.mxu0
      %v1669 = vadd.f32 %v1272, %v1511
      %v1670 = vadd.f32 %v1273, %v1516
      %v1671 = vadd.f32 %v1274, %v1521
      %v1672 = vadd.f32 %v1275, %v1526
      %v1673 = vadd.f32 %v1276, %v1531
      %v1674 = vadd.f32 %v1277, %v1536
      %v1675 = vadd.f32 %v1278, %v1541
      %v1676 = vadd.f32 %v1279, %v1546
      %v1677 = vadd.f32 %v1280, %v1551
      %v1678 = vadd.f32 %v1281, %v1556
      %v1679 = vadd.f32 %v1282, %v1561
      %v1680 = vadd.f32 %v1283, %v1566
      %v1681 = vadd.f32 %v1284, %v1571
      %v1682 = vadd.f32 %v1285, %v1576
      %v1683 = vadd.f32 %v1286, %v1581
      %v1684 = vadd.f32 %v1287, %v1586
      %v1685 = vadd.f32 %v1288, %v1591
      %v1686 = vadd.f32 %v1289, %v1596
      %v1687 = vadd.f32 %v1290, %v1601
      %v1688 = vadd.f32 %v1291, %v1606
      %v1689 = vadd.f32 %v1292, %v1611
      %v1690 = vadd.f32 %v1293, %v1616
      %v1691 = vadd.f32 %v1294, %v1621
      %v1692 = vadd.f32 %v1295, %v1626
      %v1693 = vadd.f32 %v1296, %v1631
      %v1694 = vadd.f32 %v1297, %v1636
      %v1695 = vadd.f32 %v1298, %v1641
      %v1696 = vadd.f32 %v1299, %v1646
      %v1697 = vadd.f32 %v1300, %v1651
      %v1698 = vadd.f32 %v1301, %v1656
      %v1699 = vadd.f32 %v1302, %v1661
      %v1700 = vadd.f32 %v1303, %v1666
      %s1701 = sadd.s32 %s176, 104
      %s1702 = scalar_lea.vmem %s0, %s1701
      %v1703 = vld [vmem:[%s1702] sm:$0xff]
      %v1704 = vld [vmem:[%s1702 + $0x8] sm:$0xff]
      %v1705 = vld [vmem:[%s1702 + $0x10] sm:$0xff]
      %v1706 = vld [vmem:[%s1702 + $0x18] sm:$0xff]
      %v1707 = vld [vmem:[%s1702 + $0x20] sm:$0xff]
      %v1708 = vld [vmem:[%s1702 + $0x28] sm:$0xff]
      %v1709 = vld [vmem:[%s1702 + $0x30] sm:$0xff]
      %v1710 = vld [vmem:[%s1702 + $0x38] sm:$0xff]
      %v1711 = vld [vmem:[%s1702 + $0x40] sm:$0xff]
      %v1712 = vld [vmem:[%s1702 + $0x48] sm:$0xff]
      %v1713 = vld [vmem:[%s1702 + $0x50] sm:$0xff]
      %v1714 = vld [vmem:[%s1702 + $0x58] sm:$0xff]
      %v1715 = vld [vmem:[%s1702 + $0x60] sm:$0xff]
      %v1716 = vld [vmem:[%s1702 + $0x68] sm:$0xff]
      %v1717 = vld [vmem:[%s1702 + $0x70] sm:$0xff]
      %v1718 = vld [vmem:[%s1702 + $0x78] sm:$0xff]
      %v1719 = vld [vmem:[%s1702 + $0x80] sm:$0xff]
      %v1720 = vld [vmem:[%s1702 + $0x88] sm:$0xff]
      %v1721 = vld [vmem:[%s1702 + $0x90] sm:$0xff]
      %v1722 = vld [vmem:[%s1702 + $0x98] sm:$0xff]
      %v1723 = vld [vmem:[%s1702 + $0xa0] sm:$0xff]
      %v1724 = vld [vmem:[%s1702 + $0xa8] sm:$0xff]
      %v1725 = vld [vmem:[%s1702 + $0xb0] sm:$0xff]
      %v1726 = vld [vmem:[%s1702 + $0xb8] sm:$0xff]
      %v1727 = vld [vmem:[%s1702 + $0xc0] sm:$0xff]
      %v1728 = vld [vmem:[%s1702 + $0xc8] sm:$0xff]
      %v1729 = vld [vmem:[%s1702 + $0xd0] sm:$0xff]
      %v1730 = vld [vmem:[%s1702 + $0xd8] sm:$0xff]
      %v1731 = vld [vmem:[%s1702 + $0xe0] sm:$0xff]
      %v1732 = vld [vmem:[%s1702 + $0xe8] sm:$0xff]
      %v1733 = vld [vmem:[%s1702 + $0xf0] sm:$0xff]
      %v1734 = vld [vmem:[%s1702 + $0xf8] sm:$0xff]
      %s1735 = scalar_lea.vmem %s1, 192
      %v1736 = vld [vmem:[%s1735] sm:$0xff]
      %v1737 = vld [vmem:[%s1735 + $0x8] sm:$0xff]
      %v1738 = vld [vmem:[%s1735 + $0x10] sm:$0xff]
      %v1739 = vld [vmem:[%s1735 + $0x18] sm:$0xff]
      %v1740 = vld [vmem:[%s1735 + $0x20] sm:$0xff]
      %v1741 = vld [vmem:[%s1735 + $0x28] sm:$0xf]
      %v1743 = vsel %vm257, %v1703, 0
      %v1746 = vsel %vm257, %v1704, 0
      %v1749 = vsel %vm257, %v1705, 0
      %v1752 = vsel %vm257, %v1706, 0
      %v1755 = vsel %vm257, %v1707, 0
      %v1758 = vsel %vm257, %v1708, 0
      %v1761 = vsel %vm257, %v1709, 0
      %v1764 = vsel %vm257, %v1710, 0
      %v1767 = vsel %vm257, %v1711, 0
      %v1770 = vsel %vm257, %v1712, 0
      %v1773 = vsel %vm257, %v1713, 0
      %v1776 = vsel %vm257, %v1714, 0
      %v1779 = vsel %vm257, %v1715, 0
      %v1782 = vsel %vm257, %v1716, 0
      %v1785 = vsel %vm257, %v1717, 0
      %v1788 = vsel %vm257, %v1718, 0
      %v1791 = vsel %vm257, %v1719, 0
      %v1794 = vsel %vm257, %v1720, 0
      %v1797 = vsel %vm257, %v1721, 0
      %v1800 = vsel %vm257, %v1722, 0
      %v1803 = vsel %vm257, %v1723, 0
      %v1806 = vsel %vm257, %v1724, 0
      %v1809 = vsel %vm257, %v1725, 0
      %v1812 = vsel %vm257, %v1726, 0
      %v1815 = vsel %vm257, %v1727, 0
      %v1818 = vsel %vm257, %v1728, 0
      %v1821 = vsel %vm257, %v1729, 0
      %v1824 = vsel %vm257, %v1730, 0
      %v1827 = vsel %vm257, %v1731, 0
      %v1830 = vsel %vm257, %v1732, 0
      %v1833 = vsel %vm257, %v1733, 0
      %v1836 = vsel %vm257, %v1734, 0
      %v1839 = vsel %vm354, %v1741, 0
      %1841 = vmatprep.subr.mxu0 0.0
      %1842 = vmatpush1.msra.mxu0 0.0
      %1843 = vmatprep.subr.mxu0 0.0
      %1844 = vmatpush1.msra.mxu0 0.0
      %1845 = vmatprep.subr.mxu0 0.0
      %1846 = vmatpush1.msra.mxu0 0.0
      %1847 = vmatprep.subr.mxu0 0.0
      %1848 = vmatpush1.msra.mxu0 0.0
      %1849 = vmatprep.subr.mxu0 0.0
      %1850 = vmatpush1.msra.mxu0 0.0
      %1851 = vmatprep.subr.mxu0 0.0
      %1852 = vmatpush1.msra.mxu0 0.0
      %1853 = vmatprep.subr.mxu0 0.0
      %1854 = vmatpush1.msra.mxu0 0.0
      %1855 = vmatprep.subr.mxu0 0.0
      %1856 = vmatpush1.msra.mxu0 0.0
      %1857 = vmatprep.subr.mxu0 0.0
      %1858 = vmatpush1.msra.mxu0 0.0
      %1859 = vmatprep.subr.mxu0 0.0
      %1860 = vmatpush1.msra.mxu0 0.0
      %1861 = vmatprep.subr.mxu0 0.0
      %1862 = vmatpush1.msra.mxu0 %v1839
      %1863 = vmatprep.subr.mxu0 0.0
      %1864 = vmatpush1.msra.mxu0 %v1740
      %1865 = vmatprep.subr.mxu0 0.0
      %1866 = vmatpush1.msra.mxu0 %v1739
      %1867 = vmatprep.subr.mxu0 0.0
      %1868 = vmatpush1.msra.mxu0 %v1738
      %1869 = vmatprep.subr.mxu0 0.0
      %1870 = vmatpush1.msra.mxu0 %v1737
      %1871 = vmatprep.subr.mxu0 0.0
      %1872 = vmatpush1.msra.mxu0 %v1736
      %1873 = vmatprep.subr.mxu0 0.0
      %1874 = vmatpush2.msra.mxu0 0.0
      %1875 = vmatprep.subr.mxu0 0.0
      %1876 = vmatpush2.msra.mxu0 0.0
      %1877 = vmatprep.subr.mxu0 0.0
      %1878 = vmatpush2.msra.mxu0 0.0
      %1879 = vmatprep.subr.mxu0 0.0
      %1880 = vmatpush2.msra.mxu0 0.0
      %1881 = vmatprep.subr.mxu0 0.0
      %1882 = vmatpush2.msra.mxu0 0.0
      %1883 = vmatprep.subr.mxu0 0.0
      %1884 = vmatpush2.msra.mxu0 0.0
      %1885 = vmatprep.subr.mxu0 0.0
      %1886 = vmatpush2.msra.mxu0 0.0
      %1887 = vmatprep.subr.mxu0 0.0
      %1888 = vmatpush2.msra.mxu0 0.0
      %1889 = vmatprep.subr.mxu0 0.0
      %1890 = vmatpush2.msra.mxu0 0.0
      %1891 = vmatprep.subr.mxu0 0.0
      %1892 = vmatpush2.msra.mxu0 0.0
      %1893 = vmatprep.subr.mxu0 0.0
      %1894 = vmatpush2.msra.mxu0 0.0
      %1895 = vmatprep.subr.mxu0 0.0
      %1896 = vmatpush2.msra.mxu0 0.0
      %1897 = vmatprep.subr.mxu0 0.0
      %1898 = vmatpush2.msra.mxu0 0.0
      %1899 = vmatprep.subr.mxu0 0.0
      %1900 = vmatpush2.msra.mxu0 0.0
      %1901 = vmatprep.subr.mxu0 0.0
      %1902 = vmatpush2.msra.mxu0 0.0
      %1903 = vmatprep.subr.mxu0 0.0
      %1904 = vmatpush2.msra.mxu0 0.0
      %1905 = vmatprep.mubr.f32.mxu0 0.0
      %1906 = vmatmul.mubr.f32.gmra.mxu0 %v1743
      %v1907 = vpop.f32.mrf.mxu0
      %v1908 = vadd.f32 0.0, %v1907
      %v1909 = vpop.f32.mrf.mxu0
      %1910 = vmatprep.mubr.f32.mxu0 0.0
      %1911 = vmatmul.mubr.f32.gmra.mxu0 %v1746
      %v1912 = vpop.f32.mrf.mxu0
      %v1913 = vadd.f32 0.0, %v1912
      %v1914 = vpop.f32.mrf.mxu0
      %1915 = vmatprep.mubr.f32.mxu0 0.0
      %1916 = vmatmul.mubr.f32.gmra.mxu0 %v1749
      %v1917 = vpop.f32.mrf.mxu0
      %v1918 = vadd.f32 0.0, %v1917
      %v1919 = vpop.f32.mrf.mxu0
      %1920 = vmatprep.mubr.f32.mxu0 0.0
      %1921 = vmatmul.mubr.f32.gmra.mxu0 %v1752
      %v1922 = vpop.f32.mrf.mxu0
      %v1923 = vadd.f32 0.0, %v1922
      %v1924 = vpop.f32.mrf.mxu0
      %1925 = vmatprep.mubr.f32.mxu0 0.0
      %1926 = vmatmul.mubr.f32.gmra.mxu0 %v1755
      %v1927 = vpop.f32.mrf.mxu0
      %v1928 = vadd.f32 0.0, %v1927
      %v1929 = vpop.f32.mrf.mxu0
      %1930 = vmatprep.mubr.f32.mxu0 0.0
      %1931 = vmatmul.mubr.f32.gmra.mxu0 %v1758
      %v1932 = vpop.f32.mrf.mxu0
      %v1933 = vadd.f32 0.0, %v1932
      %v1934 = vpop.f32.mrf.mxu0
      %1935 = vmatprep.mubr.f32.mxu0 0.0
      %1936 = vmatmul.mubr.f32.gmra.mxu0 %v1761
      %v1937 = vpop.f32.mrf.mxu0
      %v1938 = vadd.f32 0.0, %v1937
      %v1939 = vpop.f32.mrf.mxu0
      %1940 = vmatprep.mubr.f32.mxu0 0.0
      %1941 = vmatmul.mubr.f32.gmra.mxu0 %v1764
      %v1942 = vpop.f32.mrf.mxu0
      %v1943 = vadd.f32 0.0, %v1942
      %v1944 = vpop.f32.mrf.mxu0
      %1945 = vmatprep.mubr.f32.mxu0 0.0
      %1946 = vmatmul.mubr.f32.gmra.mxu0 %v1767
      %v1947 = vpop.f32.mrf.mxu0
      %v1948 = vadd.f32 0.0, %v1947
      %v1949 = vpop.f32.mrf.mxu0
      %1950 = vmatprep.mubr.f32.mxu0 0.0
      %1951 = vmatmul.mubr.f32.gmra.mxu0 %v1770
      %v1952 = vpop.f32.mrf.mxu0
      %v1953 = vadd.f32 0.0, %v1952
      %v1954 = vpop.f32.mrf.mxu0
      %1955 = vmatprep.mubr.f32.mxu0 0.0
      %1956 = vmatmul.mubr.f32.gmra.mxu0 %v1773
      %v1957 = vpop.f32.mrf.mxu0
      %v1958 = vadd.f32 0.0, %v1957
      %v1959 = vpop.f32.mrf.mxu0
      %1960 = vmatprep.mubr.f32.mxu0 0.0
      %1961 = vmatmul.mubr.f32.gmra.mxu0 %v1776
      %v1962 = vpop.f32.mrf.mxu0
      %v1963 = vadd.f32 0.0, %v1962
      %v1964 = vpop.f32.mrf.mxu0
      %1965 = vmatprep.mubr.f32.mxu0 0.0
      %1966 = vmatmul.mubr.f32.gmra.mxu0 %v1779
      %v1967 = vpop.f32.mrf.mxu0
      %v1968 = vadd.f32 0.0, %v1967
      %v1969 = vpop.f32.mrf.mxu0
      %1970 = vmatprep.mubr.f32.mxu0 0.0
      %1971 = vmatmul.mubr.f32.gmra.mxu0 %v1782
      %v1972 = vpop.f32.mrf.mxu0
      %v1973 = vadd.f32 0.0, %v1972
      %v1974 = vpop.f32.mrf.mxu0
      %1975 = vmatprep.mubr.f32.mxu0 0.0
      %1976 = vmatmul.mubr.f32.gmra.mxu0 %v1785
      %v1977 = vpop.f32.mrf.mxu0
      %v1978 = vadd.f32 0.0, %v1977
      %v1979 = vpop.f32.mrf.mxu0
      %1980 = vmatprep.mubr.f32.mxu0 0.0
      %1981 = vmatmul.mubr.f32.gmra.mxu0 %v1788
      %v1982 = vpop.f32.mrf.mxu0
      %v1983 = vadd.f32 0.0, %v1982
      %v1984 = vpop.f32.mrf.mxu0
      %1985 = vmatprep.mubr.f32.mxu0 0.0
      %1986 = vmatmul.mubr.f32.gmra.mxu0 %v1791
      %v1987 = vpop.f32.mrf.mxu0
      %v1988 = vadd.f32 0.0, %v1987
      %v1989 = vpop.f32.mrf.mxu0
      %1990 = vmatprep.mubr.f32.mxu0 0.0
      %1991 = vmatmul.mubr.f32.gmra.mxu0 %v1794
      %v1992 = vpop.f32.mrf.mxu0
      %v1993 = vadd.f32 0.0, %v1992
      %v1994 = vpop.f32.mrf.mxu0
      %1995 = vmatprep.mubr.f32.mxu0 0.0
      %1996 = vmatmul.mubr.f32.gmra.mxu0 %v1797
      %v1997 = vpop.f32.mrf.mxu0
      %v1998 = vadd.f32 0.0, %v1997
      %v1999 = vpop.f32.mrf.mxu0
      %2000 = vmatprep.mubr.f32.mxu0 0.0
      %2001 = vmatmul.mubr.f32.gmra.mxu0 %v1800
      %v2002 = vpop.f32.mrf.mxu0
      %v2003 = vadd.f32 0.0, %v2002
      %v2004 = vpop.f32.mrf.mxu0
      %2005 = vmatprep.mubr.f32.mxu0 0.0
      %2006 = vmatmul.mubr.f32.gmra.mxu0 %v1803
      %v2007 = vpop.f32.mrf.mxu0
      %v2008 = vadd.f32 0.0, %v2007
      %v2009 = vpop.f32.mrf.mxu0
      %2010 = vmatprep.mubr.f32.mxu0 0.0
      %2011 = vmatmul.mubr.f32.gmra.mxu0 %v1806
      %v2012 = vpop.f32.mrf.mxu0
      %v2013 = vadd.f32 0.0, %v2012
      %v2014 = vpop.f32.mrf.mxu0
      %2015 = vmatprep.mubr.f32.mxu0 0.0
      %2016 = vmatmul.mubr.f32.gmra.mxu0 %v1809
      %v2017 = vpop.f32.mrf.mxu0
      %v2018 = vadd.f32 0.0, %v2017
      %v2019 = vpop.f32.mrf.mxu0
      %2020 = vmatprep.mubr.f32.mxu0 0.0
      %2021 = vmatmul.mubr.f32.gmra.mxu0 %v1812
      %v2022 = vpop.f32.mrf.mxu0
      %v2023 = vadd.f32 0.0, %v2022
      %v2024 = vpop.f32.mrf.mxu0
      %2025 = vmatprep.mubr.f32.mxu0 0.0
      %2026 = vmatmul.mubr.f32.gmra.mxu0 %v1815
      %v2027 = vpop.f32.mrf.mxu0
      %v2028 = vadd.f32 0.0, %v2027
      %v2029 = vpop.f32.mrf.mxu0
      %2030 = vmatprep.mubr.f32.mxu0 0.0
      %2031 = vmatmul.mubr.f32.gmra.mxu0 %v1818
      %v2032 = vpop.f32.mrf.mxu0
      %v2033 = vadd.f32 0.0, %v2032
      %v2034 = vpop.f32.mrf.mxu0
      %2035 = vmatprep.mubr.f32.mxu0 0.0
      %2036 = vmatmul.mubr.f32.gmra.mxu0 %v1821
      %v2037 = vpop.f32.mrf.mxu0
      %v2038 = vadd.f32 0.0, %v2037
      %v2039 = vpop.f32.mrf.mxu0
      %2040 = vmatprep.mubr.f32.mxu0 0.0
      %2041 = vmatmul.mubr.f32.gmra.mxu0 %v1824
      %v2042 = vpop.f32.mrf.mxu0
      %v2043 = vadd.f32 0.0, %v2042
      %v2044 = vpop.f32.mrf.mxu0
      %2045 = vmatprep.mubr.f32.mxu0 0.0
      %2046 = vmatmul.mubr.f32.gmra.mxu0 %v1827
      %v2047 = vpop.f32.mrf.mxu0
      %v2048 = vadd.f32 0.0, %v2047
      %v2049 = vpop.f32.mrf.mxu0
      %2050 = vmatprep.mubr.f32.mxu0 0.0
      %2051 = vmatmul.mubr.f32.gmra.mxu0 %v1830
      %v2052 = vpop.f32.mrf.mxu0
      %v2053 = vadd.f32 0.0, %v2052
      %v2054 = vpop.f32.mrf.mxu0
      %2055 = vmatprep.mubr.f32.mxu0 0.0
      %2056 = vmatmul.mubr.f32.gmra.mxu0 %v1833
      %v2057 = vpop.f32.mrf.mxu0
      %v2058 = vadd.f32 0.0, %v2057
      %v2059 = vpop.f32.mrf.mxu0
      %2060 = vmatprep.mubr.f32.mxu0 0.0
      %2061 = vmatmul.mubr.f32.gmra.mxu0 %v1836
      %v2062 = vpop.f32.mrf.mxu0
      %v2063 = vadd.f32 0.0, %v2062
      %v2064 = vpop.f32.mrf.mxu0
      %2065 = vdwg.mxu0
      %v2066 = vadd.f32 %v1669, %v1908
      %v2067 = vadd.f32 %v1670, %v1913
      %v2068 = vadd.f32 %v1671, %v1918
      %v2069 = vadd.f32 %v1672, %v1923
      %v2070 = vadd.f32 %v1673, %v1928
      %v2071 = vadd.f32 %v1674, %v1933
      %v2072 = vadd.f32 %v1675, %v1938
      %v2073 = vadd.f32 %v1676, %v1943
      %v2074 = vadd.f32 %v1677, %v1948
      %v2075 = vadd.f32 %v1678, %v1953
      %v2076 = vadd.f32 %v1679, %v1958
      %v2077 = vadd.f32 %v1680, %v1963
      %v2078 = vadd.f32 %v1681, %v1968
      %v2079 = vadd.f32 %v1682, %v1973
      %v2080 = vadd.f32 %v1683, %v1978
      %v2081 = vadd.f32 %v1684, %v1983
      %v2082 = vadd.f32 %v1685, %v1988
      %v2083 = vadd.f32 %v1686, %v1993
      %v2084 = vadd.f32 %v1687, %v1998
      %v2085 = vadd.f32 %v1688, %v2003
      %v2086 = vadd.f32 %v1689, %v2008
      %v2087 = vadd.f32 %v1690, %v2013
      %v2088 = vadd.f32 %v1691, %v2018
      %v2089 = vadd.f32 %v1692, %v2023
      %v2090 = vadd.f32 %v1693, %v2028
      %v2091 = vadd.f32 %v1694, %v2033
      %v2092 = vadd.f32 %v1695, %v2038
      %v2093 = vadd.f32 %v1696, %v2043
      %v2094 = vadd.f32 %v1697, %v2048
      %v2095 = vadd.f32 %v1698, %v2053
      %v2096 = vadd.f32 %v1699, %v2058
      %v2097 = vadd.f32 %v1700, %v2063
      %s2098 = sadd.s32 %s176, 130
      %s2099 = scalar_lea.vmem %s0, %s2098
      %v2100 = vld [vmem:[%s2099] sm:$0xff]
      %v2101 = vld [vmem:[%s2099 + $0x8] sm:$0xff]
      %v2102 = vld [vmem:[%s2099 + $0x10] sm:$0xff]
      %v2103 = vld [vmem:[%s2099 + $0x18] sm:$0xff]
      %v2104 = vld [vmem:[%s2099 + $0x20] sm:$0xff]
      %v2105 = vld [vmem:[%s2099 + $0x28] sm:$0xff]
      %v2106 = vld [vmem:[%s2099 + $0x30] sm:$0xff]
      %v2107 = vld [vmem:[%s2099 + $0x38] sm:$0xff]
      %v2108 = vld [vmem:[%s2099 + $0x40] sm:$0xff]
      %v2109 = vld [vmem:[%s2099 + $0x48] sm:$0xff]
      %v2110 = vld [vmem:[%s2099 + $0x50] sm:$0xff]
      %v2111 = vld [vmem:[%s2099 + $0x58] sm:$0xff]
      %v2112 = vld [vmem:[%s2099 + $0x60] sm:$0xff]
      %v2113 = vld [vmem:[%s2099 + $0x68] sm:$0xff]
      %v2114 = vld [vmem:[%s2099 + $0x70] sm:$0xff]
      %v2115 = vld [vmem:[%s2099 + $0x78] sm:$0xff]
      %v2116 = vld [vmem:[%s2099 + $0x80] sm:$0xff]
      %v2117 = vld [vmem:[%s2099 + $0x88] sm:$0xff]
      %v2118 = vld [vmem:[%s2099 + $0x90] sm:$0xff]
      %v2119 = vld [vmem:[%s2099 + $0x98] sm:$0xff]
      %v2120 = vld [vmem:[%s2099 + $0xa0] sm:$0xff]
      %v2121 = vld [vmem:[%s2099 + $0xa8] sm:$0xff]
      %v2122 = vld [vmem:[%s2099 + $0xb0] sm:$0xff]
      %v2123 = vld [vmem:[%s2099 + $0xb8] sm:$0xff]
      %v2124 = vld [vmem:[%s2099 + $0xc0] sm:$0xff]
      %v2125 = vld [vmem:[%s2099 + $0xc8] sm:$0xff]
      %v2126 = vld [vmem:[%s2099 + $0xd0] sm:$0xff]
      %v2127 = vld [vmem:[%s2099 + $0xd8] sm:$0xff]
      %v2128 = vld [vmem:[%s2099 + $0xe0] sm:$0xff]
      %v2129 = vld [vmem:[%s2099 + $0xe8] sm:$0xff]
      %v2130 = vld [vmem:[%s2099 + $0xf0] sm:$0xff]
      %v2131 = vld [vmem:[%s2099 + $0xf8] sm:$0xff]
      %s2132 = scalar_lea.vmem %s1, 240
      %v2133 = vld [vmem:[%s2132] sm:$0xff]
      %v2134 = vld [vmem:[%s2132 + $0x8] sm:$0xff]
      %v2135 = vld [vmem:[%s2132 + $0x10] sm:$0xff]
      %v2136 = vld [vmem:[%s2132 + $0x18] sm:$0xff]
      %v2137 = vld [vmem:[%s2132 + $0x20] sm:$0xff]
      %v2138 = vld [vmem:[%s2132 + $0x28] sm:$0xf]
      %v2140 = vsel %vm257, %v2100, 0
      %v2143 = vsel %vm257, %v2101, 0
      %v2146 = vsel %vm257, %v2102, 0
      %v2149 = vsel %vm257, %v2103, 0
      %v2152 = vsel %vm257, %v2104, 0
      %v2155 = vsel %vm257, %v2105, 0
      %v2158 = vsel %vm257, %v2106, 0
      %v2161 = vsel %vm257, %v2107, 0
      %v2164 = vsel %vm257, %v2108, 0
      %v2167 = vsel %vm257, %v2109, 0
      %v2170 = vsel %vm257, %v2110, 0
      %v2173 = vsel %vm257, %v2111, 0
      %v2176 = vsel %vm257, %v2112, 0
      %v2179 = vsel %vm257, %v2113, 0
      %v2182 = vsel %vm257, %v2114, 0
      %v2185 = vsel %vm257, %v2115, 0
      %v2188 = vsel %vm257, %v2116, 0
      %v2191 = vsel %vm257, %v2117, 0
      %v2194 = vsel %vm257, %v2118, 0
      %v2197 = vsel %vm257, %v2119, 0
      %v2200 = vsel %vm257, %v2120, 0
      %v2203 = vsel %vm257, %v2121, 0
      %v2206 = vsel %vm257, %v2122, 0
      %v2209 = vsel %vm257, %v2123, 0
      %v2212 = vsel %vm257, %v2124, 0
      %v2215 = vsel %vm257, %v2125, 0
      %v2218 = vsel %vm257, %v2126, 0
      %v2221 = vsel %vm257, %v2127, 0
      %v2224 = vsel %vm257, %v2128, 0
      %v2227 = vsel %vm257, %v2129, 0
      %v2230 = vsel %vm257, %v2130, 0
      %v2233 = vsel %vm257, %v2131, 0
      %v2236 = vsel %vm354, %v2138, 0
      %2238 = vmatprep.subr.mxu0 0.0
      %2239 = vmatpush1.msra.mxu0 0.0
      %2240 = vmatprep.subr.mxu0 0.0
      %2241 = vmatpush1.msra.mxu0 0.0
      %2242 = vmatprep.subr.mxu0 0.0
      %2243 = vmatpush1.msra.mxu0 0.0
      %2244 = vmatprep.subr.mxu0 0.0
      %2245 = vmatpush1.msra.mxu0 0.0
      %2246 = vmatprep.subr.mxu0 0.0
      %2247 = vmatpush1.msra.mxu0 0.0
      %2248 = vmatprep.subr.mxu0 0.0
      %2249 = vmatpush1.msra.mxu0 0.0
      %2250 = vmatprep.subr.mxu0 0.0
      %2251 = vmatpush1.msra.mxu0 0.0
      %2252 = vmatprep.subr.mxu0 0.0
      %2253 = vmatpush1.msra.mxu0 0.0
      %2254 = vmatprep.subr.mxu0 0.0
      %2255 = vmatpush1.msra.mxu0 0.0
      %2256 = vmatprep.subr.mxu0 0.0
      %2257 = vmatpush1.msra.mxu0 0.0
      %2258 = vmatprep.subr.mxu0 0.0
      %2259 = vmatpush1.msra.mxu0 %v2236
      %2260 = vmatprep.subr.mxu0 0.0
      %2261 = vmatpush1.msra.mxu0 %v2137
      %2262 = vmatprep.subr.mxu0 0.0
      %2263 = vmatpush1.msra.mxu0 %v2136
      %2264 = vmatprep.subr.mxu0 0.0
      %2265 = vmatpush1.msra.mxu0 %v2135
      %2266 = vmatprep.subr.mxu0 0.0
      %2267 = vmatpush1.msra.mxu0 %v2134
      %2268 = vmatprep.subr.mxu0 0.0
      %2269 = vmatpush1.msra.mxu0 %v2133
      %2270 = vmatprep.subr.mxu0 0.0
      %2271 = vmatpush2.msra.mxu0 0.0
      %2272 = vmatprep.subr.mxu0 0.0
      %2273 = vmatpush2.msra.mxu0 0.0
      %2274 = vmatprep.subr.mxu0 0.0
      %2275 = vmatpush2.msra.mxu0 0.0
      %2276 = vmatprep.subr.mxu0 0.0
      %2277 = vmatpush2.msra.mxu0 0.0
      %2278 = vmatprep.subr.mxu0 0.0
      %2279 = vmatpush2.msra.mxu0 0.0
      %2280 = vmatprep.subr.mxu0 0.0
      %2281 = vmatpush2.msra.mxu0 0.0
      %2282 = vmatprep.subr.mxu0 0.0
      %2283 = vmatpush2.msra.mxu0 0.0
      %2284 = vmatprep.subr.mxu0 0.0
      %2285 = vmatpush2.msra.mxu0 0.0
      %2286 = vmatprep.subr.mxu0 0.0
      %2287 = vmatpush2.msra.mxu0 0.0
      %2288 = vmatprep.subr.mxu0 0.0
      %2289 = vmatpush2.msra.mxu0 0.0
      %2290 = vmatprep.subr.mxu0 0.0
      %2291 = vmatpush2.msra.mxu0 0.0
      %2292 = vmatprep.subr.mxu0 0.0
      %2293 = vmatpush2.msra.mxu0 0.0
      %2294 = vmatprep.subr.mxu0 0.0
      %2295 = vmatpush2.msra.mxu0 0.0
      %2296 = vmatprep.subr.mxu0 0.0
      %2297 = vmatpush2.msra.mxu0 0.0
      %2298 = vmatprep.subr.mxu0 0.0
      %2299 = vmatpush2.msra.mxu0 0.0
      %2300 = vmatprep.subr.mxu0 0.0
      %2301 = vmatpush2.msra.mxu0 0.0
      %2302 = vmatprep.mubr.f32.mxu0 0.0
      %2303 = vmatmul.mubr.f32.gmra.mxu0 %v2140
      %v2304 = vpop.f32.mrf.mxu0
      %v2305 = vadd.f32 0.0, %v2304
      %v2306 = vpop.f32.mrf.mxu0
      %2307 = vmatprep.mubr.f32.mxu0 0.0
      %2308 = vmatmul.mubr.f32.gmra.mxu0 %v2143
      %v2309 = vpop.f32.mrf.mxu0
      %v2310 = vadd.f32 0.0, %v2309
      %v2311 = vpop.f32.mrf.mxu0
      %2312 = vmatprep.mubr.f32.mxu0 0.0
      %2313 = vmatmul.mubr.f32.gmra.mxu0 %v2146
      %v2314 = vpop.f32.mrf.mxu0
      %v2315 = vadd.f32 0.0, %v2314
      %v2316 = vpop.f32.mrf.mxu0
      %2317 = vmatprep.mubr.f32.mxu0 0.0
      %2318 = vmatmul.mubr.f32.gmra.mxu0 %v2149
      %v2319 = vpop.f32.mrf.mxu0
      %v2320 = vadd.f32 0.0, %v2319
      %v2321 = vpop.f32.mrf.mxu0
      %2322 = vmatprep.mubr.f32.mxu0 0.0
      %2323 = vmatmul.mubr.f32.gmra.mxu0 %v2152
      %v2324 = vpop.f32.mrf.mxu0
      %v2325 = vadd.f32 0.0, %v2324
      %v2326 = vpop.f32.mrf.mxu0
      %2327 = vmatprep.mubr.f32.mxu0 0.0
      %2328 = vmatmul.mubr.f32.gmra.mxu0 %v2155
      %v2329 = vpop.f32.mrf.mxu0
      %v2330 = vadd.f32 0.0, %v2329
      %v2331 = vpop.f32.mrf.mxu0
      %2332 = vmatprep.mubr.f32.mxu0 0.0
      %2333 = vmatmul.mubr.f32.gmra.mxu0 %v2158
      %v2334 = vpop.f32.mrf.mxu0
      %v2335 = vadd.f32 0.0, %v2334
      %v2336 = vpop.f32.mrf.mxu0
      %2337 = vmatprep.mubr.f32.mxu0 0.0
      %2338 = vmatmul.mubr.f32.gmra.mxu0 %v2161
      %v2339 = vpop.f32.mrf.mxu0
      %v2340 = vadd.f32 0.0, %v2339
      %v2341 = vpop.f32.mrf.mxu0
      %2342 = vmatprep.mubr.f32.mxu0 0.0
      %2343 = vmatmul.mubr.f32.gmra.mxu0 %v2164
      %v2344 = vpop.f32.mrf.mxu0
      %v2345 = vadd.f32 0.0, %v2344
      %v2346 = vpop.f32.mrf.mxu0
      %2347 = vmatprep.mubr.f32.mxu0 0.0
      %2348 = vmatmul.mubr.f32.gmra.mxu0 %v2167
      %v2349 = vpop.f32.mrf.mxu0
      %v2350 = vadd.f32 0.0, %v2349
      %v2351 = vpop.f32.mrf.mxu0
      %2352 = vmatprep.mubr.f32.mxu0 0.0
      %2353 = vmatmul.mubr.f32.gmra.mxu0 %v2170
      %v2354 = vpop.f32.mrf.mxu0
      %v2355 = vadd.f32 0.0, %v2354
      %v2356 = vpop.f32.mrf.mxu0
      %2357 = vmatprep.mubr.f32.mxu0 0.0
      %2358 = vmatmul.mubr.f32.gmra.mxu0 %v2173
      %v2359 = vpop.f32.mrf.mxu0
      %v2360 = vadd.f32 0.0, %v2359
      %v2361 = vpop.f32.mrf.mxu0
      %2362 = vmatprep.mubr.f32.mxu0 0.0
      %2363 = vmatmul.mubr.f32.gmra.mxu0 %v2176
      %v2364 = vpop.f32.mrf.mxu0
      %v2365 = vadd.f32 0.0, %v2364
      %v2366 = vpop.f32.mrf.mxu0
      %2367 = vmatprep.mubr.f32.mxu0 0.0
      %2368 = vmatmul.mubr.f32.gmra.mxu0 %v2179
      %v2369 = vpop.f32.mrf.mxu0
      %v2370 = vadd.f32 0.0, %v2369
      %v2371 = vpop.f32.mrf.mxu0
      %2372 = vmatprep.mubr.f32.mxu0 0.0
      %2373 = vmatmul.mubr.f32.gmra.mxu0 %v2182
      %v2374 = vpop.f32.mrf.mxu0
      %v2375 = vadd.f32 0.0, %v2374
      %v2376 = vpop.f32.mrf.mxu0
      %2377 = vmatprep.mubr.f32.mxu0 0.0
      %2378 = vmatmul.mubr.f32.gmra.mxu0 %v2185
      %v2379 = vpop.f32.mrf.mxu0
      %v2380 = vadd.f32 0.0, %v2379
      %v2381 = vpop.f32.mrf.mxu0
      %2382 = vmatprep.mubr.f32.mxu0 0.0
      %2383 = vmatmul.mubr.f32.gmra.mxu0 %v2188
      %v2384 = vpop.f32.mrf.mxu0
      %v2385 = vadd.f32 0.0, %v2384
      %v2386 = vpop.f32.mrf.mxu0
      %2387 = vmatprep.mubr.f32.mxu0 0.0
      %2388 = vmatmul.mubr.f32.gmra.mxu0 %v2191
      %v2389 = vpop.f32.mrf.mxu0
      %v2390 = vadd.f32 0.0, %v2389
      %v2391 = vpop.f32.mrf.mxu0
      %2392 = vmatprep.mubr.f32.mxu0 0.0
      %2393 = vmatmul.mubr.f32.gmra.mxu0 %v2194
      %v2394 = vpop.f32.mrf.mxu0
      %v2395 = vadd.f32 0.0, %v2394
      %v2396 = vpop.f32.mrf.mxu0
      %2397 = vmatprep.mubr.f32.mxu0 0.0
      %2398 = vmatmul.mubr.f32.gmra.mxu0 %v2197
      %v2399 = vpop.f32.mrf.mxu0
      %v2400 = vadd.f32 0.0, %v2399
      %v2401 = vpop.f32.mrf.mxu0
      %2402 = vmatprep.mubr.f32.mxu0 0.0
      %2403 = vmatmul.mubr.f32.gmra.mxu0 %v2200
      %v2404 = vpop.f32.mrf.mxu0
      %v2405 = vadd.f32 0.0, %v2404
      %v2406 = vpop.f32.mrf.mxu0
      %2407 = vmatprep.mubr.f32.mxu0 0.0
      %2408 = vmatmul.mubr.f32.gmra.mxu0 %v2203
      %v2409 = vpop.f32.mrf.mxu0
      %v2410 = vadd.f32 0.0, %v2409
      %v2411 = vpop.f32.mrf.mxu0
      %2412 = vmatprep.mubr.f32.mxu0 0.0
      %2413 = vmatmul.mubr.f32.gmra.mxu0 %v2206
      %v2414 = vpop.f32.mrf.mxu0
      %v2415 = vadd.f32 0.0, %v2414
      %v2416 = vpop.f32.mrf.mxu0
      %2417 = vmatprep.mubr.f32.mxu0 0.0
      %2418 = vmatmul.mubr.f32.gmra.mxu0 %v2209
      %v2419 = vpop.f32.mrf.mxu0
      %v2420 = vadd.f32 0.0, %v2419
      %v2421 = vpop.f32.mrf.mxu0
      %2422 = vmatprep.mubr.f32.mxu0 0.0
      %2423 = vmatmul.mubr.f32.gmra.mxu0 %v2212
      %v2424 = vpop.f32.mrf.mxu0
      %v2425 = vadd.f32 0.0, %v2424
      %v2426 = vpop.f32.mrf.mxu0
      %2427 = vmatprep.mubr.f32.mxu0 0.0
      %2428 = vmatmul.mubr.f32.gmra.mxu0 %v2215
      %v2429 = vpop.f32.mrf.mxu0
      %v2430 = vadd.f32 0.0, %v2429
      %v2431 = vpop.f32.mrf.mxu0
      %2432 = vmatprep.mubr.f32.mxu0 0.0
      %2433 = vmatmul.mubr.f32.gmra.mxu0 %v2218
      %v2434 = vpop.f32.mrf.mxu0
      %v2435 = vadd.f32 0.0, %v2434
      %v2436 = vpop.f32.mrf.mxu0
      %2437 = vmatprep.mubr.f32.mxu0 0.0
      %2438 = vmatmul.mubr.f32.gmra.mxu0 %v2221
      %v2439 = vpop.f32.mrf.mxu0
      %v2440 = vadd.f32 0.0, %v2439
      %v2441 = vpop.f32.mrf.mxu0
      %2442 = vmatprep.mubr.f32.mxu0 0.0
      %2443 = vmatmul.mubr.f32.gmra.mxu0 %v2224
      %v2444 = vpop.f32.mrf.mxu0
      %v2445 = vadd.f32 0.0, %v2444
      %v2446 = vpop.f32.mrf.mxu0
      %2447 = vmatprep.mubr.f32.mxu0 0.0
      %2448 = vmatmul.mubr.f32.gmra.mxu0 %v2227
      %v2449 = vpop.f32.mrf.mxu0
      %v2450 = vadd.f32 0.0, %v2449
      %v2451 = vpop.f32.mrf.mxu0
      %2452 = vmatprep.mubr.f32.mxu0 0.0
      %2453 = vmatmul.mubr.f32.gmra.mxu0 %v2230
      %v2454 = vpop.f32.mrf.mxu0
      %v2455 = vadd.f32 0.0, %v2454
      %v2456 = vpop.f32.mrf.mxu0
      %2457 = vmatprep.mubr.f32.mxu0 0.0
      %2458 = vmatmul.mubr.f32.gmra.mxu0 %v2233
      %v2459 = vpop.f32.mrf.mxu0
      %v2460 = vadd.f32 0.0, %v2459
      %v2461 = vpop.f32.mrf.mxu0
      %2462 = vdwg.mxu0
      %v2463 = vadd.f32 %v2066, %v2305
      %v2464 = vadd.f32 %v2067, %v2310
      %v2465 = vadd.f32 %v2068, %v2315
      %v2466 = vadd.f32 %v2069, %v2320
      %v2467 = vadd.f32 %v2070, %v2325
      %v2468 = vadd.f32 %v2071, %v2330
      %v2469 = vadd.f32 %v2072, %v2335
      %v2470 = vadd.f32 %v2073, %v2340
      %v2471 = vadd.f32 %v2074, %v2345
      %v2472 = vadd.f32 %v2075, %v2350
      %v2473 = vadd.f32 %v2076, %v2355
      %v2474 = vadd.f32 %v2077, %v2360
      %v2475 = vadd.f32 %v2078, %v2365
      %v2476 = vadd.f32 %v2079, %v2370
      %v2477 = vadd.f32 %v2080, %v2375
      %v2478 = vadd.f32 %v2081, %v2380
      %v2479 = vadd.f32 %v2082, %v2385
      %v2480 = vadd.f32 %v2083, %v2390
      %v2481 = vadd.f32 %v2084, %v2395
      %v2482 = vadd.f32 %v2085, %v2400
      %v2483 = vadd.f32 %v2086, %v2405
      %v2484 = vadd.f32 %v2087, %v2410
      %v2485 = vadd.f32 %v2088, %v2415
      %v2486 = vadd.f32 %v2089, %v2420
      %v2487 = vadd.f32 %v2090, %v2425
      %v2488 = vadd.f32 %v2091, %v2430
      %v2489 = vadd.f32 %v2092, %v2435
      %v2490 = vadd.f32 %v2093, %v2440
      %v2491 = vadd.f32 %v2094, %v2445
      %v2492 = vadd.f32 %v2095, %v2450
      %v2493 = vadd.f32 %v2096, %v2455
      %v2494 = vadd.f32 %v2097, %v2460
      %s2495 = sadd.s32 %s176, 156
      %s2496 = scalar_lea.vmem %s0, %s2495
      %v2497 = vld [vmem:[%s2496] sm:$0xff]
      %v2498 = vld [vmem:[%s2496 + $0x8] sm:$0xff]
      %v2499 = vld [vmem:[%s2496 + $0x10] sm:$0xff]
      %v2500 = vld [vmem:[%s2496 + $0x18] sm:$0xff]
      %v2501 = vld [vmem:[%s2496 + $0x20] sm:$0xff]
      %v2502 = vld [vmem:[%s2496 + $0x28] sm:$0xff]
      %v2503 = vld [vmem:[%s2496 + $0x30] sm:$0xff]
      %v2504 = vld [vmem:[%s2496 + $0x38] sm:$0xff]
      %v2505 = vld [vmem:[%s2496 + $0x40] sm:$0xff]
      %v2506 = vld [vmem:[%s2496 + $0x48] sm:$0xff]
      %v2507 = vld [vmem:[%s2496 + $0x50] sm:$0xff]
      %v2508 = vld [vmem:[%s2496 + $0x58] sm:$0xff]
      %v2509 = vld [vmem:[%s2496 + $0x60] sm:$0xff]
      %v2510 = vld [vmem:[%s2496 + $0x68] sm:$0xff]
      %v2511 = vld [vmem:[%s2496 + $0x70] sm:$0xff]
      %v2512 = vld [vmem:[%s2496 + $0x78] sm:$0xff]
      %v2513 = vld [vmem:[%s2496 + $0x80] sm:$0xff]
      %v2514 = vld [vmem:[%s2496 + $0x88] sm:$0xff]
      %v2515 = vld [vmem:[%s2496 + $0x90] sm:$0xff]
      %v2516 = vld [vmem:[%s2496 + $0x98] sm:$0xff]
      %v2517 = vld [vmem:[%s2496 + $0xa0] sm:$0xff]
      %v2518 = vld [vmem:[%s2496 + $0xa8] sm:$0xff]
      %v2519 = vld [vmem:[%s2496 + $0xb0] sm:$0xff]
      %v2520 = vld [vmem:[%s2496 + $0xb8] sm:$0xff]
      %v2521 = vld [vmem:[%s2496 + $0xc0] sm:$0xff]
      %v2522 = vld [vmem:[%s2496 + $0xc8] sm:$0xff]
      %v2523 = vld [vmem:[%s2496 + $0xd0] sm:$0xff]
      %v2524 = vld [vmem:[%s2496 + $0xd8] sm:$0xff]
      %v2525 = vld [vmem:[%s2496 + $0xe0] sm:$0xff]
      %v2526 = vld [vmem:[%s2496 + $0xe8] sm:$0xff]
      %v2527 = vld [vmem:[%s2496 + $0xf0] sm:$0xff]
      %v2528 = vld [vmem:[%s2496 + $0xf8] sm:$0xff]
      %s2529 = scalar_lea.vmem %s1, 288
      %v2530 = vld [vmem:[%s2529] sm:$0xff]
      %v2531 = vld [vmem:[%s2529 + $0x8] sm:$0xff]
      %v2532 = vld [vmem:[%s2529 + $0x10] sm:$0xff]
      %v2533 = vld [vmem:[%s2529 + $0x18] sm:$0xff]
      %v2534 = vld [vmem:[%s2529 + $0x20] sm:$0xff]
      %v2535 = vld [vmem:[%s2529 + $0x28] sm:$0xf]
      %v2537 = vsel %vm257, %v2497, 0
      %v2540 = vsel %vm257, %v2498, 0
      %v2543 = vsel %vm257, %v2499, 0
      %v2546 = vsel %vm257, %v2500, 0
      %v2549 = vsel %vm257, %v2501, 0
      %v2552 = vsel %vm257, %v2502, 0
      %v2555 = vsel %vm257, %v2503, 0
      %v2558 = vsel %vm257, %v2504, 0
      %v2561 = vsel %vm257, %v2505, 0
      %v2564 = vsel %vm257, %v2506, 0
      %v2567 = vsel %vm257, %v2507, 0
      %v2570 = vsel %vm257, %v2508, 0
      %v2573 = vsel %vm257, %v2509, 0
      %v2576 = vsel %vm257, %v2510, 0
      %v2579 = vsel %vm257, %v2511, 0
      %v2582 = vsel %vm257, %v2512, 0
      %v2585 = vsel %vm257, %v2513, 0
      %v2588 = vsel %vm257, %v2514, 0
      %v2591 = vsel %vm257, %v2515, 0
      %v2594 = vsel %vm257, %v2516, 0
      %v2597 = vsel %vm257, %v2517, 0
      %v2600 = vsel %vm257, %v2518, 0
      %v2603 = vsel %vm257, %v2519, 0
      %v2606 = vsel %vm257, %v2520, 0
      %v2609 = vsel %vm257, %v2521, 0
      %v2612 = vsel %vm257, %v2522, 0
      %v2615 = vsel %vm257, %v2523, 0
      %v2618 = vsel %vm257, %v2524, 0
      %v2621 = vsel %vm257, %v2525, 0
      %v2624 = vsel %vm257, %v2526, 0
      %v2627 = vsel %vm257, %v2527, 0
      %v2630 = vsel %vm257, %v2528, 0
      %v2633 = vsel %vm354, %v2535, 0
      %2635 = vmatprep.subr.mxu0 0.0
      %2636 = vmatpush1.msra.mxu0 0.0
      %2637 = vmatprep.subr.mxu0 0.0
      %2638 = vmatpush1.msra.mxu0 0.0
      %2639 = vmatprep.subr.mxu0 0.0
      %2640 = vmatpush1.msra.mxu0 0.0
      %2641 = vmatprep.subr.mxu0 0.0
      %2642 = vmatpush1.msra.mxu0 0.0
      %2643 = vmatprep.subr.mxu0 0.0
      %2644 = vmatpush1.msra.mxu0 0.0
      %2645 = vmatprep.subr.mxu0 0.0
      %2646 = vmatpush1.msra.mxu0 0.0
      %2647 = vmatprep.subr.mxu0 0.0
      %2648 = vmatpush1.msra.mxu0 0.0
      %2649 = vmatprep.subr.mxu0 0.0
      %2650 = vmatpush1.msra.mxu0 0.0
      %2651 = vmatprep.subr.mxu0 0.0
      %2652 = vmatpush1.msra.mxu0 0.0
      %2653 = vmatprep.subr.mxu0 0.0
      %2654 = vmatpush1.msra.mxu0 0.0
      %2655 = vmatprep.subr.mxu0 0.0
      %2656 = vmatpush1.msra.mxu0 %v2633
      %2657 = vmatprep.subr.mxu0 0.0
      %2658 = vmatpush1.msra.mxu0 %v2534
      %2659 = vmatprep.subr.mxu0 0.0
      %2660 = vmatpush1.msra.mxu0 %v2533
      %2661 = vmatprep.subr.mxu0 0.0
      %2662 = vmatpush1.msra.mxu0 %v2532
      %2663 = vmatprep.subr.mxu0 0.0
      %2664 = vmatpush1.msra.mxu0 %v2531
      %2665 = vmatprep.subr.mxu0 0.0
      %2666 = vmatpush1.msra.mxu0 %v2530
      %2667 = vmatprep.subr.mxu0 0.0
      %2668 = vmatpush2.msra.mxu0 0.0
      %2669 = vmatprep.subr.mxu0 0.0
      %2670 = vmatpush2.msra.mxu0 0.0
      %2671 = vmatprep.subr.mxu0 0.0
      %2672 = vmatpush2.msra.mxu0 0.0
      %2673 = vmatprep.subr.mxu0 0.0
      %2674 = vmatpush2.msra.mxu0 0.0
      %2675 = vmatprep.subr.mxu0 0.0
      %2676 = vmatpush2.msra.mxu0 0.0
      %2677 = vmatprep.subr.mxu0 0.0
      %2678 = vmatpush2.msra.mxu0 0.0
      %2679 = vmatprep.subr.mxu0 0.0
      %2680 = vmatpush2.msra.mxu0 0.0
      %2681 = vmatprep.subr.mxu0 0.0
      %2682 = vmatpush2.msra.mxu0 0.0
      %2683 = vmatprep.subr.mxu0 0.0
      %2684 = vmatpush2.msra.mxu0 0.0
      %2685 = vmatprep.subr.mxu0 0.0
      %2686 = vmatpush2.msra.mxu0 0.0
      %2687 = vmatprep.subr.mxu0 0.0
      %2688 = vmatpush2.msra.mxu0 0.0
      %2689 = vmatprep.subr.mxu0 0.0
      %2690 = vmatpush2.msra.mxu0 0.0
      %2691 = vmatprep.subr.mxu0 0.0
      %2692 = vmatpush2.msra.mxu0 0.0
      %2693 = vmatprep.subr.mxu0 0.0
      %2694 = vmatpush2.msra.mxu0 0.0
      %2695 = vmatprep.subr.mxu0 0.0
      %2696 = vmatpush2.msra.mxu0 0.0
      %2697 = vmatprep.subr.mxu0 0.0
      %2698 = vmatpush2.msra.mxu0 0.0
      %2699 = vmatprep.mubr.f32.mxu0 0.0
      %2700 = vmatmul.mubr.f32.gmra.mxu0 %v2537
      %v2701 = vpop.f32.mrf.mxu0
      %v2702 = vadd.f32 0.0, %v2701
      %v2703 = vpop.f32.mrf.mxu0
      %2704 = vmatprep.mubr.f32.mxu0 0.0
      %2705 = vmatmul.mubr.f32.gmra.mxu0 %v2540
      %v2706 = vpop.f32.mrf.mxu0
      %v2707 = vadd.f32 0.0, %v2706
      %v2708 = vpop.f32.mrf.mxu0
      %2709 = vmatprep.mubr.f32.mxu0 0.0
      %2710 = vmatmul.mubr.f32.gmra.mxu0 %v2543
      %v2711 = vpop.f32.mrf.mxu0
      %v2712 = vadd.f32 0.0, %v2711
      %v2713 = vpop.f32.mrf.mxu0
      %2714 = vmatprep.mubr.f32.mxu0 0.0
      %2715 = vmatmul.mubr.f32.gmra.mxu0 %v2546
      %v2716 = vpop.f32.mrf.mxu0
      %v2717 = vadd.f32 0.0, %v2716
      %v2718 = vpop.f32.mrf.mxu0
      %2719 = vmatprep.mubr.f32.mxu0 0.0
      %2720 = vmatmul.mubr.f32.gmra.mxu0 %v2549
      %v2721 = vpop.f32.mrf.mxu0
      %v2722 = vadd.f32 0.0, %v2721
      %v2723 = vpop.f32.mrf.mxu0
      %2724 = vmatprep.mubr.f32.mxu0 0.0
      %2725 = vmatmul.mubr.f32.gmra.mxu0 %v2552
      %v2726 = vpop.f32.mrf.mxu0
      %v2727 = vadd.f32 0.0, %v2726
      %v2728 = vpop.f32.mrf.mxu0
      %2729 = vmatprep.mubr.f32.mxu0 0.0
      %2730 = vmatmul.mubr.f32.gmra.mxu0 %v2555
      %v2731 = vpop.f32.mrf.mxu0
      %v2732 = vadd.f32 0.0, %v2731
      %v2733 = vpop.f32.mrf.mxu0
      %2734 = vmatprep.mubr.f32.mxu0 0.0
      %2735 = vmatmul.mubr.f32.gmra.mxu0 %v2558
      %v2736 = vpop.f32.mrf.mxu0
      %v2737 = vadd.f32 0.0, %v2736
      %v2738 = vpop.f32.mrf.mxu0
      %2739 = vmatprep.mubr.f32.mxu0 0.0
      %2740 = vmatmul.mubr.f32.gmra.mxu0 %v2561
      %v2741 = vpop.f32.mrf.mxu0
      %v2742 = vadd.f32 0.0, %v2741
      %v2743 = vpop.f32.mrf.mxu0
      %2744 = vmatprep.mubr.f32.mxu0 0.0
      %2745 = vmatmul.mubr.f32.gmra.mxu0 %v2564
      %v2746 = vpop.f32.mrf.mxu0
      %v2747 = vadd.f32 0.0, %v2746
      %v2748 = vpop.f32.mrf.mxu0
      %2749 = vmatprep.mubr.f32.mxu0 0.0
      %2750 = vmatmul.mubr.f32.gmra.mxu0 %v2567
      %v2751 = vpop.f32.mrf.mxu0
      %v2752 = vadd.f32 0.0, %v2751
      %v2753 = vpop.f32.mrf.mxu0
      %2754 = vmatprep.mubr.f32.mxu0 0.0
      %2755 = vmatmul.mubr.f32.gmra.mxu0 %v2570
      %v2756 = vpop.f32.mrf.mxu0
      %v2757 = vadd.f32 0.0, %v2756
      %v2758 = vpop.f32.mrf.mxu0
      %2759 = vmatprep.mubr.f32.mxu0 0.0
      %2760 = vmatmul.mubr.f32.gmra.mxu0 %v2573
      %v2761 = vpop.f32.mrf.mxu0
      %v2762 = vadd.f32 0.0, %v2761
      %v2763 = vpop.f32.mrf.mxu0
      %2764 = vmatprep.mubr.f32.mxu0 0.0
      %2765 = vmatmul.mubr.f32.gmra.mxu0 %v2576
      %v2766 = vpop.f32.mrf.mxu0
      %v2767 = vadd.f32 0.0, %v2766
      %v2768 = vpop.f32.mrf.mxu0
      %2769 = vmatprep.mubr.f32.mxu0 0.0
      %2770 = vmatmul.mubr.f32.gmra.mxu0 %v2579
      %v2771 = vpop.f32.mrf.mxu0
      %v2772 = vadd.f32 0.0, %v2771
      %v2773 = vpop.f32.mrf.mxu0
      %2774 = vmatprep.mubr.f32.mxu0 0.0
      %2775 = vmatmul.mubr.f32.gmra.mxu0 %v2582
      %v2776 = vpop.f32.mrf.mxu0
      %v2777 = vadd.f32 0.0, %v2776
      %v2778 = vpop.f32.mrf.mxu0
      %2779 = vmatprep.mubr.f32.mxu0 0.0
      %2780 = vmatmul.mubr.f32.gmra.mxu0 %v2585
      %v2781 = vpop.f32.mrf.mxu0
      %v2782 = vadd.f32 0.0, %v2781
      %v2783 = vpop.f32.mrf.mxu0
      %2784 = vmatprep.mubr.f32.mxu0 0.0
      %2785 = vmatmul.mubr.f32.gmra.mxu0 %v2588
      %v2786 = vpop.f32.mrf.mxu0
      %v2787 = vadd.f32 0.0, %v2786
      %v2788 = vpop.f32.mrf.mxu0
      %2789 = vmatprep.mubr.f32.mxu0 0.0
      %2790 = vmatmul.mubr.f32.gmra.mxu0 %v2591
      %v2791 = vpop.f32.mrf.mxu0
      %v2792 = vadd.f32 0.0, %v2791
      %v2793 = vpop.f32.mrf.mxu0
      %2794 = vmatprep.mubr.f32.mxu0 0.0
      %2795 = vmatmul.mubr.f32.gmra.mxu0 %v2594
      %v2796 = vpop.f32.mrf.mxu0
      %v2797 = vadd.f32 0.0, %v2796
      %v2798 = vpop.f32.mrf.mxu0
      %2799 = vmatprep.mubr.f32.mxu0 0.0
      %2800 = vmatmul.mubr.f32.gmra.mxu0 %v2597
      %v2801 = vpop.f32.mrf.mxu0
      %v2802 = vadd.f32 0.0, %v2801
      %v2803 = vpop.f32.mrf.mxu0
      %2804 = vmatprep.mubr.f32.mxu0 0.0
      %2805 = vmatmul.mubr.f32.gmra.mxu0 %v2600
      %v2806 = vpop.f32.mrf.mxu0
      %v2807 = vadd.f32 0.0, %v2806
      %v2808 = vpop.f32.mrf.mxu0
      %2809 = vmatprep.mubr.f32.mxu0 0.0
      %2810 = vmatmul.mubr.f32.gmra.mxu0 %v2603
      %v2811 = vpop.f32.mrf.mxu0
      %v2812 = vadd.f32 0.0, %v2811
      %v2813 = vpop.f32.mrf.mxu0
      %2814 = vmatprep.mubr.f32.mxu0 0.0
      %2815 = vmatmul.mubr.f32.gmra.mxu0 %v2606
      %v2816 = vpop.f32.mrf.mxu0
      %v2817 = vadd.f32 0.0, %v2816
      %v2818 = vpop.f32.mrf.mxu0
      %2819 = vmatprep.mubr.f32.mxu0 0.0
      %2820 = vmatmul.mubr.f32.gmra.mxu0 %v2609
      %v2821 = vpop.f32.mrf.mxu0
      %v2822 = vadd.f32 0.0, %v2821
      %v2823 = vpop.f32.mrf.mxu0
      %2824 = vmatprep.mubr.f32.mxu0 0.0
      %2825 = vmatmul.mubr.f32.gmra.mxu0 %v2612
      %v2826 = vpop.f32.mrf.mxu0
      %v2827 = vadd.f32 0.0, %v2826
      %v2828 = vpop.f32.mrf.mxu0
      %2829 = vmatprep.mubr.f32.mxu0 0.0
      %2830 = vmatmul.mubr.f32.gmra.mxu0 %v2615
      %v2831 = vpop.f32.mrf.mxu0
      %v2832 = vadd.f32 0.0, %v2831
      %v2833 = vpop.f32.mrf.mxu0
      %2834 = vmatprep.mubr.f32.mxu0 0.0
      %2835 = vmatmul.mubr.f32.gmra.mxu0 %v2618
      %v2836 = vpop.f32.mrf.mxu0
      %v2837 = vadd.f32 0.0, %v2836
      %v2838 = vpop.f32.mrf.mxu0
      %2839 = vmatprep.mubr.f32.mxu0 0.0
      %2840 = vmatmul.mubr.f32.gmra.mxu0 %v2621
      %v2841 = vpop.f32.mrf.mxu0
      %v2842 = vadd.f32 0.0, %v2841
      %v2843 = vpop.f32.mrf.mxu0
      %2844 = vmatprep.mubr.f32.mxu0 0.0
      %2845 = vmatmul.mubr.f32.gmra.mxu0 %v2624
      %v2846 = vpop.f32.mrf.mxu0
      %v2847 = vadd.f32 0.0, %v2846
      %v2848 = vpop.f32.mrf.mxu0
      %2849 = vmatprep.mubr.f32.mxu0 0.0
      %2850 = vmatmul.mubr.f32.gmra.mxu0 %v2627
      %v2851 = vpop.f32.mrf.mxu0
      %v2852 = vadd.f32 0.0, %v2851
      %v2853 = vpop.f32.mrf.mxu0
      %2854 = vmatprep.mubr.f32.mxu0 0.0
      %2855 = vmatmul.mubr.f32.gmra.mxu0 %v2630
      %v2856 = vpop.f32.mrf.mxu0
      %v2857 = vadd.f32 0.0, %v2856
      %v2858 = vpop.f32.mrf.mxu0
      %2859 = vdwg.mxu0
      %v2860 = vadd.f32 %v2463, %v2702
      %v2861 = vadd.f32 %v2464, %v2707
      %v2862 = vadd.f32 %v2465, %v2712
      %v2863 = vadd.f32 %v2466, %v2717
      %v2864 = vadd.f32 %v2467, %v2722
      %v2865 = vadd.f32 %v2468, %v2727
      %v2866 = vadd.f32 %v2469, %v2732
      %v2867 = vadd.f32 %v2470, %v2737
      %v2868 = vadd.f32 %v2471, %v2742
      %v2869 = vadd.f32 %v2472, %v2747
      %v2870 = vadd.f32 %v2473, %v2752
      %v2871 = vadd.f32 %v2474, %v2757
      %v2872 = vadd.f32 %v2475, %v2762
      %v2873 = vadd.f32 %v2476, %v2767
      %v2874 = vadd.f32 %v2477, %v2772
      %v2875 = vadd.f32 %v2478, %v2777
      %v2876 = vadd.f32 %v2479, %v2782
      %v2877 = vadd.f32 %v2480, %v2787
      %v2878 = vadd.f32 %v2481, %v2792
      %v2879 = vadd.f32 %v2482, %v2797
      %v2880 = vadd.f32 %v2483, %v2802
      %v2881 = vadd.f32 %v2484, %v2807
      %v2882 = vadd.f32 %v2485, %v2812
      %v2883 = vadd.f32 %v2486, %v2817
      %v2884 = vadd.f32 %v2487, %v2822
      %v2885 = vadd.f32 %v2488, %v2827
      %v2886 = vadd.f32 %v2489, %v2832
      %v2887 = vadd.f32 %v2490, %v2837
      %v2888 = vadd.f32 %v2491, %v2842
      %v2889 = vadd.f32 %v2492, %v2847
      %v2890 = vadd.f32 %v2493, %v2852
      %v2891 = vadd.f32 %v2494, %v2857
      %s2892 = sadd.s32 %s176, 182
      %s2893 = scalar_lea.vmem %s0, %s2892
      %v2894 = vld [vmem:[%s2893] sm:$0xff]
      %v2895 = vld [vmem:[%s2893 + $0x8] sm:$0xff]
      %v2896 = vld [vmem:[%s2893 + $0x10] sm:$0xff]
      %v2897 = vld [vmem:[%s2893 + $0x18] sm:$0xff]
      %v2898 = vld [vmem:[%s2893 + $0x20] sm:$0xff]
      %v2899 = vld [vmem:[%s2893 + $0x28] sm:$0xff]
      %v2900 = vld [vmem:[%s2893 + $0x30] sm:$0xff]
      %v2901 = vld [vmem:[%s2893 + $0x38] sm:$0xff]
      %v2902 = vld [vmem:[%s2893 + $0x40] sm:$0xff]
      %v2903 = vld [vmem:[%s2893 + $0x48] sm:$0xff]
      %v2904 = vld [vmem:[%s2893 + $0x50] sm:$0xff]
      %v2905 = vld [vmem:[%s2893 + $0x58] sm:$0xff]
      %v2906 = vld [vmem:[%s2893 + $0x60] sm:$0xff]
      %v2907 = vld [vmem:[%s2893 + $0x68] sm:$0xff]
      %v2908 = vld [vmem:[%s2893 + $0x70] sm:$0xff]
      %v2909 = vld [vmem:[%s2893 + $0x78] sm:$0xff]
      %v2910 = vld [vmem:[%s2893 + $0x80] sm:$0xff]
      %v2911 = vld [vmem:[%s2893 + $0x88] sm:$0xff]
      %v2912 = vld [vmem:[%s2893 + $0x90] sm:$0xff]
      %v2913 = vld [vmem:[%s2893 + $0x98] sm:$0xff]
      %v2914 = vld [vmem:[%s2893 + $0xa0] sm:$0xff]
      %v2915 = vld [vmem:[%s2893 + $0xa8] sm:$0xff]
      %v2916 = vld [vmem:[%s2893 + $0xb0] sm:$0xff]
      %v2917 = vld [vmem:[%s2893 + $0xb8] sm:$0xff]
      %v2918 = vld [vmem:[%s2893 + $0xc0] sm:$0xff]
      %v2919 = vld [vmem:[%s2893 + $0xc8] sm:$0xff]
      %v2920 = vld [vmem:[%s2893 + $0xd0] sm:$0xff]
      %v2921 = vld [vmem:[%s2893 + $0xd8] sm:$0xff]
      %v2922 = vld [vmem:[%s2893 + $0xe0] sm:$0xff]
      %v2923 = vld [vmem:[%s2893 + $0xe8] sm:$0xff]
      %v2924 = vld [vmem:[%s2893 + $0xf0] sm:$0xff]
      %v2925 = vld [vmem:[%s2893 + $0xf8] sm:$0xff]
      %s2926 = scalar_lea.vmem %s1, 336
      %v2927 = vld [vmem:[%s2926] sm:$0xff]
      %v2928 = vld [vmem:[%s2926 + $0x8] sm:$0xff]
      %v2929 = vld [vmem:[%s2926 + $0x10] sm:$0xff]
      %v2930 = vld [vmem:[%s2926 + $0x18] sm:$0xff]
      %v2931 = vld [vmem:[%s2926 + $0x20] sm:$0xff]
      %v2932 = vld [vmem:[%s2926 + $0x28] sm:$0xf]
      %v2934 = vsel %vm257, %v2894, 0
      %v2937 = vsel %vm257, %v2895, 0
      %v2940 = vsel %vm257, %v2896, 0
      %v2943 = vsel %vm257, %v2897, 0
      %v2946 = vsel %vm257, %v2898, 0
      %v2949 = vsel %vm257, %v2899, 0
      %v2952 = vsel %vm257, %v2900, 0
      %v2955 = vsel %vm257, %v2901, 0
      %v2958 = vsel %vm257, %v2902, 0
      %v2961 = vsel %vm257, %v2903, 0
      %v2964 = vsel %vm257, %v2904, 0
      %v2967 = vsel %vm257, %v2905, 0
      %v2970 = vsel %vm257, %v2906, 0
      %v2973 = vsel %vm257, %v2907, 0
      %v2976 = vsel %vm257, %v2908, 0
      %v2979 = vsel %vm257, %v2909, 0
      %v2982 = vsel %vm257, %v2910, 0
      %v2985 = vsel %vm257, %v2911, 0
      %v2988 = vsel %vm257, %v2912, 0
      %v2991 = vsel %vm257, %v2913, 0
      %v2994 = vsel %vm257, %v2914, 0
      %v2997 = vsel %vm257, %v2915, 0
      %v3000 = vsel %vm257, %v2916, 0
      %v3003 = vsel %vm257, %v2917, 0
      %v3006 = vsel %vm257, %v2918, 0
      %v3009 = vsel %vm257, %v2919, 0
      %v3012 = vsel %vm257, %v2920, 0
      %v3015 = vsel %vm257, %v2921, 0
      %v3018 = vsel %vm257, %v2922, 0
      %v3021 = vsel %vm257, %v2923, 0
      %v3024 = vsel %vm257, %v2924, 0
      %v3027 = vsel %vm257, %v2925, 0
      %v3030 = vsel %vm354, %v2932, 0
      %3032 = vmatprep.subr.mxu0 0.0
      %3033 = vmatpush1.msra.mxu0 0.0
      %3034 = vmatprep.subr.mxu0 0.0
      %3035 = vmatpush1.msra.mxu0 0.0
      %3036 = vmatprep.subr.mxu0 0.0
      %3037 = vmatpush1.msra.mxu0 0.0
      %3038 = vmatprep.subr.mxu0 0.0
      %3039 = vmatpush1.msra.mxu0 0.0
      %3040 = vmatprep.subr.mxu0 0.0
      %3041 = vmatpush1.msra.mxu0 0.0
      %3042 = vmatprep.subr.mxu0 0.0
      %3043 = vmatpush1.msra.mxu0 0.0
      %3044 = vmatprep.subr.mxu0 0.0
      %3045 = vmatpush1.msra.mxu0 0.0
      %3046 = vmatprep.subr.mxu0 0.0
      %3047 = vmatpush1.msra.mxu0 0.0
      %3048 = vmatprep.subr.mxu0 0.0
      %3049 = vmatpush1.msra.mxu0 0.0
      %3050 = vmatprep.subr.mxu0 0.0
      %3051 = vmatpush1.msra.mxu0 0.0
      %3052 = vmatprep.subr.mxu0 0.0
      %3053 = vmatpush1.msra.mxu0 %v3030
      %3054 = vmatprep.subr.mxu0 0.0
      %3055 = vmatpush1.msra.mxu0 %v2931
      %3056 = vmatprep.subr.mxu0 0.0
      %3057 = vmatpush1.msra.mxu0 %v2930
      %3058 = vmatprep.subr.mxu0 0.0
      %3059 = vmatpush1.msra.mxu0 %v2929
      %3060 = vmatprep.subr.mxu0 0.0
      %3061 = vmatpush1.msra.mxu0 %v2928
      %3062 = vmatprep.subr.mxu0 0.0
      %3063 = vmatpush1.msra.mxu0 %v2927
      %3064 = vmatprep.subr.mxu0 0.0
      %3065 = vmatpush2.msra.mxu0 0.0
      %3066 = vmatprep.subr.mxu0 0.0
      %3067 = vmatpush2.msra.mxu0 0.0
      %3068 = vmatprep.subr.mxu0 0.0
      %3069 = vmatpush2.msra.mxu0 0.0
      %3070 = vmatprep.subr.mxu0 0.0
      %3071 = vmatpush2.msra.mxu0 0.0
      %3072 = vmatprep.subr.mxu0 0.0
      %3073 = vmatpush2.msra.mxu0 0.0
      %3074 = vmatprep.subr.mxu0 0.0
      %3075 = vmatpush2.msra.mxu0 0.0
      %3076 = vmatprep.subr.mxu0 0.0
      %3077 = vmatpush2.msra.mxu0 0.0
      %3078 = vmatprep.subr.mxu0 0.0
      %3079 = vmatpush2.msra.mxu0 0.0
      %3080 = vmatprep.subr.mxu0 0.0
      %3081 = vmatpush2.msra.mxu0 0.0
      %3082 = vmatprep.subr.mxu0 0.0
      %3083 = vmatpush2.msra.mxu0 0.0
      %3084 = vmatprep.subr.mxu0 0.0
      %3085 = vmatpush2.msra.mxu0 0.0
      %3086 = vmatprep.subr.mxu0 0.0
      %3087 = vmatpush2.msra.mxu0 0.0
      %3088 = vmatprep.subr.mxu0 0.0
      %3089 = vmatpush2.msra.mxu0 0.0
      %3090 = vmatprep.subr.mxu0 0.0
      %3091 = vmatpush2.msra.mxu0 0.0
      %3092 = vmatprep.subr.mxu0 0.0
      %3093 = vmatpush2.msra.mxu0 0.0
      %3094 = vmatprep.subr.mxu0 0.0
      %3095 = vmatpush2.msra.mxu0 0.0
      %3096 = vmatprep.mubr.f32.mxu0 0.0
      %3097 = vmatmul.mubr.f32.gmra.mxu0 %v2934
      %v3098 = vpop.f32.mrf.mxu0
      %v3099 = vadd.f32 0.0, %v3098
      %v3100 = vpop.f32.mrf.mxu0
      %3101 = vmatprep.mubr.f32.mxu0 0.0
      %3102 = vmatmul.mubr.f32.gmra.mxu0 %v2937
      %v3103 = vpop.f32.mrf.mxu0
      %v3104 = vadd.f32 0.0, %v3103
      %v3105 = vpop.f32.mrf.mxu0
      %3106 = vmatprep.mubr.f32.mxu0 0.0
      %3107 = vmatmul.mubr.f32.gmra.mxu0 %v2940
      %v3108 = vpop.f32.mrf.mxu0
      %v3109 = vadd.f32 0.0, %v3108
      %v3110 = vpop.f32.mrf.mxu0
      %3111 = vmatprep.mubr.f32.mxu0 0.0
      %3112 = vmatmul.mubr.f32.gmra.mxu0 %v2943
      %v3113 = vpop.f32.mrf.mxu0
      %v3114 = vadd.f32 0.0, %v3113
      %v3115 = vpop.f32.mrf.mxu0
      %3116 = vmatprep.mubr.f32.mxu0 0.0
      %3117 = vmatmul.mubr.f32.gmra.mxu0 %v2946
      %v3118 = vpop.f32.mrf.mxu0
      %v3119 = vadd.f32 0.0, %v3118
      %v3120 = vpop.f32.mrf.mxu0
      %3121 = vmatprep.mubr.f32.mxu0 0.0
      %3122 = vmatmul.mubr.f32.gmra.mxu0 %v2949
      %v3123 = vpop.f32.mrf.mxu0
      %v3124 = vadd.f32 0.0, %v3123
      %v3125 = vpop.f32.mrf.mxu0
      %3126 = vmatprep.mubr.f32.mxu0 0.0
      %3127 = vmatmul.mubr.f32.gmra.mxu0 %v2952
      %v3128 = vpop.f32.mrf.mxu0
      %v3129 = vadd.f32 0.0, %v3128
      %v3130 = vpop.f32.mrf.mxu0
      %3131 = vmatprep.mubr.f32.mxu0 0.0
      %3132 = vmatmul.mubr.f32.gmra.mxu0 %v2955
      %v3133 = vpop.f32.mrf.mxu0
      %v3134 = vadd.f32 0.0, %v3133
      %v3135 = vpop.f32.mrf.mxu0
      %3136 = vmatprep.mubr.f32.mxu0 0.0
      %3137 = vmatmul.mubr.f32.gmra.mxu0 %v2958
      %v3138 = vpop.f32.mrf.mxu0
      %v3139 = vadd.f32 0.0, %v3138
      %v3140 = vpop.f32.mrf.mxu0
      %3141 = vmatprep.mubr.f32.mxu0 0.0
      %3142 = vmatmul.mubr.f32.gmra.mxu0 %v2961
      %v3143 = vpop.f32.mrf.mxu0
      %v3144 = vadd.f32 0.0, %v3143
      %v3145 = vpop.f32.mrf.mxu0
      %3146 = vmatprep.mubr.f32.mxu0 0.0
      %3147 = vmatmul.mubr.f32.gmra.mxu0 %v2964
      %v3148 = vpop.f32.mrf.mxu0
      %v3149 = vadd.f32 0.0, %v3148
      %v3150 = vpop.f32.mrf.mxu0
      %3151 = vmatprep.mubr.f32.mxu0 0.0
      %3152 = vmatmul.mubr.f32.gmra.mxu0 %v2967
      %v3153 = vpop.f32.mrf.mxu0
      %v3154 = vadd.f32 0.0, %v3153
      %v3155 = vpop.f32.mrf.mxu0
      %3156 = vmatprep.mubr.f32.mxu0 0.0
      %3157 = vmatmul.mubr.f32.gmra.mxu0 %v2970
      %v3158 = vpop.f32.mrf.mxu0
      %v3159 = vadd.f32 0.0, %v3158
      %v3160 = vpop.f32.mrf.mxu0
      %3161 = vmatprep.mubr.f32.mxu0 0.0
      %3162 = vmatmul.mubr.f32.gmra.mxu0 %v2973
      %v3163 = vpop.f32.mrf.mxu0
      %v3164 = vadd.f32 0.0, %v3163
      %v3165 = vpop.f32.mrf.mxu0
      %3166 = vmatprep.mubr.f32.mxu0 0.0
      %3167 = vmatmul.mubr.f32.gmra.mxu0 %v2976
      %v3168 = vpop.f32.mrf.mxu0
      %v3169 = vadd.f32 0.0, %v3168
      %v3170 = vpop.f32.mrf.mxu0
      %3171 = vmatprep.mubr.f32.mxu0 0.0
      %3172 = vmatmul.mubr.f32.gmra.mxu0 %v2979
      %v3173 = vpop.f32.mrf.mxu0
      %v3174 = vadd.f32 0.0, %v3173
      %v3175 = vpop.f32.mrf.mxu0
      %3176 = vmatprep.mubr.f32.mxu0 0.0
      %3177 = vmatmul.mubr.f32.gmra.mxu0 %v2982
      %v3178 = vpop.f32.mrf.mxu0
      %v3179 = vadd.f32 0.0, %v3178
      %v3180 = vpop.f32.mrf.mxu0
      %3181 = vmatprep.mubr.f32.mxu0 0.0
      %3182 = vmatmul.mubr.f32.gmra.mxu0 %v2985
      %v3183 = vpop.f32.mrf.mxu0
      %v3184 = vadd.f32 0.0, %v3183
      %v3185 = vpop.f32.mrf.mxu0
      %3186 = vmatprep.mubr.f32.mxu0 0.0
      %3187 = vmatmul.mubr.f32.gmra.mxu0 %v2988
      %v3188 = vpop.f32.mrf.mxu0
      %v3189 = vadd.f32 0.0, %v3188
      %v3190 = vpop.f32.mrf.mxu0
      %3191 = vmatprep.mubr.f32.mxu0 0.0
      %3192 = vmatmul.mubr.f32.gmra.mxu0 %v2991
      %v3193 = vpop.f32.mrf.mxu0
      %v3194 = vadd.f32 0.0, %v3193
      %v3195 = vpop.f32.mrf.mxu0
      %3196 = vmatprep.mubr.f32.mxu0 0.0
      %3197 = vmatmul.mubr.f32.gmra.mxu0 %v2994
      %v3198 = vpop.f32.mrf.mxu0
      %v3199 = vadd.f32 0.0, %v3198
      %v3200 = vpop.f32.mrf.mxu0
      %3201 = vmatprep.mubr.f32.mxu0 0.0
      %3202 = vmatmul.mubr.f32.gmra.mxu0 %v2997
      %v3203 = vpop.f32.mrf.mxu0
      %v3204 = vadd.f32 0.0, %v3203
      %v3205 = vpop.f32.mrf.mxu0
      %3206 = vmatprep.mubr.f32.mxu0 0.0
      %3207 = vmatmul.mubr.f32.gmra.mxu0 %v3000
      %v3208 = vpop.f32.mrf.mxu0
      %v3209 = vadd.f32 0.0, %v3208
      %v3210 = vpop.f32.mrf.mxu0
      %3211 = vmatprep.mubr.f32.mxu0 0.0
      %3212 = vmatmul.mubr.f32.gmra.mxu0 %v3003
      %v3213 = vpop.f32.mrf.mxu0
      %v3214 = vadd.f32 0.0, %v3213
      %v3215 = vpop.f32.mrf.mxu0
      %3216 = vmatprep.mubr.f32.mxu0 0.0
      %3217 = vmatmul.mubr.f32.gmra.mxu0 %v3006
      %v3218 = vpop.f32.mrf.mxu0
      %v3219 = vadd.f32 0.0, %v3218
      %v3220 = vpop.f32.mrf.mxu0
      %3221 = vmatprep.mubr.f32.mxu0 0.0
      %3222 = vmatmul.mubr.f32.gmra.mxu0 %v3009
      %v3223 = vpop.f32.mrf.mxu0
      %v3224 = vadd.f32 0.0, %v3223
      %v3225 = vpop.f32.mrf.mxu0
      %3226 = vmatprep.mubr.f32.mxu0 0.0
      %3227 = vmatmul.mubr.f32.gmra.mxu0 %v3012
      %v3228 = vpop.f32.mrf.mxu0
      %v3229 = vadd.f32 0.0, %v3228
      %v3230 = vpop.f32.mrf.mxu0
      %3231 = vmatprep.mubr.f32.mxu0 0.0
      %3232 = vmatmul.mubr.f32.gmra.mxu0 %v3015
      %v3233 = vpop.f32.mrf.mxu0
      %v3234 = vadd.f32 0.0, %v3233
      %v3235 = vpop.f32.mrf.mxu0
      %3236 = vmatprep.mubr.f32.mxu0 0.0
      %3237 = vmatmul.mubr.f32.gmra.mxu0 %v3018
      %v3238 = vpop.f32.mrf.mxu0
      %v3239 = vadd.f32 0.0, %v3238
      %v3240 = vpop.f32.mrf.mxu0
      %3241 = vmatprep.mubr.f32.mxu0 0.0
      %3242 = vmatmul.mubr.f32.gmra.mxu0 %v3021
      %v3243 = vpop.f32.mrf.mxu0
      %v3244 = vadd.f32 0.0, %v3243
      %v3245 = vpop.f32.mrf.mxu0
      %3246 = vmatprep.mubr.f32.mxu0 0.0
      %3247 = vmatmul.mubr.f32.gmra.mxu0 %v3024
      %v3248 = vpop.f32.mrf.mxu0
      %v3249 = vadd.f32 0.0, %v3248
      %v3250 = vpop.f32.mrf.mxu0
      %3251 = vmatprep.mubr.f32.mxu0 0.0
      %3252 = vmatmul.mubr.f32.gmra.mxu0 %v3027
      %v3253 = vpop.f32.mrf.mxu0
      %v3254 = vadd.f32 0.0, %v3253
      %v3255 = vpop.f32.mrf.mxu0
      %3256 = vdwg.mxu0
      %v3257 = vadd.f32 %v2860, %v3099
      %v3258 = vadd.f32 %v2861, %v3104
      %v3259 = vadd.f32 %v2862, %v3109
      %v3260 = vadd.f32 %v2863, %v3114
      %v3261 = vadd.f32 %v2864, %v3119
      %v3262 = vadd.f32 %v2865, %v3124
      %v3263 = vadd.f32 %v2866, %v3129
      %v3264 = vadd.f32 %v2867, %v3134
      %v3265 = vadd.f32 %v2868, %v3139
      %v3266 = vadd.f32 %v2869, %v3144
      %v3267 = vadd.f32 %v2870, %v3149
      %v3268 = vadd.f32 %v2871, %v3154
      %v3269 = vadd.f32 %v2872, %v3159
      %v3270 = vadd.f32 %v2873, %v3164
      %v3271 = vadd.f32 %v2874, %v3169
      %v3272 = vadd.f32 %v2875, %v3174
      %v3273 = vadd.f32 %v2876, %v3179
      %v3274 = vadd.f32 %v2877, %v3184
      %v3275 = vadd.f32 %v2878, %v3189
      %v3276 = vadd.f32 %v2879, %v3194
      %v3277 = vadd.f32 %v2880, %v3199
      %v3278 = vadd.f32 %v2881, %v3204
      %v3279 = vadd.f32 %v2882, %v3209
      %v3280 = vadd.f32 %v2883, %v3214
      %v3281 = vadd.f32 %v2884, %v3219
      %v3282 = vadd.f32 %v2885, %v3224
      %v3283 = vadd.f32 %v2886, %v3229
      %v3284 = vadd.f32 %v2887, %v3234
      %v3285 = vadd.f32 %v2888, %v3239
      %v3286 = vadd.f32 %v2889, %v3244
      %v3287 = vadd.f32 %v2890, %v3249
      %v3288 = vadd.f32 %v2891, %v3254
      %s3289 = sadd.s32 %s176, 208
      %s3290 = scalar_lea.vmem %s0, %s3289
      %v3291 = vld [vmem:[%s3290] sm:$0xff]
      %v3292 = vld [vmem:[%s3290 + $0x8] sm:$0xff]
      %v3293 = vld [vmem:[%s3290 + $0x10] sm:$0xff]
      %v3294 = vld [vmem:[%s3290 + $0x18] sm:$0xff]
      %v3295 = vld [vmem:[%s3290 + $0x20] sm:$0xff]
      %v3296 = vld [vmem:[%s3290 + $0x28] sm:$0xff]
      %v3297 = vld [vmem:[%s3290 + $0x30] sm:$0xff]
      %v3298 = vld [vmem:[%s3290 + $0x38] sm:$0xff]
      %v3299 = vld [vmem:[%s3290 + $0x40] sm:$0xff]
      %v3300 = vld [vmem:[%s3290 + $0x48] sm:$0xff]
      %v3301 = vld [vmem:[%s3290 + $0x50] sm:$0xff]
      %v3302 = vld [vmem:[%s3290 + $0x58] sm:$0xff]
      %v3303 = vld [vmem:[%s3290 + $0x60] sm:$0xff]
      %v3304 = vld [vmem:[%s3290 + $0x68] sm:$0xff]
      %v3305 = vld [vmem:[%s3290 + $0x70] sm:$0xff]
      %v3306 = vld [vmem:[%s3290 + $0x78] sm:$0xff]
      %v3307 = vld [vmem:[%s3290 + $0x80] sm:$0xff]
      %v3308 = vld [vmem:[%s3290 + $0x88] sm:$0xff]
      %v3309 = vld [vmem:[%s3290 + $0x90] sm:$0xff]
      %v3310 = vld [vmem:[%s3290 + $0x98] sm:$0xff]
      %v3311 = vld [vmem:[%s3290 + $0xa0] sm:$0xff]
      %v3312 = vld [vmem:[%s3290 + $0xa8] sm:$0xff]
      %v3313 = vld [vmem:[%s3290 + $0xb0] sm:$0xff]
      %v3314 = vld [vmem:[%s3290 + $0xb8] sm:$0xff]
      %v3315 = vld [vmem:[%s3290 + $0xc0] sm:$0xff]
      %v3316 = vld [vmem:[%s3290 + $0xc8] sm:$0xff]
      %v3317 = vld [vmem:[%s3290 + $0xd0] sm:$0xff]
      %v3318 = vld [vmem:[%s3290 + $0xd8] sm:$0xff]
      %v3319 = vld [vmem:[%s3290 + $0xe0] sm:$0xff]
      %v3320 = vld [vmem:[%s3290 + $0xe8] sm:$0xff]
      %v3321 = vld [vmem:[%s3290 + $0xf0] sm:$0xff]
      %v3322 = vld [vmem:[%s3290 + $0xf8] sm:$0xff]
      %s3323 = scalar_lea.vmem %s1, 384
      %v3324 = vld [vmem:[%s3323] sm:$0xff]
      %v3325 = vld [vmem:[%s3323 + $0x8] sm:$0xff]
      %v3326 = vld [vmem:[%s3323 + $0x10] sm:$0xff]
      %v3327 = vld [vmem:[%s3323 + $0x18] sm:$0xff]
      %v3328 = vld [vmem:[%s3323 + $0x20] sm:$0xff]
      %v3329 = vld [vmem:[%s3323 + $0x28] sm:$0xf]
      %v3331 = vsel %vm257, %v3291, 0
      %v3334 = vsel %vm257, %v3292, 0
      %v3337 = vsel %vm257, %v3293, 0
      %v3340 = vsel %vm257, %v3294, 0
      %v3343 = vsel %vm257, %v3295, 0
      %v3346 = vsel %vm257, %v3296, 0
      %v3349 = vsel %vm257, %v3297, 0
      %v3352 = vsel %vm257, %v3298, 0
      %v3355 = vsel %vm257, %v3299, 0
      %v3358 = vsel %vm257, %v3300, 0
      %v3361 = vsel %vm257, %v3301, 0
      %v3364 = vsel %vm257, %v3302, 0
      %v3367 = vsel %vm257, %v3303, 0
      %v3370 = vsel %vm257, %v3304, 0
      %v3373 = vsel %vm257, %v3305, 0
      %v3376 = vsel %vm257, %v3306, 0
      %v3379 = vsel %vm257, %v3307, 0
      %v3382 = vsel %vm257, %v3308, 0
      %v3385 = vsel %vm257, %v3309, 0
      %v3388 = vsel %vm257, %v3310, 0
      %v3391 = vsel %vm257, %v3311, 0
      %v3394 = vsel %vm257, %v3312, 0
      %v3397 = vsel %vm257, %v3313, 0
      %v3400 = vsel %vm257, %v3314, 0
      %v3403 = vsel %vm257, %v3315, 0
      %v3406 = vsel %vm257, %v3316, 0
      %v3409 = vsel %vm257, %v3317, 0
      %v3412 = vsel %vm257, %v3318, 0
      %v3415 = vsel %vm257, %v3319, 0
      %v3418 = vsel %vm257, %v3320, 0
      %v3421 = vsel %vm257, %v3321, 0
      %v3424 = vsel %vm257, %v3322, 0
      %v3427 = vsel %vm354, %v3329, 0
      %3429 = vmatprep.subr.mxu0 0.0
      %3430 = vmatpush1.msra.mxu0 0.0
      %3431 = vmatprep.subr.mxu0 0.0
      %3432 = vmatpush1.msra.mxu0 0.0
      %3433 = vmatprep.subr.mxu0 0.0
      %3434 = vmatpush1.msra.mxu0 0.0
      %3435 = vmatprep.subr.mxu0 0.0
      %3436 = vmatpush1.msra.mxu0 0.0
      %3437 = vmatprep.subr.mxu0 0.0
      %3438 = vmatpush1.msra.mxu0 0.0
      %3439 = vmatprep.subr.mxu0 0.0
      %3440 = vmatpush1.msra.mxu0 0.0
      %3441 = vmatprep.subr.mxu0 0.0
      %3442 = vmatpush1.msra.mxu0 0.0
      %3443 = vmatprep.subr.mxu0 0.0
      %3444 = vmatpush1.msra.mxu0 0.0
      %3445 = vmatprep.subr.mxu0 0.0
      %3446 = vmatpush1.msra.mxu0 0.0
      %3447 = vmatprep.subr.mxu0 0.0
      %3448 = vmatpush1.msra.mxu0 0.0
      %3449 = vmatprep.subr.mxu0 0.0
      %3450 = vmatpush1.msra.mxu0 %v3427
      %3451 = vmatprep.subr.mxu0 0.0
      %3452 = vmatpush1.msra.mxu0 %v3328
      %3453 = vmatprep.subr.mxu0 0.0
      %3454 = vmatpush1.msra.mxu0 %v3327
      %3455 = vmatprep.subr.mxu0 0.0
      %3456 = vmatpush1.msra.mxu0 %v3326
      %3457 = vmatprep.subr.mxu0 0.0
      %3458 = vmatpush1.msra.mxu0 %v3325
      %3459 = vmatprep.subr.mxu0 0.0
      %3460 = vmatpush1.msra.mxu0 %v3324
      %3461 = vmatprep.subr.mxu0 0.0
      %3462 = vmatpush2.msra.mxu0 0.0
      %3463 = vmatprep.subr.mxu0 0.0
      %3464 = vmatpush2.msra.mxu0 0.0
      %3465 = vmatprep.subr.mxu0 0.0
      %3466 = vmatpush2.msra.mxu0 0.0
      %3467 = vmatprep.subr.mxu0 0.0
      %3468 = vmatpush2.msra.mxu0 0.0
      %3469 = vmatprep.subr.mxu0 0.0
      %3470 = vmatpush2.msra.mxu0 0.0
      %3471 = vmatprep.subr.mxu0 0.0
      %3472 = vmatpush2.msra.mxu0 0.0
      %3473 = vmatprep.subr.mxu0 0.0
      %3474 = vmatpush2.msra.mxu0 0.0
      %3475 = vmatprep.subr.mxu0 0.0
      %3476 = vmatpush2.msra.mxu0 0.0
      %3477 = vmatprep.subr.mxu0 0.0
      %3478 = vmatpush2.msra.mxu0 0.0
      %3479 = vmatprep.subr.mxu0 0.0
      %3480 = vmatpush2.msra.mxu0 0.0
      %3481 = vmatprep.subr.mxu0 0.0
      %3482 = vmatpush2.msra.mxu0 0.0
      %3483 = vmatprep.subr.mxu0 0.0
      %3484 = vmatpush2.msra.mxu0 0.0
      %3485 = vmatprep.subr.mxu0 0.0
      %3486 = vmatpush2.msra.mxu0 0.0
      %3487 = vmatprep.subr.mxu0 0.0
      %3488 = vmatpush2.msra.mxu0 0.0
      %3489 = vmatprep.subr.mxu0 0.0
      %3490 = vmatpush2.msra.mxu0 0.0
      %3491 = vmatprep.subr.mxu0 0.0
      %3492 = vmatpush2.msra.mxu0 0.0
      %3493 = vmatprep.mubr.f32.mxu0 0.0
      %3494 = vmatmul.mubr.f32.gmra.mxu0 %v3331
      %v3495 = vpop.f32.mrf.mxu0
      %v3496 = vadd.f32 0.0, %v3495
      %v3497 = vpop.f32.mrf.mxu0
      %3498 = vmatprep.mubr.f32.mxu0 0.0
      %3499 = vmatmul.mubr.f32.gmra.mxu0 %v3334
      %v3500 = vpop.f32.mrf.mxu0
      %v3501 = vadd.f32 0.0, %v3500
      %v3502 = vpop.f32.mrf.mxu0
      %3503 = vmatprep.mubr.f32.mxu0 0.0
      %3504 = vmatmul.mubr.f32.gmra.mxu0 %v3337
      %v3505 = vpop.f32.mrf.mxu0
      %v3506 = vadd.f32 0.0, %v3505
      %v3507 = vpop.f32.mrf.mxu0
      %3508 = vmatprep.mubr.f32.mxu0 0.0
      %3509 = vmatmul.mubr.f32.gmra.mxu0 %v3340
      %v3510 = vpop.f32.mrf.mxu0
      %v3511 = vadd.f32 0.0, %v3510
      %v3512 = vpop.f32.mrf.mxu0
      %3513 = vmatprep.mubr.f32.mxu0 0.0
      %3514 = vmatmul.mubr.f32.gmra.mxu0 %v3343
      %v3515 = vpop.f32.mrf.mxu0
      %v3516 = vadd.f32 0.0, %v3515
      %v3517 = vpop.f32.mrf.mxu0
      %3518 = vmatprep.mubr.f32.mxu0 0.0
      %3519 = vmatmul.mubr.f32.gmra.mxu0 %v3346
      %v3520 = vpop.f32.mrf.mxu0
      %v3521 = vadd.f32 0.0, %v3520
      %v3522 = vpop.f32.mrf.mxu0
      %3523 = vmatprep.mubr.f32.mxu0 0.0
      %3524 = vmatmul.mubr.f32.gmra.mxu0 %v3349
      %v3525 = vpop.f32.mrf.mxu0
      %v3526 = vadd.f32 0.0, %v3525
      %v3527 = vpop.f32.mrf.mxu0
      %3528 = vmatprep.mubr.f32.mxu0 0.0
      %3529 = vmatmul.mubr.f32.gmra.mxu0 %v3352
      %v3530 = vpop.f32.mrf.mxu0
      %v3531 = vadd.f32 0.0, %v3530
      %v3532 = vpop.f32.mrf.mxu0
      %3533 = vmatprep.mubr.f32.mxu0 0.0
      %3534 = vmatmul.mubr.f32.gmra.mxu0 %v3355
      %v3535 = vpop.f32.mrf.mxu0
      %v3536 = vadd.f32 0.0, %v3535
      %v3537 = vpop.f32.mrf.mxu0
      %3538 = vmatprep.mubr.f32.mxu0 0.0
      %3539 = vmatmul.mubr.f32.gmra.mxu0 %v3358
      %v3540 = vpop.f32.mrf.mxu0
      %v3541 = vadd.f32 0.0, %v3540
      %v3542 = vpop.f32.mrf.mxu0
      %3543 = vmatprep.mubr.f32.mxu0 0.0
      %3544 = vmatmul.mubr.f32.gmra.mxu0 %v3361
      %v3545 = vpop.f32.mrf.mxu0
      %v3546 = vadd.f32 0.0, %v3545
      %v3547 = vpop.f32.mrf.mxu0
      %3548 = vmatprep.mubr.f32.mxu0 0.0
      %3549 = vmatmul.mubr.f32.gmra.mxu0 %v3364
      %v3550 = vpop.f32.mrf.mxu0
      %v3551 = vadd.f32 0.0, %v3550
      %v3552 = vpop.f32.mrf.mxu0
      %3553 = vmatprep.mubr.f32.mxu0 0.0
      %3554 = vmatmul.mubr.f32.gmra.mxu0 %v3367
      %v3555 = vpop.f32.mrf.mxu0
      %v3556 = vadd.f32 0.0, %v3555
      %v3557 = vpop.f32.mrf.mxu0
      %3558 = vmatprep.mubr.f32.mxu0 0.0
      %3559 = vmatmul.mubr.f32.gmra.mxu0 %v3370
      %v3560 = vpop.f32.mrf.mxu0
      %v3561 = vadd.f32 0.0, %v3560
      %v3562 = vpop.f32.mrf.mxu0
      %3563 = vmatprep.mubr.f32.mxu0 0.0
      %3564 = vmatmul.mubr.f32.gmra.mxu0 %v3373
      %v3565 = vpop.f32.mrf.mxu0
      %v3566 = vadd.f32 0.0, %v3565
      %v3567 = vpop.f32.mrf.mxu0
      %3568 = vmatprep.mubr.f32.mxu0 0.0
      %3569 = vmatmul.mubr.f32.gmra.mxu0 %v3376
      %v3570 = vpop.f32.mrf.mxu0
      %v3571 = vadd.f32 0.0, %v3570
      %v3572 = vpop.f32.mrf.mxu0
      %3573 = vmatprep.mubr.f32.mxu0 0.0
      %3574 = vmatmul.mubr.f32.gmra.mxu0 %v3379
      %v3575 = vpop.f32.mrf.mxu0
      %v3576 = vadd.f32 0.0, %v3575
      %v3577 = vpop.f32.mrf.mxu0
      %3578 = vmatprep.mubr.f32.mxu0 0.0
      %3579 = vmatmul.mubr.f32.gmra.mxu0 %v3382
      %v3580 = vpop.f32.mrf.mxu0
      %v3581 = vadd.f32 0.0, %v3580
      %v3582 = vpop.f32.mrf.mxu0
      %3583 = vmatprep.mubr.f32.mxu0 0.0
      %3584 = vmatmul.mubr.f32.gmra.mxu0 %v3385
      %v3585 = vpop.f32.mrf.mxu0
      %v3586 = vadd.f32 0.0, %v3585
      %v3587 = vpop.f32.mrf.mxu0
      %3588 = vmatprep.mubr.f32.mxu0 0.0
      %3589 = vmatmul.mubr.f32.gmra.mxu0 %v3388
      %v3590 = vpop.f32.mrf.mxu0
      %v3591 = vadd.f32 0.0, %v3590
      %v3592 = vpop.f32.mrf.mxu0
      %3593 = vmatprep.mubr.f32.mxu0 0.0
      %3594 = vmatmul.mubr.f32.gmra.mxu0 %v3391
      %v3595 = vpop.f32.mrf.mxu0
      %v3596 = vadd.f32 0.0, %v3595
      %v3597 = vpop.f32.mrf.mxu0
      %3598 = vmatprep.mubr.f32.mxu0 0.0
      %3599 = vmatmul.mubr.f32.gmra.mxu0 %v3394
      %v3600 = vpop.f32.mrf.mxu0
      %v3601 = vadd.f32 0.0, %v3600
      %v3602 = vpop.f32.mrf.mxu0
      %3603 = vmatprep.mubr.f32.mxu0 0.0
      %3604 = vmatmul.mubr.f32.gmra.mxu0 %v3397
      %v3605 = vpop.f32.mrf.mxu0
      %v3606 = vadd.f32 0.0, %v3605
      %v3607 = vpop.f32.mrf.mxu0
      %3608 = vmatprep.mubr.f32.mxu0 0.0
      %3609 = vmatmul.mubr.f32.gmra.mxu0 %v3400
      %v3610 = vpop.f32.mrf.mxu0
      %v3611 = vadd.f32 0.0, %v3610
      %v3612 = vpop.f32.mrf.mxu0
      %3613 = vmatprep.mubr.f32.mxu0 0.0
      %3614 = vmatmul.mubr.f32.gmra.mxu0 %v3403
      %v3615 = vpop.f32.mrf.mxu0
      %v3616 = vadd.f32 0.0, %v3615
      %v3617 = vpop.f32.mrf.mxu0
      %3618 = vmatprep.mubr.f32.mxu0 0.0
      %3619 = vmatmul.mubr.f32.gmra.mxu0 %v3406
      %v3620 = vpop.f32.mrf.mxu0
      %v3621 = vadd.f32 0.0, %v3620
      %v3622 = vpop.f32.mrf.mxu0
      %3623 = vmatprep.mubr.f32.mxu0 0.0
      %3624 = vmatmul.mubr.f32.gmra.mxu0 %v3409
      %v3625 = vpop.f32.mrf.mxu0
      %v3626 = vadd.f32 0.0, %v3625
      %v3627 = vpop.f32.mrf.mxu0
      %3628 = vmatprep.mubr.f32.mxu0 0.0
      %3629 = vmatmul.mubr.f32.gmra.mxu0 %v3412
      %v3630 = vpop.f32.mrf.mxu0
      %v3631 = vadd.f32 0.0, %v3630
      %v3632 = vpop.f32.mrf.mxu0
      %3633 = vmatprep.mubr.f32.mxu0 0.0
      %3634 = vmatmul.mubr.f32.gmra.mxu0 %v3415
      %v3635 = vpop.f32.mrf.mxu0
      %v3636 = vadd.f32 0.0, %v3635
      %v3637 = vpop.f32.mrf.mxu0
      %3638 = vmatprep.mubr.f32.mxu0 0.0
      %3639 = vmatmul.mubr.f32.gmra.mxu0 %v3418
      %v3640 = vpop.f32.mrf.mxu0
      %v3641 = vadd.f32 0.0, %v3640
      %v3642 = vpop.f32.mrf.mxu0
      %3643 = vmatprep.mubr.f32.mxu0 0.0
      %3644 = vmatmul.mubr.f32.gmra.mxu0 %v3421
      %v3645 = vpop.f32.mrf.mxu0
      %v3646 = vadd.f32 0.0, %v3645
      %v3647 = vpop.f32.mrf.mxu0
      %3648 = vmatprep.mubr.f32.mxu0 0.0
      %3649 = vmatmul.mubr.f32.gmra.mxu0 %v3424
      %v3650 = vpop.f32.mrf.mxu0
      %v3651 = vadd.f32 0.0, %v3650
      %v3652 = vpop.f32.mrf.mxu0
      %3653 = vdwg.mxu0
      %v3654 = vadd.f32 %v3257, %v3496
      %v3655 = vadd.f32 %v3258, %v3501
      %v3656 = vadd.f32 %v3259, %v3506
      %v3657 = vadd.f32 %v3260, %v3511
      %v3658 = vadd.f32 %v3261, %v3516
      %v3659 = vadd.f32 %v3262, %v3521
      %v3660 = vadd.f32 %v3263, %v3526
      %v3661 = vadd.f32 %v3264, %v3531
      %v3662 = vadd.f32 %v3265, %v3536
      %v3663 = vadd.f32 %v3266, %v3541
      %v3664 = vadd.f32 %v3267, %v3546
      %v3665 = vadd.f32 %v3268, %v3551
      %v3666 = vadd.f32 %v3269, %v3556
      %v3667 = vadd.f32 %v3270, %v3561
      %v3668 = vadd.f32 %v3271, %v3566
      %v3669 = vadd.f32 %v3272, %v3571
      %v3670 = vadd.f32 %v3273, %v3576
      %v3671 = vadd.f32 %v3274, %v3581
      %v3672 = vadd.f32 %v3275, %v3586
      %v3673 = vadd.f32 %v3276, %v3591
      %v3674 = vadd.f32 %v3277, %v3596
      %v3675 = vadd.f32 %v3278, %v3601
      %v3676 = vadd.f32 %v3279, %v3606
      %v3677 = vadd.f32 %v3280, %v3611
      %v3678 = vadd.f32 %v3281, %v3616
      %v3679 = vadd.f32 %v3282, %v3621
      %v3680 = vadd.f32 %v3283, %v3626
      %v3681 = vadd.f32 %v3284, %v3631
      %v3682 = vadd.f32 %v3285, %v3636
      %v3683 = vadd.f32 %v3286, %v3641
      %v3684 = vadd.f32 %v3287, %v3646
      %v3685 = vadd.f32 %v3288, %v3651
      %s3686 = sadd.s32 %s176, 234
      %s3687 = scalar_lea.vmem %s0, %s3686
      %v3688 = vld [vmem:[%s3687] sm:$0xff]
      %v3689 = vld [vmem:[%s3687 + $0x8] sm:$0xff]
      %v3690 = vld [vmem:[%s3687 + $0x10] sm:$0xff]
      %v3691 = vld [vmem:[%s3687 + $0x18] sm:$0xff]
      %v3692 = vld [vmem:[%s3687 + $0x20] sm:$0xff]
      %v3693 = vld [vmem:[%s3687 + $0x28] sm:$0xff]
      %v3694 = vld [vmem:[%s3687 + $0x30] sm:$0xff]
      %v3695 = vld [vmem:[%s3687 + $0x38] sm:$0xff]
      %v3696 = vld [vmem:[%s3687 + $0x40] sm:$0xff]
      %v3697 = vld [vmem:[%s3687 + $0x48] sm:$0xff]
      %v3698 = vld [vmem:[%s3687 + $0x50] sm:$0xff]
      %v3699 = vld [vmem:[%s3687 + $0x58] sm:$0xff]
      %v3700 = vld [vmem:[%s3687 + $0x60] sm:$0xff]
      %v3701 = vld [vmem:[%s3687 + $0x68] sm:$0xff]
      %v3702 = vld [vmem:[%s3687 + $0x70] sm:$0xff]
      %v3703 = vld [vmem:[%s3687 + $0x78] sm:$0xff]
      %v3704 = vld [vmem:[%s3687 + $0x80] sm:$0xff]
      %v3705 = vld [vmem:[%s3687 + $0x88] sm:$0xff]
      %v3706 = vld [vmem:[%s3687 + $0x90] sm:$0xff]
      %v3707 = vld [vmem:[%s3687 + $0x98] sm:$0xff]
      %v3708 = vld [vmem:[%s3687 + $0xa0] sm:$0xff]
      %v3709 = vld [vmem:[%s3687 + $0xa8] sm:$0xff]
      %v3710 = vld [vmem:[%s3687 + $0xb0] sm:$0xff]
      %v3711 = vld [vmem:[%s3687 + $0xb8] sm:$0xff]
      %v3712 = vld [vmem:[%s3687 + $0xc0] sm:$0xff]
      %v3713 = vld [vmem:[%s3687 + $0xc8] sm:$0xff]
      %v3714 = vld [vmem:[%s3687 + $0xd0] sm:$0xff]
      %v3715 = vld [vmem:[%s3687 + $0xd8] sm:$0xff]
      %v3716 = vld [vmem:[%s3687 + $0xe0] sm:$0xff]
      %v3717 = vld [vmem:[%s3687 + $0xe8] sm:$0xff]
      %v3718 = vld [vmem:[%s3687 + $0xf0] sm:$0xff]
      %v3719 = vld [vmem:[%s3687 + $0xf8] sm:$0xff]
      %s3720 = scalar_lea.vmem %s1, 432
      %v3721 = vld [vmem:[%s3720] sm:$0xff]
      %v3722 = vld [vmem:[%s3720 + $0x8] sm:$0xff]
      %v3723 = vld [vmem:[%s3720 + $0x10] sm:$0xff]
      %v3724 = vld [vmem:[%s3720 + $0x18] sm:$0xff]
      %v3725 = vld [vmem:[%s3720 + $0x20] sm:$0xff]
      %v3726 = vld [vmem:[%s3720 + $0x28] sm:$0xf]
      %v3728 = vsel %vm257, %v3688, 0
      %v3731 = vsel %vm257, %v3689, 0
      %v3734 = vsel %vm257, %v3690, 0
      %v3737 = vsel %vm257, %v3691, 0
      %v3740 = vsel %vm257, %v3692, 0
      %v3743 = vsel %vm257, %v3693, 0
      %v3746 = vsel %vm257, %v3694, 0
      %v3749 = vsel %vm257, %v3695, 0
      %v3752 = vsel %vm257, %v3696, 0
      %v3755 = vsel %vm257, %v3697, 0
      %v3758 = vsel %vm257, %v3698, 0
      %v3761 = vsel %vm257, %v3699, 0
      %v3764 = vsel %vm257, %v3700, 0
      %v3767 = vsel %vm257, %v3701, 0
      %v3770 = vsel %vm257, %v3702, 0
      %v3773 = vsel %vm257, %v3703, 0
      %v3776 = vsel %vm257, %v3704, 0
      %v3779 = vsel %vm257, %v3705, 0
      %v3782 = vsel %vm257, %v3706, 0
      %v3785 = vsel %vm257, %v3707, 0
      %v3788 = vsel %vm257, %v3708, 0
      %v3791 = vsel %vm257, %v3709, 0
      %v3794 = vsel %vm257, %v3710, 0
      %v3797 = vsel %vm257, %v3711, 0
      %v3800 = vsel %vm257, %v3712, 0
      %v3803 = vsel %vm257, %v3713, 0
      %v3806 = vsel %vm257, %v3714, 0
      %v3809 = vsel %vm257, %v3715, 0
      %v3812 = vsel %vm257, %v3716, 0
      %v3815 = vsel %vm257, %v3717, 0
      %v3818 = vsel %vm257, %v3718, 0
      %v3821 = vsel %vm257, %v3719, 0
      %v3824 = vsel %vm354, %v3726, 0
      %3826 = vmatprep.subr.mxu0 0.0
      %3827 = vmatpush1.msra.mxu0 0.0
      %3828 = vmatprep.subr.mxu0 0.0
      %3829 = vmatpush1.msra.mxu0 0.0
      %3830 = vmatprep.subr.mxu0 0.0
      %3831 = vmatpush1.msra.mxu0 0.0
      %3832 = vmatprep.subr.mxu0 0.0
      %3833 = vmatpush1.msra.mxu0 0.0
      %3834 = vmatprep.subr.mxu0 0.0
      %3835 = vmatpush1.msra.mxu0 0.0
      %3836 = vmatprep.subr.mxu0 0.0
      %3837 = vmatpush1.msra.mxu0 0.0
      %3838 = vmatprep.subr.mxu0 0.0
      %3839 = vmatpush1.msra.mxu0 0.0
      %3840 = vmatprep.subr.mxu0 0.0
      %3841 = vmatpush1.msra.mxu0 0.0
      %3842 = vmatprep.subr.mxu0 0.0
      %3843 = vmatpush1.msra.mxu0 0.0
      %3844 = vmatprep.subr.mxu0 0.0
      %3845 = vmatpush1.msra.mxu0 0.0
      %3846 = vmatprep.subr.mxu0 0.0
      %3847 = vmatpush1.msra.mxu0 %v3824
      %3848 = vmatprep.subr.mxu0 0.0
      %3849 = vmatpush1.msra.mxu0 %v3725
      %3850 = vmatprep.subr.mxu0 0.0
      %3851 = vmatpush1.msra.mxu0 %v3724
      %3852 = vmatprep.subr.mxu0 0.0
      %3853 = vmatpush1.msra.mxu0 %v3723
      %3854 = vmatprep.subr.mxu0 0.0
      %3855 = vmatpush1.msra.mxu0 %v3722
      %3856 = vmatprep.subr.mxu0 0.0
      %3857 = vmatpush1.msra.mxu0 %v3721
      %3858 = vmatprep.subr.mxu0 0.0
      %3859 = vmatpush2.msra.mxu0 0.0
      %3860 = vmatprep.subr.mxu0 0.0
      %3861 = vmatpush2.msra.mxu0 0.0
      %3862 = vmatprep.subr.mxu0 0.0
      %3863 = vmatpush2.msra.mxu0 0.0
      %3864 = vmatprep.subr.mxu0 0.0
      %3865 = vmatpush2.msra.mxu0 0.0
      %3866 = vmatprep.subr.mxu0 0.0
      %3867 = vmatpush2.msra.mxu0 0.0
      %3868 = vmatprep.subr.mxu0 0.0
      %3869 = vmatpush2.msra.mxu0 0.0
      %3870 = vmatprep.subr.mxu0 0.0
      %3871 = vmatpush2.msra.mxu0 0.0
      %3872 = vmatprep.subr.mxu0 0.0
      %3873 = vmatpush2.msra.mxu0 0.0
      %3874 = vmatprep.subr.mxu0 0.0
      %3875 = vmatpush2.msra.mxu0 0.0
      %3876 = vmatprep.subr.mxu0 0.0
      %3877 = vmatpush2.msra.mxu0 0.0
      %3878 = vmatprep.subr.mxu0 0.0
      %3879 = vmatpush2.msra.mxu0 0.0
      %3880 = vmatprep.subr.mxu0 0.0
      %3881 = vmatpush2.msra.mxu0 0.0
      %3882 = vmatprep.subr.mxu0 0.0
      %3883 = vmatpush2.msra.mxu0 0.0
      %3884 = vmatprep.subr.mxu0 0.0
      %3885 = vmatpush2.msra.mxu0 0.0
      %3886 = vmatprep.subr.mxu0 0.0
      %3887 = vmatpush2.msra.mxu0 0.0
      %3888 = vmatprep.subr.mxu0 0.0
      %3889 = vmatpush2.msra.mxu0 0.0
      %3890 = vmatprep.mubr.f32.mxu0 0.0
      %3891 = vmatmul.mubr.f32.gmra.mxu0 %v3728
      %v3892 = vpop.f32.mrf.mxu0
      %v3893 = vadd.f32 0.0, %v3892
      %v3894 = vpop.f32.mrf.mxu0
      %3895 = vmatprep.mubr.f32.mxu0 0.0
      %3896 = vmatmul.mubr.f32.gmra.mxu0 %v3731
      %v3897 = vpop.f32.mrf.mxu0
      %v3898 = vadd.f32 0.0, %v3897
      %v3899 = vpop.f32.mrf.mxu0
      %3900 = vmatprep.mubr.f32.mxu0 0.0
      %3901 = vmatmul.mubr.f32.gmra.mxu0 %v3734
      %v3902 = vpop.f32.mrf.mxu0
      %v3903 = vadd.f32 0.0, %v3902
      %v3904 = vpop.f32.mrf.mxu0
      %3905 = vmatprep.mubr.f32.mxu0 0.0
      %3906 = vmatmul.mubr.f32.gmra.mxu0 %v3737
      %v3907 = vpop.f32.mrf.mxu0
      %v3908 = vadd.f32 0.0, %v3907
      %v3909 = vpop.f32.mrf.mxu0
      %3910 = vmatprep.mubr.f32.mxu0 0.0
      %3911 = vmatmul.mubr.f32.gmra.mxu0 %v3740
      %v3912 = vpop.f32.mrf.mxu0
      %v3913 = vadd.f32 0.0, %v3912
      %v3914 = vpop.f32.mrf.mxu0
      %3915 = vmatprep.mubr.f32.mxu0 0.0
      %3916 = vmatmul.mubr.f32.gmra.mxu0 %v3743
      %v3917 = vpop.f32.mrf.mxu0
      %v3918 = vadd.f32 0.0, %v3917
      %v3919 = vpop.f32.mrf.mxu0
      %3920 = vmatprep.mubr.f32.mxu0 0.0
      %3921 = vmatmul.mubr.f32.gmra.mxu0 %v3746
      %v3922 = vpop.f32.mrf.mxu0
      %v3923 = vadd.f32 0.0, %v3922
      %v3924 = vpop.f32.mrf.mxu0
      %3925 = vmatprep.mubr.f32.mxu0 0.0
      %3926 = vmatmul.mubr.f32.gmra.mxu0 %v3749
      %v3927 = vpop.f32.mrf.mxu0
      %v3928 = vadd.f32 0.0, %v3927
      %v3929 = vpop.f32.mrf.mxu0
      %3930 = vmatprep.mubr.f32.mxu0 0.0
      %3931 = vmatmul.mubr.f32.gmra.mxu0 %v3752
      %v3932 = vpop.f32.mrf.mxu0
      %v3933 = vadd.f32 0.0, %v3932
      %v3934 = vpop.f32.mrf.mxu0
      %3935 = vmatprep.mubr.f32.mxu0 0.0
      %3936 = vmatmul.mubr.f32.gmra.mxu0 %v3755
      %v3937 = vpop.f32.mrf.mxu0
      %v3938 = vadd.f32 0.0, %v3937
      %v3939 = vpop.f32.mrf.mxu0
      %3940 = vmatprep.mubr.f32.mxu0 0.0
      %3941 = vmatmul.mubr.f32.gmra.mxu0 %v3758
      %v3942 = vpop.f32.mrf.mxu0
      %v3943 = vadd.f32 0.0, %v3942
      %v3944 = vpop.f32.mrf.mxu0
      %3945 = vmatprep.mubr.f32.mxu0 0.0
      %3946 = vmatmul.mubr.f32.gmra.mxu0 %v3761
      %v3947 = vpop.f32.mrf.mxu0
      %v3948 = vadd.f32 0.0, %v3947
      %v3949 = vpop.f32.mrf.mxu0
      %3950 = vmatprep.mubr.f32.mxu0 0.0
      %3951 = vmatmul.mubr.f32.gmra.mxu0 %v3764
      %v3952 = vpop.f32.mrf.mxu0
      %v3953 = vadd.f32 0.0, %v3952
      %v3954 = vpop.f32.mrf.mxu0
      %3955 = vmatprep.mubr.f32.mxu0 0.0
      %3956 = vmatmul.mubr.f32.gmra.mxu0 %v3767
      %v3957 = vpop.f32.mrf.mxu0
      %v3958 = vadd.f32 0.0, %v3957
      %v3959 = vpop.f32.mrf.mxu0
      %3960 = vmatprep.mubr.f32.mxu0 0.0
      %3961 = vmatmul.mubr.f32.gmra.mxu0 %v3770
      %v3962 = vpop.f32.mrf.mxu0
      %v3963 = vadd.f32 0.0, %v3962
      %v3964 = vpop.f32.mrf.mxu0
      %3965 = vmatprep.mubr.f32.mxu0 0.0
      %3966 = vmatmul.mubr.f32.gmra.mxu0 %v3773
      %v3967 = vpop.f32.mrf.mxu0
      %v3968 = vadd.f32 0.0, %v3967
      %v3969 = vpop.f32.mrf.mxu0
      %3970 = vmatprep.mubr.f32.mxu0 0.0
      %3971 = vmatmul.mubr.f32.gmra.mxu0 %v3776
      %v3972 = vpop.f32.mrf.mxu0
      %v3973 = vadd.f32 0.0, %v3972
      %v3974 = vpop.f32.mrf.mxu0
      %3975 = vmatprep.mubr.f32.mxu0 0.0
      %3976 = vmatmul.mubr.f32.gmra.mxu0 %v3779
      %v3977 = vpop.f32.mrf.mxu0
      %v3978 = vadd.f32 0.0, %v3977
      %v3979 = vpop.f32.mrf.mxu0
      %3980 = vmatprep.mubr.f32.mxu0 0.0
      %3981 = vmatmul.mubr.f32.gmra.mxu0 %v3782
      %v3982 = vpop.f32.mrf.mxu0
      %v3983 = vadd.f32 0.0, %v3982
      %v3984 = vpop.f32.mrf.mxu0
      %3985 = vmatprep.mubr.f32.mxu0 0.0
      %3986 = vmatmul.mubr.f32.gmra.mxu0 %v3785
      %v3987 = vpop.f32.mrf.mxu0
      %v3988 = vadd.f32 0.0, %v3987
      %v3989 = vpop.f32.mrf.mxu0
      %3990 = vmatprep.mubr.f32.mxu0 0.0
      %3991 = vmatmul.mubr.f32.gmra.mxu0 %v3788
      %v3992 = vpop.f32.mrf.mxu0
      %v3993 = vadd.f32 0.0, %v3992
      %v3994 = vpop.f32.mrf.mxu0
      %3995 = vmatprep.mubr.f32.mxu0 0.0
      %3996 = vmatmul.mubr.f32.gmra.mxu0 %v3791
      %v3997 = vpop.f32.mrf.mxu0
      %v3998 = vadd.f32 0.0, %v3997
      %v3999 = vpop.f32.mrf.mxu0
      %4000 = vmatprep.mubr.f32.mxu0 0.0
      %4001 = vmatmul.mubr.f32.gmra.mxu0 %v3794
      %v4002 = vpop.f32.mrf.mxu0
      %v4003 = vadd.f32 0.0, %v4002
      %v4004 = vpop.f32.mrf.mxu0
      %4005 = vmatprep.mubr.f32.mxu0 0.0
      %4006 = vmatmul.mubr.f32.gmra.mxu0 %v3797
      %v4007 = vpop.f32.mrf.mxu0
      %v4008 = vadd.f32 0.0, %v4007
      %v4009 = vpop.f32.mrf.mxu0
      %4010 = vmatprep.mubr.f32.mxu0 0.0
      %4011 = vmatmul.mubr.f32.gmra.mxu0 %v3800
      %v4012 = vpop.f32.mrf.mxu0
      %v4013 = vadd.f32 0.0, %v4012
      %v4014 = vpop.f32.mrf.mxu0
      %4015 = vmatprep.mubr.f32.mxu0 0.0
      %4016 = vmatmul.mubr.f32.gmra.mxu0 %v3803
      %v4017 = vpop.f32.mrf.mxu0
      %v4018 = vadd.f32 0.0, %v4017
      %v4019 = vpop.f32.mrf.mxu0
      %4020 = vmatprep.mubr.f32.mxu0 0.0
      %4021 = vmatmul.mubr.f32.gmra.mxu0 %v3806
      %v4022 = vpop.f32.mrf.mxu0
      %v4023 = vadd.f32 0.0, %v4022
      %v4024 = vpop.f32.mrf.mxu0
      %4025 = vmatprep.mubr.f32.mxu0 0.0
      %4026 = vmatmul.mubr.f32.gmra.mxu0 %v3809
      %v4027 = vpop.f32.mrf.mxu0
      %v4028 = vadd.f32 0.0, %v4027
      %v4029 = vpop.f32.mrf.mxu0
      %4030 = vmatprep.mubr.f32.mxu0 0.0
      %4031 = vmatmul.mubr.f32.gmra.mxu0 %v3812
      %v4032 = vpop.f32.mrf.mxu0
      %v4033 = vadd.f32 0.0, %v4032
      %v4034 = vpop.f32.mrf.mxu0
      %4035 = vmatprep.mubr.f32.mxu0 0.0
      %4036 = vmatmul.mubr.f32.gmra.mxu0 %v3815
      %v4037 = vpop.f32.mrf.mxu0
      %v4038 = vadd.f32 0.0, %v4037
      %v4039 = vpop.f32.mrf.mxu0
      %4040 = vmatprep.mubr.f32.mxu0 0.0
      %4041 = vmatmul.mubr.f32.gmra.mxu0 %v3818
      %v4042 = vpop.f32.mrf.mxu0
      %v4043 = vadd.f32 0.0, %v4042
      %v4044 = vpop.f32.mrf.mxu0
      %4045 = vmatprep.mubr.f32.mxu0 0.0
      %4046 = vmatmul.mubr.f32.gmra.mxu0 %v3821
      %v4047 = vpop.f32.mrf.mxu0
      %v4048 = vadd.f32 0.0, %v4047
      %v4049 = vpop.f32.mrf.mxu0
      %4050 = vdwg.mxu0
      %v4051 = vadd.f32 %v3654, %v3893
      %v4052 = vadd.f32 %v3655, %v3898
      %v4053 = vadd.f32 %v3656, %v3903
      %v4054 = vadd.f32 %v3657, %v3908
      %v4055 = vadd.f32 %v3658, %v3913
      %v4056 = vadd.f32 %v3659, %v3918
      %v4057 = vadd.f32 %v3660, %v3923
      %v4058 = vadd.f32 %v3661, %v3928
      %v4059 = vadd.f32 %v3662, %v3933
      %v4060 = vadd.f32 %v3663, %v3938
      %v4061 = vadd.f32 %v3664, %v3943
      %v4062 = vadd.f32 %v3665, %v3948
      %v4063 = vadd.f32 %v3666, %v3953
      %v4064 = vadd.f32 %v3667, %v3958
      %v4065 = vadd.f32 %v3668, %v3963
      %v4066 = vadd.f32 %v3669, %v3968
      %v4067 = vadd.f32 %v3670, %v3973
      %v4068 = vadd.f32 %v3671, %v3978
      %v4069 = vadd.f32 %v3672, %v3983
      %v4070 = vadd.f32 %v3673, %v3988
      %v4071 = vadd.f32 %v3674, %v3993
      %v4072 = vadd.f32 %v3675, %v3998
      %v4073 = vadd.f32 %v3676, %v4003
      %v4074 = vadd.f32 %v3677, %v4008
      %v4075 = vadd.f32 %v3678, %v4013
      %v4076 = vadd.f32 %v3679, %v4018
      %v4077 = vadd.f32 %v3680, %v4023
      %v4078 = vadd.f32 %v3681, %v4028
      %v4079 = vadd.f32 %v3682, %v4033
      %v4080 = vadd.f32 %v3683, %v4038
      %v4081 = vadd.f32 %v3684, %v4043
      %v4082 = vadd.f32 %v3685, %v4048
      %s4083 = sadd.s32 %s176, 260
      %s4084 = scalar_lea.vmem %s0, %s4083
      %v4085 = vld [vmem:[%s4084] sm:$0xff]
      %v4086 = vld [vmem:[%s4084 + $0x8] sm:$0xff]
      %v4087 = vld [vmem:[%s4084 + $0x10] sm:$0xff]
      %v4088 = vld [vmem:[%s4084 + $0x18] sm:$0xff]
      %v4089 = vld [vmem:[%s4084 + $0x20] sm:$0xff]
      %v4090 = vld [vmem:[%s4084 + $0x28] sm:$0xff]
      %v4091 = vld [vmem:[%s4084 + $0x30] sm:$0xff]
      %v4092 = vld [vmem:[%s4084 + $0x38] sm:$0xff]
      %v4093 = vld [vmem:[%s4084 + $0x40] sm:$0xff]
      %v4094 = vld [vmem:[%s4084 + $0x48] sm:$0xff]
      %v4095 = vld [vmem:[%s4084 + $0x50] sm:$0xff]
      %v4096 = vld [vmem:[%s4084 + $0x58] sm:$0xff]
      %v4097 = vld [vmem:[%s4084 + $0x60] sm:$0xff]
      %v4098 = vld [vmem:[%s4084 + $0x68] sm:$0xff]
      %v4099 = vld [vmem:[%s4084 + $0x70] sm:$0xff]
      %v4100 = vld [vmem:[%s4084 + $0x78] sm:$0xff]
      %v4101 = vld [vmem:[%s4084 + $0x80] sm:$0xff]
      %v4102 = vld [vmem:[%s4084 + $0x88] sm:$0xff]
      %v4103 = vld [vmem:[%s4084 + $0x90] sm:$0xff]
      %v4104 = vld [vmem:[%s4084 + $0x98] sm:$0xff]
      %v4105 = vld [vmem:[%s4084 + $0xa0] sm:$0xff]
      %v4106 = vld [vmem:[%s4084 + $0xa8] sm:$0xff]
      %v4107 = vld [vmem:[%s4084 + $0xb0] sm:$0xff]
      %v4108 = vld [vmem:[%s4084 + $0xb8] sm:$0xff]
      %v4109 = vld [vmem:[%s4084 + $0xc0] sm:$0xff]
      %v4110 = vld [vmem:[%s4084 + $0xc8] sm:$0xff]
      %v4111 = vld [vmem:[%s4084 + $0xd0] sm:$0xff]
      %v4112 = vld [vmem:[%s4084 + $0xd8] sm:$0xff]
      %v4113 = vld [vmem:[%s4084 + $0xe0] sm:$0xff]
      %v4114 = vld [vmem:[%s4084 + $0xe8] sm:$0xff]
      %v4115 = vld [vmem:[%s4084 + $0xf0] sm:$0xff]
      %v4116 = vld [vmem:[%s4084 + $0xf8] sm:$0xff]
      %s4117 = scalar_lea.vmem %s1, 480
      %v4118 = vld [vmem:[%s4117] sm:$0xff]
      %v4119 = vld [vmem:[%s4117 + $0x8] sm:$0xff]
      %v4120 = vld [vmem:[%s4117 + $0x10] sm:$0xff]
      %v4121 = vld [vmem:[%s4117 + $0x18] sm:$0xff]
      %v4122 = vld [vmem:[%s4117 + $0x20] sm:$0xff]
      %v4123 = vld [vmem:[%s4117 + $0x28] sm:$0xf]
      %v4125 = vsel %vm257, %v4085, 0
      %v4128 = vsel %vm257, %v4086, 0
      %v4131 = vsel %vm257, %v4087, 0
      %v4134 = vsel %vm257, %v4088, 0
      %v4137 = vsel %vm257, %v4089, 0
      %v4140 = vsel %vm257, %v4090, 0
      %v4143 = vsel %vm257, %v4091, 0
      %v4146 = vsel %vm257, %v4092, 0
      %v4149 = vsel %vm257, %v4093, 0
      %v4152 = vsel %vm257, %v4094, 0
      %v4155 = vsel %vm257, %v4095, 0
      %v4158 = vsel %vm257, %v4096, 0
      %v4161 = vsel %vm257, %v4097, 0
      %v4164 = vsel %vm257, %v4098, 0
      %v4167 = vsel %vm257, %v4099, 0
      %v4170 = vsel %vm257, %v4100, 0
      %v4173 = vsel %vm257, %v4101, 0
      %v4176 = vsel %vm257, %v4102, 0
      %v4179 = vsel %vm257, %v4103, 0
      %v4182 = vsel %vm257, %v4104, 0
      %v4185 = vsel %vm257, %v4105, 0
      %v4188 = vsel %vm257, %v4106, 0
      %v4191 = vsel %vm257, %v4107, 0
      %v4194 = vsel %vm257, %v4108, 0
      %v4197 = vsel %vm257, %v4109, 0
      %v4200 = vsel %vm257, %v4110, 0
      %v4203 = vsel %vm257, %v4111, 0
      %v4206 = vsel %vm257, %v4112, 0
      %v4209 = vsel %vm257, %v4113, 0
      %v4212 = vsel %vm257, %v4114, 0
      %v4215 = vsel %vm257, %v4115, 0
      %v4218 = vsel %vm257, %v4116, 0
      %v4221 = vsel %vm354, %v4123, 0
      %4223 = vmatprep.subr.mxu0 0.0
      %4224 = vmatpush1.msra.mxu0 0.0
      %4225 = vmatprep.subr.mxu0 0.0
      %4226 = vmatpush1.msra.mxu0 0.0
      %4227 = vmatprep.subr.mxu0 0.0
      %4228 = vmatpush1.msra.mxu0 0.0
      %4229 = vmatprep.subr.mxu0 0.0
      %4230 = vmatpush1.msra.mxu0 0.0
      %4231 = vmatprep.subr.mxu0 0.0
      %4232 = vmatpush1.msra.mxu0 0.0
      %4233 = vmatprep.subr.mxu0 0.0
      %4234 = vmatpush1.msra.mxu0 0.0
      %4235 = vmatprep.subr.mxu0 0.0
      %4236 = vmatpush1.msra.mxu0 0.0
      %4237 = vmatprep.subr.mxu0 0.0
      %4238 = vmatpush1.msra.mxu0 0.0
      %4239 = vmatprep.subr.mxu0 0.0
      %4240 = vmatpush1.msra.mxu0 0.0
      %4241 = vmatprep.subr.mxu0 0.0
      %4242 = vmatpush1.msra.mxu0 0.0
      %4243 = vmatprep.subr.mxu0 0.0
      %4244 = vmatpush1.msra.mxu0 %v4221
      %4245 = vmatprep.subr.mxu0 0.0
      %4246 = vmatpush1.msra.mxu0 %v4122
      %4247 = vmatprep.subr.mxu0 0.0
      %4248 = vmatpush1.msra.mxu0 %v4121
      %4249 = vmatprep.subr.mxu0 0.0
      %4250 = vmatpush1.msra.mxu0 %v4120
      %4251 = vmatprep.subr.mxu0 0.0
      %4252 = vmatpush1.msra.mxu0 %v4119
      %4253 = vmatprep.subr.mxu0 0.0
      %4254 = vmatpush1.msra.mxu0 %v4118
      %4255 = vmatprep.subr.mxu0 0.0
      %4256 = vmatpush2.msra.mxu0 0.0
      %4257 = vmatprep.subr.mxu0 0.0
      %4258 = vmatpush2.msra.mxu0 0.0
      %4259 = vmatprep.subr.mxu0 0.0
      %4260 = vmatpush2.msra.mxu0 0.0
      %4261 = vmatprep.subr.mxu0 0.0
      %4262 = vmatpush2.msra.mxu0 0.0
      %4263 = vmatprep.subr.mxu0 0.0
      %4264 = vmatpush2.msra.mxu0 0.0
      %4265 = vmatprep.subr.mxu0 0.0
      %4266 = vmatpush2.msra.mxu0 0.0
      %4267 = vmatprep.subr.mxu0 0.0
      %4268 = vmatpush2.msra.mxu0 0.0
      %4269 = vmatprep.subr.mxu0 0.0
      %4270 = vmatpush2.msra.mxu0 0.0
      %4271 = vmatprep.subr.mxu0 0.0
      %4272 = vmatpush2.msra.mxu0 0.0
      %4273 = vmatprep.subr.mxu0 0.0
      %4274 = vmatpush2.msra.mxu0 0.0
      %4275 = vmatprep.subr.mxu0 0.0
      %4276 = vmatpush2.msra.mxu0 0.0
      %4277 = vmatprep.subr.mxu0 0.0
      %4278 = vmatpush2.msra.mxu0 0.0
      %4279 = vmatprep.subr.mxu0 0.0
      %4280 = vmatpush2.msra.mxu0 0.0
      %4281 = vmatprep.subr.mxu0 0.0
      %4282 = vmatpush2.msra.mxu0 0.0
      %4283 = vmatprep.subr.mxu0 0.0
      %4284 = vmatpush2.msra.mxu0 0.0
      %4285 = vmatprep.subr.mxu0 0.0
      %4286 = vmatpush2.msra.mxu0 0.0
      %4287 = vmatprep.mubr.f32.mxu0 0.0
      %4288 = vmatmul.mubr.f32.gmra.mxu0 %v4125
      %v4289 = vpop.f32.mrf.mxu0
      %v4290 = vadd.f32 0.0, %v4289
      %v4291 = vpop.f32.mrf.mxu0
      %4292 = vmatprep.mubr.f32.mxu0 0.0
      %4293 = vmatmul.mubr.f32.gmra.mxu0 %v4128
      %v4294 = vpop.f32.mrf.mxu0
      %v4295 = vadd.f32 0.0, %v4294
      %v4296 = vpop.f32.mrf.mxu0
      %4297 = vmatprep.mubr.f32.mxu0 0.0
      %4298 = vmatmul.mubr.f32.gmra.mxu0 %v4131
      %v4299 = vpop.f32.mrf.mxu0
      %v4300 = vadd.f32 0.0, %v4299
      %v4301 = vpop.f32.mrf.mxu0
      %4302 = vmatprep.mubr.f32.mxu0 0.0
      %4303 = vmatmul.mubr.f32.gmra.mxu0 %v4134
      %v4304 = vpop.f32.mrf.mxu0
      %v4305 = vadd.f32 0.0, %v4304
      %v4306 = vpop.f32.mrf.mxu0
      %4307 = vmatprep.mubr.f32.mxu0 0.0
      %4308 = vmatmul.mubr.f32.gmra.mxu0 %v4137
      %v4309 = vpop.f32.mrf.mxu0
      %v4310 = vadd.f32 0.0, %v4309
      %v4311 = vpop.f32.mrf.mxu0
      %4312 = vmatprep.mubr.f32.mxu0 0.0
      %4313 = vmatmul.mubr.f32.gmra.mxu0 %v4140
      %v4314 = vpop.f32.mrf.mxu0
      %v4315 = vadd.f32 0.0, %v4314
      %v4316 = vpop.f32.mrf.mxu0
      %4317 = vmatprep.mubr.f32.mxu0 0.0
      %4318 = vmatmul.mubr.f32.gmra.mxu0 %v4143
      %v4319 = vpop.f32.mrf.mxu0
      %v4320 = vadd.f32 0.0, %v4319
      %v4321 = vpop.f32.mrf.mxu0
      %4322 = vmatprep.mubr.f32.mxu0 0.0
      %4323 = vmatmul.mubr.f32.gmra.mxu0 %v4146
      %v4324 = vpop.f32.mrf.mxu0
      %v4325 = vadd.f32 0.0, %v4324
      %v4326 = vpop.f32.mrf.mxu0
      %4327 = vmatprep.mubr.f32.mxu0 0.0
      %4328 = vmatmul.mubr.f32.gmra.mxu0 %v4149
      %v4329 = vpop.f32.mrf.mxu0
      %v4330 = vadd.f32 0.0, %v4329
      %v4331 = vpop.f32.mrf.mxu0
      %4332 = vmatprep.mubr.f32.mxu0 0.0
      %4333 = vmatmul.mubr.f32.gmra.mxu0 %v4152
      %v4334 = vpop.f32.mrf.mxu0
      %v4335 = vadd.f32 0.0, %v4334
      %v4336 = vpop.f32.mrf.mxu0
      %4337 = vmatprep.mubr.f32.mxu0 0.0
      %4338 = vmatmul.mubr.f32.gmra.mxu0 %v4155
      %v4339 = vpop.f32.mrf.mxu0
      %v4340 = vadd.f32 0.0, %v4339
      %v4341 = vpop.f32.mrf.mxu0
      %4342 = vmatprep.mubr.f32.mxu0 0.0
      %4343 = vmatmul.mubr.f32.gmra.mxu0 %v4158
      %v4344 = vpop.f32.mrf.mxu0
      %v4345 = vadd.f32 0.0, %v4344
      %v4346 = vpop.f32.mrf.mxu0
      %4347 = vmatprep.mubr.f32.mxu0 0.0
      %4348 = vmatmul.mubr.f32.gmra.mxu0 %v4161
      %v4349 = vpop.f32.mrf.mxu0
      %v4350 = vadd.f32 0.0, %v4349
      %v4351 = vpop.f32.mrf.mxu0
      %4352 = vmatprep.mubr.f32.mxu0 0.0
      %4353 = vmatmul.mubr.f32.gmra.mxu0 %v4164
      %v4354 = vpop.f32.mrf.mxu0
      %v4355 = vadd.f32 0.0, %v4354
      %v4356 = vpop.f32.mrf.mxu0
      %4357 = vmatprep.mubr.f32.mxu0 0.0
      %4358 = vmatmul.mubr.f32.gmra.mxu0 %v4167
      %v4359 = vpop.f32.mrf.mxu0
      %v4360 = vadd.f32 0.0, %v4359
      %v4361 = vpop.f32.mrf.mxu0
      %4362 = vmatprep.mubr.f32.mxu0 0.0
      %4363 = vmatmul.mubr.f32.gmra.mxu0 %v4170
      %v4364 = vpop.f32.mrf.mxu0
      %v4365 = vadd.f32 0.0, %v4364
      %v4366 = vpop.f32.mrf.mxu0
      %4367 = vmatprep.mubr.f32.mxu0 0.0
      %4368 = vmatmul.mubr.f32.gmra.mxu0 %v4173
      %v4369 = vpop.f32.mrf.mxu0
      %v4370 = vadd.f32 0.0, %v4369
      %v4371 = vpop.f32.mrf.mxu0
      %4372 = vmatprep.mubr.f32.mxu0 0.0
      %4373 = vmatmul.mubr.f32.gmra.mxu0 %v4176
      %v4374 = vpop.f32.mrf.mxu0
      %v4375 = vadd.f32 0.0, %v4374
      %v4376 = vpop.f32.mrf.mxu0
      %4377 = vmatprep.mubr.f32.mxu0 0.0
      %4378 = vmatmul.mubr.f32.gmra.mxu0 %v4179
      %v4379 = vpop.f32.mrf.mxu0
      %v4380 = vadd.f32 0.0, %v4379
      %v4381 = vpop.f32.mrf.mxu0
      %4382 = vmatprep.mubr.f32.mxu0 0.0
      %4383 = vmatmul.mubr.f32.gmra.mxu0 %v4182
      %v4384 = vpop.f32.mrf.mxu0
      %v4385 = vadd.f32 0.0, %v4384
      %v4386 = vpop.f32.mrf.mxu0
      %4387 = vmatprep.mubr.f32.mxu0 0.0
      %4388 = vmatmul.mubr.f32.gmra.mxu0 %v4185
      %v4389 = vpop.f32.mrf.mxu0
      %v4390 = vadd.f32 0.0, %v4389
      %v4391 = vpop.f32.mrf.mxu0
      %4392 = vmatprep.mubr.f32.mxu0 0.0
      %4393 = vmatmul.mubr.f32.gmra.mxu0 %v4188
      %v4394 = vpop.f32.mrf.mxu0
      %v4395 = vadd.f32 0.0, %v4394
      %v4396 = vpop.f32.mrf.mxu0
      %4397 = vmatprep.mubr.f32.mxu0 0.0
      %4398 = vmatmul.mubr.f32.gmra.mxu0 %v4191
      %v4399 = vpop.f32.mrf.mxu0
      %v4400 = vadd.f32 0.0, %v4399
      %v4401 = vpop.f32.mrf.mxu0
      %4402 = vmatprep.mubr.f32.mxu0 0.0
      %4403 = vmatmul.mubr.f32.gmra.mxu0 %v4194
      %v4404 = vpop.f32.mrf.mxu0
      %v4405 = vadd.f32 0.0, %v4404
      %v4406 = vpop.f32.mrf.mxu0
      %4407 = vmatprep.mubr.f32.mxu0 0.0
      %4408 = vmatmul.mubr.f32.gmra.mxu0 %v4197
      %v4409 = vpop.f32.mrf.mxu0
      %v4410 = vadd.f32 0.0, %v4409
      %v4411 = vpop.f32.mrf.mxu0
      %4412 = vmatprep.mubr.f32.mxu0 0.0
      %4413 = vmatmul.mubr.f32.gmra.mxu0 %v4200
      %v4414 = vpop.f32.mrf.mxu0
      %v4415 = vadd.f32 0.0, %v4414
      %v4416 = vpop.f32.mrf.mxu0
      %4417 = vmatprep.mubr.f32.mxu0 0.0
      %4418 = vmatmul.mubr.f32.gmra.mxu0 %v4203
      %v4419 = vpop.f32.mrf.mxu0
      %v4420 = vadd.f32 0.0, %v4419
      %v4421 = vpop.f32.mrf.mxu0
      %4422 = vmatprep.mubr.f32.mxu0 0.0
      %4423 = vmatmul.mubr.f32.gmra.mxu0 %v4206
      %v4424 = vpop.f32.mrf.mxu0
      %v4425 = vadd.f32 0.0, %v4424
      %v4426 = vpop.f32.mrf.mxu0
      %4427 = vmatprep.mubr.f32.mxu0 0.0
      %4428 = vmatmul.mubr.f32.gmra.mxu0 %v4209
      %v4429 = vpop.f32.mrf.mxu0
      %v4430 = vadd.f32 0.0, %v4429
      %v4431 = vpop.f32.mrf.mxu0
      %4432 = vmatprep.mubr.f32.mxu0 0.0
      %4433 = vmatmul.mubr.f32.gmra.mxu0 %v4212
      %v4434 = vpop.f32.mrf.mxu0
      %v4435 = vadd.f32 0.0, %v4434
      %v4436 = vpop.f32.mrf.mxu0
      %4437 = vmatprep.mubr.f32.mxu0 0.0
      %4438 = vmatmul.mubr.f32.gmra.mxu0 %v4215
      %v4439 = vpop.f32.mrf.mxu0
      %v4440 = vadd.f32 0.0, %v4439
      %v4441 = vpop.f32.mrf.mxu0
      %4442 = vmatprep.mubr.f32.mxu0 0.0
      %4443 = vmatmul.mubr.f32.gmra.mxu0 %v4218
      %v4444 = vpop.f32.mrf.mxu0
      %v4445 = vadd.f32 0.0, %v4444
      %v4446 = vpop.f32.mrf.mxu0
      %4447 = vdwg.mxu0
      %v4448 = vadd.f32 %v4051, %v4290
      %v4449 = vadd.f32 %v4052, %v4295
      %v4450 = vadd.f32 %v4053, %v4300
      %v4451 = vadd.f32 %v4054, %v4305
      %v4452 = vadd.f32 %v4055, %v4310
      %v4453 = vadd.f32 %v4056, %v4315
      %v4454 = vadd.f32 %v4057, %v4320
      %v4455 = vadd.f32 %v4058, %v4325
      %v4456 = vadd.f32 %v4059, %v4330
      %v4457 = vadd.f32 %v4060, %v4335
      %v4458 = vadd.f32 %v4061, %v4340
      %v4459 = vadd.f32 %v4062, %v4345
      %v4460 = vadd.f32 %v4063, %v4350
      %v4461 = vadd.f32 %v4064, %v4355
      %v4462 = vadd.f32 %v4065, %v4360
      %v4463 = vadd.f32 %v4066, %v4365
      %v4464 = vadd.f32 %v4067, %v4370
      %v4465 = vadd.f32 %v4068, %v4375
      %v4466 = vadd.f32 %v4069, %v4380
      %v4467 = vadd.f32 %v4070, %v4385
      %v4468 = vadd.f32 %v4071, %v4390
      %v4469 = vadd.f32 %v4072, %v4395
      %v4470 = vadd.f32 %v4073, %v4400
      %v4471 = vadd.f32 %v4074, %v4405
      %v4472 = vadd.f32 %v4075, %v4410
      %v4473 = vadd.f32 %v4076, %v4415
      %v4474 = vadd.f32 %v4077, %v4420
      %v4475 = vadd.f32 %v4078, %v4425
      %v4476 = vadd.f32 %v4079, %v4430
      %v4477 = vadd.f32 %v4080, %v4435
      %v4478 = vadd.f32 %v4081, %v4440
      %v4479 = vadd.f32 %v4082, %v4445
      %v4480 = vld [vmem:[%s2] sm:$0x1]
      %v4482 = vlaneseq
      %v4483 = vshrl.u32 %v4482, 7
      %v4484 = vsub.s32 0, %v4483
      %v4485 = vrot.slane %v4480, %v4484
      %v4487 = vadd.f32 %v4448, %v4485
      %v4488 = vadd.f32 %v4449, %v4485
      %v4489 = vadd.f32 %v4450, %v4485
      %v4490 = vadd.f32 %v4451, %v4485
      %v4491 = vadd.f32 %v4452, %v4485
      %v4492 = vadd.f32 %v4453, %v4485
      %v4493 = vadd.f32 %v4454, %v4485
      %v4494 = vadd.f32 %v4455, %v4485
      %v4495 = vadd.f32 %v4456, %v4485
      %v4496 = vadd.f32 %v4457, %v4485
      %v4497 = vadd.f32 %v4458, %v4485
      %v4498 = vadd.f32 %v4459, %v4485
      %v4499 = vadd.f32 %v4460, %v4485
      %v4500 = vadd.f32 %v4461, %v4485
      %v4501 = vadd.f32 %v4462, %v4485
      %v4502 = vadd.f32 %v4463, %v4485
      %v4503 = vadd.f32 %v4464, %v4485
      %v4504 = vadd.f32 %v4465, %v4485
      %v4505 = vadd.f32 %v4466, %v4485
      %v4506 = vadd.f32 %v4467, %v4485
      %v4507 = vadd.f32 %v4468, %v4485
      %v4508 = vadd.f32 %v4469, %v4485
      %v4509 = vadd.f32 %v4470, %v4485
      %v4510 = vadd.f32 %v4471, %v4485
      %v4511 = vadd.f32 %v4472, %v4485
      %v4512 = vadd.f32 %v4473, %v4485
      %v4513 = vadd.f32 %v4474, %v4485
      %v4514 = vadd.f32 %v4475, %v4485
      %v4515 = vadd.f32 %v4476, %v4485
      %v4516 = vadd.f32 %v4477, %v4485
      %v4517 = vadd.f32 %v4478, %v4485
      %v4518 = vadd.f32 %v4479, %v4485
      %vm4519 = vcmask 64512
      %4520 = vst.msk [vmem:[%s172] sm:$0xff] %vm4519, %v4487
      %4521 = vst.msk [vmem:[%s172 + $0x8] sm:$0xff] %vm4519, %v4488
      %4522 = vst.msk [vmem:[%s172 + $0x10] sm:$0xff] %vm4519, %v4489
      %4523 = vst.msk [vmem:[%s172 + $0x18] sm:$0xff] %vm4519, %v4490
      %4524 = vst.msk [vmem:[%s172 + $0x20] sm:$0xff] %vm4519, %v4491
      %4525 = vst.msk [vmem:[%s172 + $0x28] sm:$0xff] %vm4519, %v4492
      %4526 = vst.msk [vmem:[%s172 + $0x30] sm:$0xff] %vm4519, %v4493
      %4527 = vst.msk [vmem:[%s172 + $0x38] sm:$0xff] %vm4519, %v4494
      %4528 = vst.msk [vmem:[%s172 + $0x40] sm:$0xff] %vm4519, %v4495
      %4529 = vst.msk [vmem:[%s172 + $0x48] sm:$0xff] %vm4519, %v4496
      %4530 = vst.msk [vmem:[%s172 + $0x50] sm:$0xff] %vm4519, %v4497
      %4531 = vst.msk [vmem:[%s172 + $0x58] sm:$0xff] %vm4519, %v4498
      %4532 = vst.msk [vmem:[%s172 + $0x60] sm:$0xff] %vm4519, %v4499
      %4533 = vst.msk [vmem:[%s172 + $0x68] sm:$0xff] %vm4519, %v4500
      %4534 = vst.msk [vmem:[%s172 + $0x70] sm:$0xff] %vm4519, %v4501
      %4535 = vst.msk [vmem:[%s172 + $0x78] sm:$0xff] %vm4519, %v4502
      %4536 = vst.msk [vmem:[%s172 + $0x80] sm:$0xff] %vm4519, %v4503
      %4537 = vst.msk [vmem:[%s172 + $0x88] sm:$0xff] %vm4519, %v4504
      %4538 = vst.msk [vmem:[%s172 + $0x90] sm:$0xff] %vm4519, %v4505
      %4539 = vst.msk [vmem:[%s172 + $0x98] sm:$0xff] %vm4519, %v4506
      %4540 = vst.msk [vmem:[%s172 + $0xa0] sm:$0xff] %vm4519, %v4507
      %4541 = vst.msk [vmem:[%s172 + $0xa8] sm:$0xff] %vm4519, %v4508
      %4542 = vst.msk [vmem:[%s172 + $0xb0] sm:$0xff] %vm4519, %v4509
      %4543 = vst.msk [vmem:[%s172 + $0xb8] sm:$0xff] %vm4519, %v4510
      %4544 = vst.msk [vmem:[%s172 + $0xc0] sm:$0xff] %vm4519, %v4511
      %4545 = vst.msk [vmem:[%s172 + $0xc8] sm:$0xff] %vm4519, %v4512
      %4546 = vst.msk [vmem:[%s172 + $0xd0] sm:$0xff] %vm4519, %v4513
      %4547 = vst.msk [vmem:[%s172 + $0xd8] sm:$0xff] %vm4519, %v4514
      %4548 = vst.msk [vmem:[%s172 + $0xe0] sm:$0xff] %vm4519, %v4515
      %4549 = vst.msk [vmem:[%s172 + $0xe8] sm:$0xff] %vm4519, %v4516
      %4550 = vst.msk [vmem:[%s172 + $0xf0] sm:$0xff] %vm4519, %v4517
      %4551 = vst.msk [vmem:[%s172 + $0xf8] sm:$0xff] %vm4519, %v4518
      %s4552 = smul.u32 32, %s19
      %p4553 = scmp.lt.s32.totalorder %s18, 1
      %s4554 = scalar_select %p4553, %s18, 1
      %p4555 = scmp.lt.s32.totalorder %s4552, 63
      %s4556 = scalar_select %p4555, %s4552, 63
      %s4557 = smul.addr %s4554, 64
      %s4558 = sadd.s32 %s4556, %s4557
      %s4559 = smul.addr %s4558, 8
      %s4560 = scalar_lea.vmem %s3, %s4559
      // Predicated region
      $region33: #{inception_block_v1.1} parent=31 // pred_check
        %p4561 = pneg %p109
      $region34: #{inception_block_v1.1} parent=31 // pred_check_branch
        %4563 = sbr.rel (%p4561) target = $region36
      $region35: #{inception_block_v1.1} parent=31 // pred_region
        %s4564 = smul.u32 32, %s19
      $region36: #{inception_block_v1.1} parent=31 // pred_fallthru
        _
    $region32: #{inception_block_v1.1} parent=5 // pred_fallthru
      _
    %p4565 = scmp.le.s32.totalorder 2, %s9
    // Predicated region
    $region37: #{inception_block_v1.1} parent=5 // pred_check
      %p4566 = pneg %p4565
    $region38: #{inception_block_v1.1} parent=5 // pred_check_branch
      %4568 = sbr.rel (%p4566) target = $region40
    $region39: #{inception_block_v1.1} parent=5 // pred_region
      %s4569 = ssub.s32 %s9, 2
      // Predicated region
      $region41: #{inception_block_v1.1} parent=39 // pred_check
        %p4570 = pneg %p115
      $region42: #{inception_block_v1.1} parent=39 // pred_check_branch
        %4572 = sbr.rel (%p4570) target = $region44
      $region43: #{inception_block_v1.1} parent=39 // pred_region
        %s4573 = smul.u32 32, %s21
        %p4574 = scmp.lt.s32.totalorder %s20, 1
        %s4575 = scalar_select %p4574, %s20, 1
        %p4576 = scmp.lt.s32.totalorder %s4573, 63
        %s4577 = scalar_select %p4576, %s4573, 63
        %s4578 = smul.addr %s4575, 64
        %s4579 = sadd.s32 %s4577, %s4578
        %s4580 = smul.addr %s4579, 8
        %s4581 = scalar_lea.vmem %s3, %s4580
      $region44: #{inception_block_v1.1} parent=39 // pred_fallthru
        _
    $region40: #{inception_block_v1.1} parent=5 // pred_fallthru
      _
  $region6: #{inception_block_v1.1} parent=0 // loop_footer
    %s13 = sadd.s32 1, %s9
  $region7: #{inception_block_v1.1} parent=0 // loop_footer_branch
    %8 = sbr.rel target = $region3
  $region8: #{inception_block_v1.1} parent=0 // loop_exit
    _

</llo_original>
